<compile_context>
chip_gen: v6e
topology: v6e:2x2x1
jax: 0.10.0
libtpu: 0.0.40
codegen_flags: <defaults>
</compile_context>

<pallas_src>
import functools

import jax
import jax.numpy as jnp
from jax.experimental import pallas as pl
from jax.experimental.pallas import tpu as pltpu

EPS = 1e-5  # PyTorch BatchNorm2d default


# ----------------------------------------------------------------------------
# Static (Python) plan of temporal-conv tap offsets and unique shift matrices
# ----------------------------------------------------------------------------
def _mtc_plan(K, dilations):
    taps = []                                    # taps[b][k] -> time offset
    for dil in dilations:
        pad = (K + (K - 1) * (dil - 1) - 1) // 2
        taps.append([k * dil - pad for k in range(K)])
    t_offs = sorted({o for row in taps for o in row})            # used by temporal convs
    nz_offs = sorted(({o for o in t_offs if o != 0}) | {-1, 1})  # shifts to materialize
    return taps, t_offs, nz_offs


# ----------------------------------------------------------------------------
# The fused Pallas kernel (one grid step == one batch sample, layout (C, T*V))
# ----------------------------------------------------------------------------
def _make_stgc_kernel(L, S, t_offs, nz_offs):
    def kernel(x_ref, wd_ref, bd_ref, gop_ref, wp_ref, wpe_ref, bgc_ref,
               wpwa_ref, bpwa_ref, wlast_ref, wcomb_ref, ssh_ref, dpool_ref,
               bmtc_ref, o_ref):
        f32 = jnp.float32
        Cout = wlast_ref.shape[0]
        TV = x_ref.shape[2]

        x = x_ref[0]                                            # (Cin, TV) lane-dense

        # ---------------- RHT_GC ----------------
        acc = jnp.zeros((Cout, TV), f32)
        for i in range(L):                                      # layers (static unroll)
            # conv_down + BN + ReLU  (BN folded into weights/bias)
            xd = jnp.maximum(
                jnp.dot(wd_ref[i], x, preferred_element_type=f32) + bd_ref[i], 0.0)
            for j in range(S):                                  # graph subsets
                # einsum('nctu,vu->nctv') == xd @ (I_T kron A^T)
                z = jnp.dot(xd, gop_ref[i * S + j], preferred_element_type=f32)
                # 1x1 conv + BN, pre-embedded at output rows j*inter:(j+1)*inter
                acc = acc + jnp.dot(wp_ref[i * S + j], z, preferred_element_type=f32)
            # edge branch (shares conv[i][-1]), embedded at the last channel slice
            acc = acc + jnp.dot(wpe_ref[i], xd, preferred_element_type=f32)
        # final BN (folded into weights/bias) + identity residual + ReLU
        g = jnp.maximum(acc + bgc_ref[...] + x, 0.0)            # (Cout, TV)

        # ---------------- RHT_MTC ----------------
        # ReLU'd branches (temporal + pool): stacked pointwise convs + BN + ReLU
        h = jnp.maximum(
            jnp.dot(wpwa_ref[...], g, preferred_element_type=f32) + bpwa_ref[...], 0.0)

        # unique time-shifted copies, shared by both dilated branches and the maxpool
        h_sh = {0: h}
        for j, off in enumerate(nz_offs):
            h_sh[off] = jnp.dot(h, ssh_ref[j], preferred_element_type=f32)

        # last branch: plain 1x1 conv + BN (no ReLU), embedded at its output rows
        out = jnp.dot(wlast_ref[...], g, preferred_element_type=f32)
        # dilated temporal convs, one block-diagonal weight per unique offset
        for u, off in enumerate(t_offs):
            out = out + jnp.dot(wcomb_ref[u], h_sh[off], preferred_element_type=f32)
        # maxpool (3,1): zero-filled shifts are exact (h rows are post-ReLU >= 0)
        pooled = jnp.maximum(h, jnp.maximum(h_sh[-1], h_sh[1]))
        out = out + jnp.dot(dpool_ref[...], pooled, preferred_element_type=f32)

        # ---------------- STGC residual (identity) + ReLU ----------------
        o_ref[0] = jnp.maximum(out + bmtc_ref[...] + x, 0.0).astype(o_ref.dtype)

    return kernel


def _const_index_map(ndim):
    return lambda n: (0,) * ndim


# ----------------------------------------------------------------------------
# Host-side parameter folding / operator construction (plain-JAX glue, jitted)
# ----------------------------------------------------------------------------
def _bn_scale_shift(bn):
    gamma, beta, mean, var = bn
    s = gamma / jnp.sqrt(var + EPS)
    return s, beta - mean * s


def _shift_matrix(T, V, off):
    """(h @ S)[.., t*V+v] == h[.., (t+off)*V+v] with zero fill outside [0,T)."""
    TV = T * V
    m = jnp.arange(TV)
    src = m + off * V
    t_idx = m // V
    valid = (t_idx + off >= 0) & (t_idx + off < T)
    S = (jnp.arange(TV)[:, None] == src[None, :]) & valid[None, :]
    return S.astype(jnp.float32)


def _prepare_operators(p, T, V, K, dilations):
    f32 = jnp.float32
    L, S = p['A'].shape[0], p['A'].shape[1]
    inter = p['gc_down_w'][0].shape[0]
    Cout = inter * (S + 1)
    n_dil = len(dilations)
    bc = Cout // (n_dil + 2)
    hC = (n_dil + 1) * bc
    TV = T * V
    taps, t_offs, nz_offs = _mtc_plan(K, dilations)

    # ---- RHT_GC: conv_down (+BN folded) ----
    Wd, bd = [], []
    for i in range(L):
        s, t = _bn_scale_shift(p['gc_down_bn'][i])
        Wd.append(s[:, None] * p['gc_down_w'][i])
        bd.append((s * p['gc_down_b'][i] + t)[:, None])
    Wd = jnp.stack(Wd)                                       # (L, inter, Cin)
    bd = jnp.stack(bd)                                       # (L, inter, 1)

    # ---- graph operators: I_T kron A^T  (block-diagonal over T) ----
    eyeT = jnp.eye(T, dtype=f32)
    G = jnp.stack([jnp.kron(eyeT, p['A'][i, j].T)
                   for i in range(L) for j in range(S)])     # (L*S, TV, TV)

    # ---- subset convs (+BN), embedded at concat rows; edge branch shares conv[i][-1] ----
    Wp = jnp.zeros((L * S, Cout, inter), f32)
    Wpe = jnp.zeros((L, Cout, inter), f32)
    b_raw = jnp.zeros((Cout,), f32)
    for i in range(L):
        for j in range(S):
            s, t = _bn_scale_shift(p['gc_bn'][i][j])
            Wc = s[:, None] * p['gc_w'][i][j]
            bcv = s * p['gc_b'][i][j] + t
            Wp = Wp.at[i * S + j, j * inter:(j + 1) * inter, :].set(Wc)
            b_raw = b_raw.at[j * inter:(j + 1) * inter].add(bcv)
        s, t = _bn_scale_shift(p['gc_bn'][i][S - 1])
        Wc = s[:, None] * p['gc_w'][i][S - 1]
        bcv = s * p['gc_b'][i][S - 1] + t
        Wpe = Wpe.at[i, S * inter:(S + 1) * inter, :].set(Wc)
        b_raw = b_raw.at[S * inter:(S + 1) * inter].add(bcv)
    # fold the final BN (gamma = 1e-6 at init) into the embedded weights + bias
    s_o, t_o = _bn_scale_shift(p['gc_out_bn'])
    Wp = Wp * s_o[None, :, None]
    Wpe = Wpe * s_o[None, :, None]
    b_gc = (s_o * b_raw + t_o)[:, None]                      # (Cout, 1)

    # ---- RHT_MTC: pointwise convs (+BN) of the ReLU'd branches stacked into one ----
    Wpw_a = jnp.zeros((hC, Cout), f32)
    bpw_a = jnp.zeros((hC,), f32)
    for b in range(n_dil + 1):
        s, t = _bn_scale_shift(p['mtc_pw_bn'][b])
        Wpw_a = Wpw_a.at[b * bc:(b + 1) * bc, :].set(s[:, None] * p['mtc_pw_w'][b])
        bpw_a = bpw_a.at[b * bc:(b + 1) * bc].set(s * p['mtc_pw_b'][b] + t)
    bpw_a = bpw_a[:, None]

    b_mtc = jnp.zeros((Cout,), f32)

    # ---- last branch: 1x1 conv + BN (no ReLU), embedded at its output rows ----
    s, t = _bn_scale_shift(p['mtc_pw_bn'][n_dil + 1])
    W_last = jnp.zeros((Cout, Cout), f32)
    W_last = W_last.at[(n_dil + 1) * bc:, :].set(s[:, None] * p['mtc_pw_w'][n_dil + 1])
    b_mtc = b_mtc.at[(n_dil + 1) * bc:].add(s * p['mtc_pw_b'][n_dil + 1] + t)

    # ---- temporal convs: per-tap weights grouped per unique offset (block-diagonal) ----
    Wcomb = jnp.zeros((len(t_offs), Cout, hC), f32)
    t_idx = {o: u for u, o in enumerate(t_offs)}
    for b in range(n_dil):
        s, t = _bn_scale_shift(p['mtc_tc_bn'][b])
        w = p['mtc_tc_w'][b]                                 # (bc, bc, K)
        for k in range(K):
            u = t_idx[taps[b][k]]
            Wcomb = Wcomb.at[u, b * bc:(b + 1) * bc, b * bc:(b + 1) * bc].add(
                s[:, None] * w[:, :, k])
        b_mtc = b_mtc.at[b * bc:(b + 1) * bc].add(s * p['mtc_tc_bias'][b] + t)

    # ---- maxpool branch: post-pool BN affine (row selector scaled by gamma) ----
    s, t = _bn_scale_shift(p['mtc_pool_bn'])
    Dpool = jnp.zeros((Cout, hC), f32)
    rows = n_dil * bc + jnp.arange(bc)
    Dpool = Dpool.at[rows, rows].set(s)
    b_mtc = b_mtc.at[n_dil * bc:(n_dil + 1) * bc].add(t)
    b_mtc = b_mtc[:, None]

    # ---- shared shift matrices, one per unique nonzero offset ----
    Ssh = jnp.stack([_shift_matrix(T, V, o) for o in nz_offs])   # (n_nz, TV, TV)

    return dict(Wd=Wd, bd=bd, G=G, Wp=Wp, Wpe=Wpe, b_gc=b_gc,
                Wpw_a=Wpw_a, bpw_a=bpw_a, W_last=W_last, Wcomb=Wcomb,
                Ssh=Ssh, Dpool=Dpool, b_mtc=b_mtc)


# ----------------------------------------------------------------------------
# Forward pass: one pallas_call for the whole STGC block
# ----------------------------------------------------------------------------
@functools.partial(jax.jit, static_argnames=('K', 'dilations'))
def stgc_block_forward(x_nchw, params, K=5, dilations=(1, 2)):
    N, Cin, T, V = x_nchw.shape
    L, S = params['A'].shape[0], params['A'].shape[1]
    inter = params['gc_down_w'][0].shape[0]
    Cout = inter * (S + 1)
    TV = T * V
    if Cin != Cout:
        raise NotImplementedError(
            "identity residuals require in_channels == out_channels")  # TODO(synk)

    _, t_offs, nz_offs = _mtc_plan(K, dilations)
    ops = _prepare_operators(params, T, V, K, dilations)
    x = x_nchw.reshape(N, Cin, TV)          # channels on sublanes, T*V on lanes

    weight_args = (ops['Wd'], ops['bd'], ops['G'], ops['Wp'], ops['Wpe'], ops['b_gc'],
                   ops['Wpw_a'], ops['bpw_a'], ops['W_last'], ops['Wcomb'],
                   ops['Ssh'], ops['Dpool'], ops['b_mtc'])
    in_specs = [pl.BlockSpec((1, Cin, TV), lambda n: (n, 0, 0))]
    in_specs += [pl.BlockSpec(w.shape, _const_index_map(w.ndim)) for w in weight_args]

    y = pl.pallas_call(
        _make_stgc_kernel(L, S, t_offs, nz_offs),
        out_shape=jax.ShapeDtypeStruct((N, Cout, TV), x.dtype),
        grid_spec=pltpu.PrefetchScalarGridSpec(
            num_scalar_prefetch=0,
            grid=(N,),                                         # one step per sample
            in_specs=in_specs,
            out_specs=pl.BlockSpec((1, Cout, TV), lambda n: (n, 0, 0)),
        ),
        compiler_params=pltpu.CompilerParams(
            dimension_semantics=("parallel",),                 # megacore on v7x
        ),
    )(x, *weight_args)
    return y.reshape(N, Cout, T, V)


# ----------------------------------------------------------------------------
# Plain-jnp reference (eval-mode BN), written directly from the PyTorch spec
# ----------------------------------------------------------------------------
_PREC = jax.lax.Precision.HIGHEST


def _ref_bn(x, bn):
    gamma, beta, mean, var = bn
    s = gamma / jnp.sqrt(var + EPS)
    return x * s[None, :, None, None] + (beta - mean * s)[None, :, None, None]


def _ref_conv1x1(x, w, b):
    return jnp.einsum('nctv,dc->ndtv', x, w, precision=_PREC) + b[None, :, None, None]


def reference_forward(x, p, K=5, dilations=(1, 2)):
    N, Cin, T, V = x.shape
    L, S = p['A'].shape[0], p['A'].shape[1]
    # RHT_GC
    outs = []
    for i in range(L):
        xd = jax.nn.relu(_ref_bn(_ref_conv1x1(x, p['gc_down_w'][i], p['gc_down_b'][i]),
                                 p['gc_down_bn'][i]))
        ys = []
        for j in range(S):
            z = jnp.einsum('nctu,vu->nctv', xd, p['A'][i, j], precision=_PREC)
            ys.append(_ref_bn(_ref_conv1x1(z, p['gc_w'][i][j], p['gc_b'][i][j]),
                              p['gc_bn'][i][j]))
        ys.append(_ref_bn(_ref_conv1x1(xd, p['gc_w'][i][S - 1], p['gc_b'][i][S - 1]),
                          p['gc_bn'][i][S - 1]))
        outs.append(jnp.concatenate(ys, axis=1))
    gc = sum(outs)
    g = jax.nn.relu(_ref_bn(gc, p['gc_out_bn']) + x)
    # RHT_MTC
    branch_outs = []
    for b, dil in enumerate(dilations):
        h = jax.nn.relu(_ref_bn(_ref_conv1x1(g, p['mtc_pw_w'][b], p['mtc_pw_b'][b]),
                                p['mtc_pw_bn'][b]))
        pad = (K + (K - 1) * (dil - 1) - 1) // 2
        hp = jnp.pad(h, ((0, 0), (0, 0), (pad, pad), (0, 0)))
        y = jnp.zeros_like(h)
        for k in range(K):
            y = y + jnp.einsum('nctv,dc->ndtv', hp[:, :, k * dil:k * dil + T, :],
                               p['mtc_tc_w'][b][:, :, k], precision=_PREC)
        y = y + p['mtc_tc_bias'][b][None, :, None, None]
        branch_outs.append(_ref_bn(y, p['mtc_tc_bn'][b]))
    n_dil = len(dilations)
    h = jax.nn.relu(_ref_bn(_ref_conv1x1(g, p['mtc_pw_w'][n_dil], p['mtc_pw_b'][n_dil]),
                            p['mtc_pw_bn'][n_dil]))
    hp = jnp.pad(h, ((0, 0), (0, 0), (1, 1), (0, 0)), constant_values=-jnp.inf)
    pool = jnp.maximum(jnp.maximum(hp[:, :, 0:T], hp[:, :, 1:T + 1]), hp[:, :, 2:T + 2])
    branch_outs.append(_ref_bn(pool, p['mtc_pool_bn']))
    branch_outs.append(_ref_bn(
        _ref_conv1x1(g, p['mtc_pw_w'][n_dil + 1], p['mtc_pw_b'][n_dil + 1]),
        p['mtc_pw_bn'][n_dil + 1]))
    tcn = jnp.concatenate(branch_outs, axis=1)
    return jax.nn.relu(tcn + x)


# ----------------------------------------------------------------------------
# Deterministic parameter construction (mirrors STGC_Block.__init__ shapes/inits)
# ----------------------------------------------------------------------------
def init_params(key, Cin, Cout, L, S, V, K=5, n_dil=2):
    inter = Cout // (S + 1)
    bc = Cout // (n_dil + 2)
    keys = iter(jax.random.split(key, 128))

    def nrm(shape, std):
        return (std * jax.random.normal(next(keys), shape)).astype(jnp.float32)

    def bn_fixed(C, gamma=1.0):  # bn_init(bn, scale)
        return (jnp.full((C,), gamma, jnp.float32), jnp.zeros((C,), jnp.float32),
                jnp.zeros((C,), jnp.float32), jnp.ones((C,), jnp.float32))

    def bn_rand(C):  # weights_init: gamma ~ N(1, 0.02)
        return (1.0 + 0.02 * jax.random.normal(next(keys), (C,)).astype(jnp.float32),
                jnp.zeros((C,), jnp.float32),
                jnp.zeros((C,), jnp.float32), jnp.ones((C,), jnp.float32))

    p = {}
    # RHT_GC
    p['A'] = nrm((L, S, V, V), 0.3)
    p['gc_down_w'] = [nrm((inter, Cin), (2.0 / inter) ** 0.5) for _ in range(L)]
    p['gc_down_b'] = [jnp.zeros((inter,), jnp.float32) for _ in range(L)]
    p['gc_down_bn'] = [bn_fixed(inter) for _ in range(L)]
    p['gc_w'] = [[nrm((inter, inter), (2.0 / inter) ** 0.5) for _ in range(S)]
                 for _ in range(L)]
    p['gc_b'] = [[jnp.zeros((inter,), jnp.float32) for _ in range(S)] for _ in range(L)]
    p['gc_bn'] = [[bn_fixed(inter) for _ in range(S)] for _ in range(L)]
    p['gc_out_bn'] = bn_fixed(Cout, gamma=1e-6)               # bn_init(self.bn, 1e-6)
    # RHT_MTC (branch order: dilation 1, dilation 2, maxpool, plain 1x1)
    p['mtc_pw_w'] = [nrm((bc, Cout), (2.0 / bc) ** 0.5) for _ in range(n_dil + 2)]
    p['mtc_pw_b'] = [jnp.zeros((bc,), jnp.float32) for _ in range(n_dil + 2)]
    p['mtc_pw_bn'] = [bn_rand(bc) for _ in range(n_dil + 2)]
    p['mtc_tc_w'] = [nrm((bc, bc, K), (2.0 / (bc * K)) ** 0.5) for _ in range(n_dil)]
    p['mtc_tc_bias'] = [jnp.zeros((bc,), jnp.float32) for _ in range(n_dil)]
    p['mtc_tc_bn'] = [bn_rand(bc) for _ in range(n_dil)]
    p['mtc_pool_bn'] = bn_rand(bc)
    return p


# ----------------------------------------------------------------------------
if __name__ == "__main__":
    key = jax.random.PRNGKey(0)
    kx, kp = jax.random.split(key)

    # N=2, C_in=C_out=16, T=8 frames, V=16 joints; A: (layers=2, subsets=3, V, V)
    N, Cin, Cout, T, V = 2, 16, 16, 8, 16
    L, S, K = 2, 3, 5
    dilations = (1, 2)

    x = jax.random.normal(kx, (N, Cin, T, V), jnp.float32)
    params = init_params(kp, Cin, Cout, L, S, V, K=K, n_dil=len(dilations))

    y = jax.block_until_ready(stgc_block_forward(x, params, K=K, dilations=dilations))
    assert y.shape == (N, Cout, T, V) and y.dtype == jnp.float32
    assert bool(jnp.all(jnp.isfinite(y)))

    # correctness vs plain-jnp reference (eval-mode BN), default init (out-BN gamma=1e-6)
    y_ref = reference_forward(x, params, K=K, dilations=dilations)
    err = float(jnp.max(jnp.abs(y - y_ref)) / (jnp.max(jnp.abs(y_ref)) + 1e-6))
    assert err < 5e-2, f"mismatch vs reference: {err}"

    # second check with a non-degenerate output-BN gamma so the graph path is exercised
    p2 = dict(params)
    p2['gc_out_bn'] = (jnp.full((Cout,), 0.5, jnp.float32),
                       jnp.zeros((Cout,), jnp.float32),
                       jnp.zeros((Cout,), jnp.float32),
                       jnp.ones((Cout,), jnp.float32))
    y2 = jax.block_until_ready(stgc_block_forward(x, p2, K=K, dilations=dilations))
    y2_ref = reference_forward(x, p2, K=K, dilations=dilations)
    err2 = float(jnp.max(jnp.abs(y2 - y2_ref)) / (jnp.max(jnp.abs(y2_ref)) + 1e-6))
    assert err2 < 5e-2, f"mismatch vs reference (gamma=0.5): {err2}"

    print("KERNEL_OK")
</pallas_src>

<mosaic_0001>
module attributes {stable_mosaic.version = 11 : i64} {
  func.func @kernel(%arg0: i32, %arg1: memref<1x16x128xf32, #tpu.memory_space<vmem>>, %arg2: memref<2x4x16xf32, #tpu.memory_space<vmem>>, %arg3: memref<2x4x1xf32, #tpu.memory_space<vmem>>, %arg4: memref<6x128x128xf32, #tpu.memory_space<vmem>>, %arg5: memref<6x16x4xf32, #tpu.memory_space<vmem>>, %arg6: memref<2x16x4xf32, #tpu.memory_space<vmem>>, %arg7: memref<16x1xf32, #tpu.memory_space<vmem>>, %arg8: memref<12x16xf32, #tpu.memory_space<vmem>>, %arg9: memref<12x1xf32, #tpu.memory_space<vmem>>, %arg10: memref<16x16xf32, #tpu.memory_space<vmem>>, %arg11: memref<7x16x12xf32, #tpu.memory_space<vmem>>, %arg12: memref<6x128x128xf32, #tpu.memory_space<vmem>>, %arg13: memref<16x12xf32, #tpu.memory_space<vmem>>, %arg14: memref<16x1xf32, #tpu.memory_space<vmem>>, %arg15: memref<1x16x128xf32, #tpu.memory_space<vmem>>) attributes {dimension_semantics = [#tpu.dimension_semantics<parallel>], iteration_bounds = array<i64: 2>, scalar_prefetch = 0 : i64, scratch_operands = 0 : i64, tpu.core_type = #tpu.core_type<tc>, window_params = [{transform_indices = @transform_0, window_bounds = array<i64: 1, 16, 128>}, {pipeline_mode = #tpu.pipeline_mode<synchronous>, transform_indices = @transform_1, window_bounds = array<i64: 2, 4, 16>}, {pipeline_mode = #tpu.pipeline_mode<synchronous>, transform_indices = @transform_2, window_bounds = array<i64: 2, 4, 1>}, {pipeline_mode = #tpu.pipeline_mode<synchronous>, transform_indices = @transform_3, window_bounds = array<i64: 6, 128, 128>}, {pipeline_mode = #tpu.pipeline_mode<synchronous>, transform_indices = @transform_4, window_bounds = array<i64: 6, 16, 4>}, {pipeline_mode = #tpu.pipeline_mode<synchronous>, transform_indices = @transform_5, window_bounds = array<i64: 2, 16, 4>}, {pipeline_mode = #tpu.pipeline_mode<synchronous>, transform_indices = @transform_6, window_bounds = array<i64: 16, 1>}, {pipeline_mode = #tpu.pipeline_mode<synchronous>, transform_indices = @transform_7, window_bounds = array<i64: 12, 16>}, {pipeline_mode = #tpu.pipeline_mode<synchronous>, transform_indices = @transform_8, window_bounds = array<i64: 12, 1>}, {pipeline_mode = #tpu.pipeline_mode<synchronous>, transform_indices = @transform_9, window_bounds = array<i64: 16, 16>}, {pipeline_mode = #tpu.pipeline_mode<synchronous>, transform_indices = @transform_10, window_bounds = array<i64: 7, 16, 12>}, {pipeline_mode = #tpu.pipeline_mode<synchronous>, transform_indices = @transform_11, window_bounds = array<i64: 6, 128, 128>}, {pipeline_mode = #tpu.pipeline_mode<synchronous>, transform_indices = @transform_12, window_bounds = array<i64: 16, 12>}, {pipeline_mode = #tpu.pipeline_mode<synchronous>, transform_indices = @transform_13, window_bounds = array<i64: 16, 1>}, {transform_indices = @transform_14, window_bounds = array<i64: 1, 16, 128>}]} {
    %c0 = arith.constant 0 : index
    %c0_0 = arith.constant 0 : index
    %c0_1 = arith.constant 0 : index
    %0 = vector.load %arg1[%c0, %c0_0, %c0_1] : memref<1x16x128xf32, #tpu.memory_space<vmem>>, vector<1x16x128xf32>
    %1 = vector.shape_cast %0 : vector<1x16x128xf32> to vector<16x128xf32>
    %cst = arith.constant 0.000000e+00 : f32
    %2 = vector.broadcast %cst : f32 to vector<16x128xf32>
    %c0_2 = arith.constant 0 : index
    %c0_3 = arith.constant 0 : index
    %c0_4 = arith.constant 0 : index
    %3 = vector.load %arg2[%c0_2, %c0_3, %c0_4] : memref<2x4x16xf32, #tpu.memory_space<vmem>>, vector<1x4x16xf32>
    %4 = vector.shape_cast %3 : vector<1x4x16xf32> to vector<4x16xf32>
    %cst_5 = arith.constant dense<0.000000e+00> : vector<4x128xf32>
    %5 = tpu.matmul %4, %1, %cst_5 {dimension_numbers = #tpu.dot_dimension_numbers<[1], [0], [0], [1], [0, 0, 1, 1], [], []>} : vector<4x16xf32>, vector<16x128xf32>, vector<4x128xf32> -> vector<4x128xf32>
    %c0_6 = arith.constant 0 : index
    %c0_7 = arith.constant 0 : index
    %c0_8 = arith.constant 0 : index
    %6 = vector.load %arg3[%c0_6, %c0_7, %c0_8] : memref<2x4x1xf32, #tpu.memory_space<vmem>>, vector<1x4x1xf32>
    %7 = vector.shape_cast %6 : vector<1x4x1xf32> to vector<4x1xf32>
    %8 = vector.broadcast %7 : vector<4x1xf32> to vector<4x128xf32>
    %9 = arith.addf %5, %8 : vector<4x128xf32>
    %cst_9 = arith.constant 0.000000e+00 : f32
    %10 = vector.broadcast %cst_9 : f32 to vector<4x128xf32>
    %11 = arith.maximumf %9, %10 : vector<4x128xf32>
    %c0_10 = arith.constant 0 : index
    %c0_11 = arith.constant 0 : index
    %c0_12 = arith.constant 0 : index
    %12 = vector.load %arg4[%c0_10, %c0_11, %c0_12] : memref<6x128x128xf32, #tpu.memory_space<vmem>>, vector<1x128x128xf32>
    %13 = vector.shape_cast %12 : vector<1x128x128xf32> to vector<128x128xf32>
    %cst_13 = arith.constant dense<0.000000e+00> : vector<4x128xf32>
    %14 = tpu.matmul %11, %13, %cst_13 {dimension_numbers = #tpu.dot_dimension_numbers<[1], [0], [0], [1], [0, 0, 1, 1], [], []>} : vector<4x128xf32>, vector<128x128xf32>, vector<4x128xf32> -> vector<4x128xf32>
    %c0_14 = arith.constant 0 : index
    %c0_15 = arith.constant 0 : index
    %c0_16 = arith.constant 0 : index
    %15 = vector.load %arg5[%c0_14, %c0_15, %c0_16] : memref<6x16x4xf32, #tpu.memory_space<vmem>>, vector<1x16x4xf32>
    %16 = vector.shape_cast %15 : vector<1x16x4xf32> to vector<16x4xf32>
    %cst_17 = arith.constant dense<0.000000e+00> : vector<16x128xf32>
    %17 = tpu.matmul %16, %14, %cst_17 {dimension_numbers = #tpu.dot_dimension_numbers<[1], [0], [0], [1], [0, 0, 1, 1], [], []>} : vector<16x4xf32>, vector<4x128xf32>, vector<16x128xf32> -> vector<16x128xf32>
    %18 = arith.addf %2, %17 : vector<16x128xf32>
    %c1 = arith.constant 1 : index
    %c0_18 = arith.constant 0 : index
    %c0_19 = arith.constant 0 : index
    %19 = vector.load %arg4[%c1, %c0_18, %c0_19] : memref<6x128x128xf32, #tpu.memory_space<vmem>>, vector<1x128x128xf32>
    %20 = vector.shape_cast %19 : vector<1x128x128xf32> to vector<128x128xf32>
    %cst_20 = arith.constant dense<0.000000e+00> : vector<4x128xf32>
    %21 = tpu.matmul %11, %20, %cst_20 {dimension_numbers = #tpu.dot_dimension_numbers<[1], [0], [0], [1], [0, 0, 1, 1], [], []>} : vector<4x128xf32>, vector<128x128xf32>, vector<4x128xf32> -> vector<4x128xf32>
    %c1_21 = arith.constant 1 : index
    %c0_22 = arith.constant 0 : index
    %c0_23 = arith.constant 0 : index
    %22 = vector.load %arg5[%c1_21, %c0_22, %c0_23] : memref<6x16x4xf32, #tpu.memory_space<vmem>>, vector<1x16x4xf32>
    %23 = vector.shape_cast %22 : vector<1x16x4xf32> to vector<16x4xf32>
    %cst_24 = arith.constant dense<0.000000e+00> : vector<16x128xf32>
    %24 = tpu.matmul %23, %21, %cst_24 {dimension_numbers = #tpu.dot_dimension_numbers<[1], [0], [0], [1], [0, 0, 1, 1], [], []>} : vector<16x4xf32>, vector<4x128xf32>, vector<16x128xf32> -> vector<16x128xf32>
    %25 = arith.addf %18, %24 : vector<16x128xf32>
    %c2 = arith.constant 2 : index
    %c0_25 = arith.constant 0 : index
    %c0_26 = arith.constant 0 : index
    %26 = vector.load %arg4[%c2, %c0_25, %c0_26] : memref<6x128x128xf32, #tpu.memory_space<vmem>>, vector<1x128x128xf32>
    %27 = vector.shape_cast %26 : vector<1x128x128xf32> to vector<128x128xf32>
    %cst_27 = arith.constant dense<0.000000e+00> : vector<4x128xf32>
    %28 = tpu.matmul %11, %27, %cst_27 {dimension_numbers = #tpu.dot_dimension_numbers<[1], [0], [0], [1], [0, 0, 1, 1], [], []>} : vector<4x128xf32>, vector<128x128xf32>, vector<4x128xf32> -> vector<4x128xf32>
    %c2_28 = arith.constant 2 : index
    %c0_29 = arith.constant 0 : index
    %c0_30 = arith.constant 0 : index
    %29 = vector.load %arg5[%c2_28, %c0_29, %c0_30] : memref<6x16x4xf32, #tpu.memory_space<vmem>>, vector<1x16x4xf32>
    %30 = vector.shape_cast %29 : vector<1x16x4xf32> to vector<16x4xf32>
    %cst_31 = arith.constant dense<0.000000e+00> : vector<16x128xf32>
    %31 = tpu.matmul %30, %28, %cst_31 {dimension_numbers = #tpu.dot_dimension_numbers<[1], [0], [0], [1], [0, 0, 1, 1], [], []>} : vector<16x4xf32>, vector<4x128xf32>, vector<16x128xf32> -> vector<16x128xf32>
    %32 = arith.addf %25, %31 : vector<16x128xf32>
    %c0_32 = arith.constant 0 : index
    %c0_33 = arith.constant 0 : index
    %c0_34 = arith.constant 0 : index
    %33 = vector.load %arg6[%c0_32, %c0_33, %c0_34] : memref<2x16x4xf32, #tpu.memory_space<vmem>>, vector<1x16x4xf32>
    %34 = vector.shape_cast %33 : vector<1x16x4xf32> to vector<16x4xf32>
    %cst_35 = arith.constant dense<0.000000e+00> : vector<16x128xf32>
    %35 = tpu.matmul %34, %11, %cst_35 {dimension_numbers = #tpu.dot_dimension_numbers<[1], [0], [0], [1], [0, 0, 1, 1], [], []>} : vector<16x4xf32>, vector<4x128xf32>, vector<16x128xf32> -> vector<16x128xf32>
    %36 = arith.addf %32, %35 : vector<16x128xf32>
    %c1_36 = arith.constant 1 : index
    %c0_37 = arith.constant 0 : index
    %c0_38 = arith.constant 0 : index
    %37 = vector.load %arg2[%c1_36, %c0_37, %c0_38] : memref<2x4x16xf32, #tpu.memory_space<vmem>>, vector<1x4x16xf32>
    %38 = vector.shape_cast %37 : vector<1x4x16xf32> to vector<4x16xf32>
    %cst_39 = arith.constant dense<0.000000e+00> : vector<4x128xf32>
    %39 = tpu.matmul %38, %1, %cst_39 {dimension_numbers = #tpu.dot_dimension_numbers<[1], [0], [0], [1], [0, 0, 1, 1], [], []>} : vector<4x16xf32>, vector<16x128xf32>, vector<4x128xf32> -> vector<4x128xf32>
    %c1_40 = arith.constant 1 : index
    %c0_41 = arith.constant 0 : index
    %c0_42 = arith.constant 0 : index
    %40 = vector.load %arg3[%c1_40, %c0_41, %c0_42] : memref<2x4x1xf32, #tpu.memory_space<vmem>>, vector<1x4x1xf32>
    %41 = vector.shape_cast %40 : vector<1x4x1xf32> to vector<4x1xf32>
    %42 = vector.broadcast %41 : vector<4x1xf32> to vector<4x128xf32>
    %43 = arith.addf %39, %42 : vector<4x128xf32>
    %cst_43 = arith.constant 0.000000e+00 : f32
    %44 = vector.broadcast %cst_43 : f32 to vector<4x128xf32>
    %45 = arith.maximumf %43, %44 : vector<4x128xf32>
    %c3 = arith.constant 3 : index
    %c0_44 = arith.constant 0 : index
    %c0_45 = arith.constant 0 : index
    %46 = vector.load %arg4[%c3, %c0_44, %c0_45] : memref<6x128x128xf32, #tpu.memory_space<vmem>>, vector<1x128x128xf32>
    %47 = vector.shape_cast %46 : vector<1x128x128xf32> to vector<128x128xf32>
    %cst_46 = arith.constant dense<0.000000e+00> : vector<4x128xf32>
    %48 = tpu.matmul %45, %47, %cst_46 {dimension_numbers = #tpu.dot_dimension_numbers<[1], [0], [0], [1], [0, 0, 1, 1], [], []>} : vector<4x128xf32>, vector<128x128xf32>, vector<4x128xf32> -> vector<4x128xf32>
    %c3_47 = arith.constant 3 : index
    %c0_48 = arith.constant 0 : index
    %c0_49 = arith.constant 0 : index
    %49 = vector.load %arg5[%c3_47, %c0_48, %c0_49] : memref<6x16x4xf32, #tpu.memory_space<vmem>>, vector<1x16x4xf32>
    %50 = vector.shape_cast %49 : vector<1x16x4xf32> to vector<16x4xf32>
    %cst_50 = arith.constant dense<0.000000e+00> : vector<16x128xf32>
    %51 = tpu.matmul %50, %48, %cst_50 {dimension_numbers = #tpu.dot_dimension_numbers<[1], [0], [0], [1], [0, 0, 1, 1], [], []>} : vector<16x4xf32>, vector<4x128xf32>, vector<16x128xf32> -> vector<16x128xf32>
    %52 = arith.addf %36, %51 : vector<16x128xf32>
    %c4 = arith.constant 4 : index
    %c0_51 = arith.constant 0 : index
    %c0_52 = arith.constant 0 : index
    %53 = vector.load %arg4[%c4, %c0_51, %c0_52] : memref<6x128x128xf32, #tpu.memory_space<vmem>>, vector<1x128x128xf32>
    %54 = vector.shape_cast %53 : vector<1x128x128xf32> to vector<128x128xf32>
    %cst_53 = arith.constant dense<0.000000e+00> : vector<4x128xf32>
    %55 = tpu.matmul %45, %54, %cst_53 {dimension_numbers = #tpu.dot_dimension_numbers<[1], [0], [0], [1], [0, 0, 1, 1], [], []>} : vector<4x128xf32>, vector<128x128xf32>, vector<4x128xf32> -> vector<4x128xf32>
    %c4_54 = arith.constant 4 : index
    %c0_55 = arith.constant 0 : index
    %c0_56 = arith.constant 0 : index
    %56 = vector.load %arg5[%c4_54, %c0_55, %c0_56] : memref<6x16x4xf32, #tpu.memory_space<vmem>>, vector<1x16x4xf32>
    %57 = vector.shape_cast %56 : vector<1x16x4xf32> to vector<16x4xf32>
    %cst_57 = arith.constant dense<0.000000e+00> : vector<16x128xf32>
    %58 = tpu.matmul %57, %55, %cst_57 {dimension_numbers = #tpu.dot_dimension_numbers<[1], [0], [0], [1], [0, 0, 1, 1], [], []>} : vector<16x4xf32>, vector<4x128xf32>, vector<16x128xf32> -> vector<16x128xf32>
    %59 = arith.addf %52, %58 : vector<16x128xf32>
    %c5 = arith.constant 5 : index
    %c0_58 = arith.constant 0 : index
    %c0_59 = arith.constant 0 : index
    %60 = vector.load %arg4[%c5, %c0_58, %c0_59] : memref<6x128x128xf32, #tpu.memory_space<vmem>>, vector<1x128x128xf32>
    %61 = vector.shape_cast %60 : vector<1x128x128xf32> to vector<128x128xf32>
    %cst_60 = arith.constant dense<0.000000e+00> : vector<4x128xf32>
    %62 = tpu.matmul %45, %61, %cst_60 {dimension_numbers = #tpu.dot_dimension_numbers<[1], [0], [0], [1], [0, 0, 1, 1], [], []>} : vector<4x128xf32>, vector<128x128xf32>, vector<4x128xf32> -> vector<4x128xf32>
    %c5_61 = arith.constant 5 : index
    %c0_62 = arith.constant 0 : index
    %c0_63 = arith.constant 0 : index
    %63 = vector.load %arg5[%c5_61, %c0_62, %c0_63] : memref<6x16x4xf32, #tpu.memory_space<vmem>>, vector<1x16x4xf32>
    %64 = vector.shape_cast %63 : vector<1x16x4xf32> to vector<16x4xf32>
    %cst_64 = arith.constant dense<0.000000e+00> : vector<16x128xf32>
    %65 = tpu.matmul %64, %62, %cst_64 {dimension_numbers = #tpu.dot_dimension_numbers<[1], [0], [0], [1], [0, 0, 1, 1], [], []>} : vector<16x4xf32>, vector<4x128xf32>, vector<16x128xf32> -> vector<16x128xf32>
    %66 = arith.addf %59, %65 : vector<16x128xf32>
    %c1_65 = arith.constant 1 : index
    %c0_66 = arith.constant 0 : index
    %c0_67 = arith.constant 0 : index
    %67 = vector.load %arg6[%c1_65, %c0_66, %c0_67] : memref<2x16x4xf32, #tpu.memory_space<vmem>>, vector<1x16x4xf32>
    %68 = vector.shape_cast %67 : vector<1x16x4xf32> to vector<16x4xf32>
    %cst_68 = arith.constant dense<0.000000e+00> : vector<16x128xf32>
    %69 = tpu.matmul %68, %45, %cst_68 {dimension_numbers = #tpu.dot_dimension_numbers<[1], [0], [0], [1], [0, 0, 1, 1], [], []>} : vector<16x4xf32>, vector<4x128xf32>, vector<16x128xf32> -> vector<16x128xf32>
    %70 = arith.addf %66, %69 : vector<16x128xf32>
    %c0_69 = arith.constant 0 : index
    %c0_70 = arith.constant 0 : index
    %71 = vector.load %arg7[%c0_69, %c0_70] : memref<16x1xf32, #tpu.memory_space<vmem>>, vector<16x1xf32>
    %72 = vector.broadcast %71 : vector<16x1xf32> to vector<16x128xf32>
    %73 = arith.addf %70, %72 : vector<16x128xf32>
    %74 = arith.addf %73, %1 : vector<16x128xf32>
    %cst_71 = arith.constant 0.000000e+00 : f32
    %75 = vector.broadcast %cst_71 : f32 to vector<16x128xf32>
    %76 = arith.maximumf %74, %75 : vector<16x128xf32>
    %c0_72 = arith.constant 0 : index
    %c0_73 = arith.constant 0 : index
    %77 = vector.load %arg8[%c0_72, %c0_73] : memref<12x16xf32, #tpu.memory_space<vmem>>, vector<12x16xf32>
    %cst_74 = arith.constant dense<0.000000e+00> : vector<12x128xf32>
    %78 = tpu.matmul %77, %76, %cst_74 {dimension_numbers = #tpu.dot_dimension_numbers<[1], [0], [0], [1], [0, 0, 1, 1], [], []>} : vector<12x16xf32>, vector<16x128xf32>, vector<12x128xf32> -> vector<12x128xf32>
    %c0_75 = arith.constant 0 : index
    %c0_76 = arith.constant 0 : index
    %79 = vector.load %arg9[%c0_75, %c0_76] : memref<12x1xf32, #tpu.memory_space<vmem>>, vector<12x1xf32>
    %80 = vector.broadcast %79 : vector<12x1xf32> to vector<12x128xf32>
    %81 = arith.addf %78, %80 : vector<12x128xf32>
    %cst_77 = arith.constant 0.000000e+00 : f32
    %82 = vector.broadcast %cst_77 : f32 to vector<12x128xf32>
    %83 = arith.maximumf %81, %82 : vector<12x128xf32>
    %c0_78 = arith.constant 0 : index
    %c0_79 = arith.constant 0 : index
    %c0_80 = arith.constant 0 : index
    %84 = vector.load %arg12[%c0_78, %c0_79, %c0_80] : memref<6x128x128xf32, #tpu.memory_space<vmem>>, vector<1x128x128xf32>
    %85 = vector.shape_cast %84 : vector<1x128x128xf32> to vector<128x128xf32>
    %cst_81 = arith.constant dense<0.000000e+00> : vector<12x128xf32>
    %86 = tpu.matmul %83, %85, %cst_81 {dimension_numbers = #tpu.dot_dimension_numbers<[1], [0], [0], [1], [0, 0, 1, 1], [], []>} : vector<12x128xf32>, vector<128x128xf32>, vector<12x128xf32> -> vector<12x128xf32>
    %c1_82 = arith.constant 1 : index
    %c0_83 = arith.constant 0 : index
    %c0_84 = arith.constant 0 : index
    %87 = vector.load %arg12[%c1_82, %c0_83, %c0_84] : memref<6x128x128xf32, #tpu.memory_space<vmem>>, vector<1x128x128xf32>
    %88 = vector.shape_cast %87 : vector<1x128x128xf32> to vector<128x128xf32>
    %cst_85 = arith.constant dense<0.000000e+00> : vector<12x128xf32>
    %89 = tpu.matmul %83, %88, %cst_85 {dimension_numbers = #tpu.dot_dimension_numbers<[1], [0], [0], [1], [0, 0, 1, 1], [], []>} : vector<12x128xf32>, vector<128x128xf32>, vector<12x128xf32> -> vector<12x128xf32>
    %c2_86 = arith.constant 2 : index
    %c0_87 = arith.constant 0 : index
    %c0_88 = arith.constant 0 : index
    %90 = vector.load %arg12[%c2_86, %c0_87, %c0_88] : memref<6x128x128xf32, #tpu.memory_space<vmem>>, vector<1x128x128xf32>
    %91 = vector.shape_cast %90 : vector<1x128x128xf32> to vector<128x128xf32>
    %cst_89 = arith.constant dense<0.000000e+00> : vector<12x128xf32>
    %92 = tpu.matmul %83, %91, %cst_89 {dimension_numbers = #tpu.dot_dimension_numbers<[1], [0], [0], [1], [0, 0, 1, 1], [], []>} : vector<12x128xf32>, vector<128x128xf32>, vector<12x128xf32> -> vector<12x128xf32>
    %c3_90 = arith.constant 3 : index
    %c0_91 = arith.constant 0 : index
    %c0_92 = arith.constant 0 : index
    %93 = vector.load %arg12[%c3_90, %c0_91, %c0_92] : memref<6x128x128xf32, #tpu.memory_space<vmem>>, vector<1x128x128xf32>
    %94 = vector.shape_cast %93 : vector<1x128x128xf32> to vector<128x128xf32>
    %cst_93 = arith.constant dense<0.000000e+00> : vector<12x128xf32>
    %95 = tpu.matmul %83, %94, %cst_93 {dimension_numbers = #tpu.dot_dimension_numbers<[1], [0], [0], [1], [0, 0, 1, 1], [], []>} : vector<12x128xf32>, vector<128x128xf32>, vector<12x128xf32> -> vector<12x128xf32>
    %c4_94 = arith.constant 4 : index
    %c0_95 = arith.constant 0 : index
    %c0_96 = arith.constant 0 : index
    %96 = vector.load %arg12[%c4_94, %c0_95, %c0_96] : memref<6x128x128xf32, #tpu.memory_space<vmem>>, vector<1x128x128xf32>
    %97 = vector.shape_cast %96 : vector<1x128x128xf32> to vector<128x128xf32>
    %cst_97 = arith.constant dense<0.000000e+00> : vector<12x128xf32>
    %98 = tpu.matmul %83, %97, %cst_97 {dimension_numbers = #tpu.dot_dimension_numbers<[1], [0], [0], [1], [0, 0, 1, 1], [], []>} : vector<12x128xf32>, vector<128x128xf32>, vector<12x128xf32> -> vector<12x128xf32>
    %c5_98 = arith.constant 5 : index
    %c0_99 = arith.constant 0 : index
    %c0_100 = arith.constant 0 : index
    %99 = vector.load %arg12[%c5_98, %c0_99, %c0_100] : memref<6x128x128xf32, #tpu.memory_space<vmem>>, vector<1x128x128xf32>
    %100 = vector.shape_cast %99 : vector<1x128x128xf32> to vector<128x128xf32>
    %cst_101 = arith.constant dense<0.000000e+00> : vector<12x128xf32>
    %101 = tpu.matmul %83, %100, %cst_101 {dimension_numbers = #tpu.dot_dimension_numbers<[1], [0], [0], [1], [0, 0, 1, 1], [], []>} : vector<12x128xf32>, vector<128x128xf32>, vector<12x128xf32> -> vector<12x128xf32>
    %c0_102 = arith.constant 0 : index
    %c0_103 = arith.constant 0 : index
    %102 = vector.load %arg10[%c0_102, %c0_103] : memref<16x16xf32, #tpu.memory_space<vmem>>, vector<16x16xf32>
    %cst_104 = arith.constant dense<0.000000e+00> : vector<16x128xf32>
    %103 = tpu.matmul %102, %76, %cst_104 {dimension_numbers = #tpu.dot_dimension_numbers<[1], [0], [0], [1], [0, 0, 1, 1], [], []>} : vector<16x16xf32>, vector<16x128xf32>, vector<16x128xf32> -> vector<16x128xf32>
    %c0_105 = arith.constant 0 : index
    %c0_106 = arith.constant 0 : index
    %c0_107 = arith.constant 0 : index
    %104 = vector.load %arg11[%c0_105, %c0_106, %c0_107] : memref<7x16x12xf32, #tpu.memory_space<vmem>>, vector<1x16x12xf32>
    %105 = vector.shape_cast %104 : vector<1x16x12xf32> to vector<16x12xf32>
    %cst_108 = arith.constant dense<0.000000e+00> : vector<16x128xf32>
    %106 = tpu.matmul %105, %86, %cst_108 {dimension_numbers = #tpu.dot_dimension_numbers<[1], [0], [0], [1], [0, 0, 1, 1], [], []>} : vector<16x12xf32>, vector<12x128xf32>, vector<16x128xf32> -> vector<16x128xf32>
    %107 = arith.addf %103, %106 : vector<16x128xf32>
    %c1_109 = arith.constant 1 : index
    %c0_110 = arith.constant 0 : index
    %c0_111 = arith.constant 0 : index
    %108 = vector.load %arg11[%c1_109, %c0_110, %c0_111] : memref<7x16x12xf32, #tpu.memory_space<vmem>>, vector<1x16x12xf32>
    %109 = vector.shape_cast %108 : vector<1x16x12xf32> to vector<16x12xf32>
    %cst_112 = arith.constant dense<0.000000e+00> : vector<16x128xf32>
    %110 = tpu.matmul %109, %89, %cst_112 {dimension_numbers = #tpu.dot_dimension_numbers<[1], [0], [0], [1], [0, 0, 1, 1], [], []>} : vector<16x12xf32>, vector<12x128xf32>, vector<16x128xf32> -> vector<16x128xf32>
    %111 = arith.addf %107, %110 : vector<16x128xf32>
    %c2_113 = arith.constant 2 : index
    %c0_114 = arith.constant 0 : index
    %c0_115 = arith.constant 0 : index
    %112 = vector.load %arg11[%c2_113, %c0_114, %c0_115] : memref<7x16x12xf32, #tpu.memory_space<vmem>>, vector<1x16x12xf32>
    %113 = vector.shape_cast %112 : vector<1x16x12xf32> to vector<16x12xf32>
    %cst_116 = arith.constant dense<0.000000e+00> : vector<16x128xf32>
    %114 = tpu.matmul %113, %92, %cst_116 {dimension_numbers = #tpu.dot_dimension_numbers<[1], [0], [0], [1], [0, 0, 1, 1], [], []>} : vector<16x12xf32>, vector<12x128xf32>, vector<16x128xf32> -> vector<16x128xf32>
    %115 = arith.addf %111, %114 : vector<16x128xf32>
    %c3_117 = arith.constant 3 : index
    %c0_118 = arith.constant 0 : index
    %c0_119 = arith.constant 0 : index
    %116 = vector.load %arg11[%c3_117, %c0_118, %c0_119] : memref<7x16x12xf32, #tpu.memory_space<vmem>>, vector<1x16x12xf32>
    %117 = vector.shape_cast %116 : vector<1x16x12xf32> to vector<16x12xf32>
    %cst_120 = arith.constant dense<0.000000e+00> : vector<16x128xf32>
    %118 = tpu.matmul %117, %83, %cst_120 {dimension_numbers = #tpu.dot_dimension_numbers<[1], [0], [0], [1], [0, 0, 1, 1], [], []>} : vector<16x12xf32>, vector<12x128xf32>, vector<16x128xf32> -> vector<16x128xf32>
    %119 = arith.addf %115, %118 : vector<16x128xf32>
    %c4_121 = arith.constant 4 : index
    %c0_122 = arith.constant 0 : index
    %c0_123 = arith.constant 0 : index
    %120 = vector.load %arg11[%c4_121, %c0_122, %c0_123] : memref<7x16x12xf32, #tpu.memory_space<vmem>>, vector<1x16x12xf32>
    %121 = vector.shape_cast %120 : vector<1x16x12xf32> to vector<16x12xf32>
    %cst_124 = arith.constant dense<0.000000e+00> : vector<16x128xf32>
    %122 = tpu.matmul %121, %95, %cst_124 {dimension_numbers = #tpu.dot_dimension_numbers<[1], [0], [0], [1], [0, 0, 1, 1], [], []>} : vector<16x12xf32>, vector<12x128xf32>, vector<16x128xf32> -> vector<16x128xf32>
    %123 = arith.addf %119, %122 : vector<16x128xf32>
    %c5_125 = arith.constant 5 : index
    %c0_126 = arith.constant 0 : index
    %c0_127 = arith.constant 0 : index
    %124 = vector.load %arg11[%c5_125, %c0_126, %c0_127] : memref<7x16x12xf32, #tpu.memory_space<vmem>>, vector<1x16x12xf32>
    %125 = vector.shape_cast %124 : vector<1x16x12xf32> to vector<16x12xf32>
    %cst_128 = arith.constant dense<0.000000e+00> : vector<16x128xf32>
    %126 = tpu.matmul %125, %98, %cst_128 {dimension_numbers = #tpu.dot_dimension_numbers<[1], [0], [0], [1], [0, 0, 1, 1], [], []>} : vector<16x12xf32>, vector<12x128xf32>, vector<16x128xf32> -> vector<16x128xf32>
    %127 = arith.addf %123, %126 : vector<16x128xf32>
    %c6 = arith.constant 6 : index
    %c0_129 = arith.constant 0 : index
    %c0_130 = arith.constant 0 : index
    %128 = vector.load %arg11[%c6, %c0_129, %c0_130] : memref<7x16x12xf32, #tpu.memory_space<vmem>>, vector<1x16x12xf32>
    %129 = vector.shape_cast %128 : vector<1x16x12xf32> to vector<16x12xf32>
    %cst_131 = arith.constant dense<0.000000e+00> : vector<16x128xf32>
    %130 = tpu.matmul %129, %101, %cst_131 {dimension_numbers = #tpu.dot_dimension_numbers<[1], [0], [0], [1], [0, 0, 1, 1], [], []>} : vector<16x12xf32>, vector<12x128xf32>, vector<16x128xf32> -> vector<16x128xf32>
    %131 = arith.addf %127, %130 : vector<16x128xf32>
    %132 = arith.maximumf %92, %95 : vector<12x128xf32>
    %133 = arith.maximumf %83, %132 : vector<12x128xf32>
    %c0_132 = arith.constant 0 : index
    %c0_133 = arith.constant 0 : index
    %134 = vector.load %arg13[%c0_132, %c0_133] : memref<16x12xf32, #tpu.memory_space<vmem>>, vector<16x12xf32>
    %cst_134 = arith.constant dense<0.000000e+00> : vector<16x128xf32>
    %135 = tpu.matmul %134, %133, %cst_134 {dimension_numbers = #tpu.dot_dimension_numbers<[1], [0], [0], [1], [0, 0, 1, 1], [], []>} : vector<16x12xf32>, vector<12x128xf32>, vector<16x128xf32> -> vector<16x128xf32>
    %136 = arith.addf %131, %135 : vector<16x128xf32>
    %c0_135 = arith.constant 0 : index
    %c0_136 = arith.constant 0 : index
    %137 = vector.load %arg14[%c0_135, %c0_136] : memref<16x1xf32, #tpu.memory_space<vmem>>, vector<16x1xf32>
    %138 = vector.broadcast %137 : vector<16x1xf32> to vector<16x128xf32>
    %139 = arith.addf %136, %138 : vector<16x128xf32>
    %140 = arith.addf %139, %1 : vector<16x128xf32>
    %cst_137 = arith.constant 0.000000e+00 : f32
    %141 = vector.broadcast %cst_137 : f32 to vector<16x128xf32>
    %142 = arith.maximumf %140, %141 : vector<16x128xf32>
    %c0_138 = arith.constant 0 : index
    %c0_139 = arith.constant 0 : index
    %c0_140 = arith.constant 0 : index
    %143 = vector.load %arg15[%c0_138, %c0_139, %c0_140] : memref<1x16x128xf32, #tpu.memory_space<vmem>>, vector<1x16x128xf32>
    %144 = vector.shape_cast %143 : vector<1x16x128xf32> to vector<16x128xf32>
    %145 = vector.shape_cast %142 : vector<16x128xf32> to vector<1x16x128xf32>
    tpu.vector_store %arg15[%c0_138, %c0_139, %c0_140], %145 {strides = array<i32>} : memref<1x16x128xf32, #tpu.memory_space<vmem>>, vector<1x16x128xf32>,
    return
  }
  func.func @transform_0(%arg0: i32) -> (i32, i32, i32) {
    %c0_i32 = arith.constant 0 : i32
    %c0_i32_0 = arith.constant 0 : i32
    %c0_i32_1 = arith.constant 0 : i32
    return %arg0, %c0_i32, %c0_i32_0 : i32, i32, i32
  }
  func.func @transform_1(%arg0: i32) -> (i32, i32, i32) {
    %c0_i32 = arith.constant 0 : i32
    %c0_i32_0 = arith.constant 0 : i32
    %c0_i32_1 = arith.constant 0 : i32
    %c0_i32_2 = arith.constant 0 : i32
    return %c0_i32, %c0_i32_0, %c0_i32_1 : i32, i32, i32
  }
  func.func @transform_2(%arg0: i32) -> (i32, i32, i32) {
    %c0_i32 = arith.constant 0 : i32
    %c0_i32_0 = arith.constant 0 : i32
    %c0_i32_1 = arith.constant 0 : i32
    %c0_i32_2 = arith.constant 0 : i32
    return %c0_i32, %c0_i32_0, %c0_i32_1 : i32, i32, i32
  }
  func.func @transform_3(%arg0: i32) -> (i32, i32, i32) {
    %c0_i32 = arith.constant 0 : i32
    %c0_i32_0 = arith.constant 0 : i32
    %c0_i32_1 = arith.constant 0 : i32
    %c0_i32_2 = arith.constant 0 : i32
    return %c0_i32, %c0_i32_0, %c0_i32_1 : i32, i32, i32
  }
  func.func @transform_4(%arg0: i32) -> (i32, i32, i32) {
    %c0_i32 = arith.constant 0 : i32
    %c0_i32_0 = arith.constant 0 : i32
    %c0_i32_1 = arith.constant 0 : i32
    %c0_i32_2 = arith.constant 0 : i32
    return %c0_i32, %c0_i32_0, %c0_i32_1 : i32, i32, i32
  }
  func.func @transform_5(%arg0: i32) -> (i32, i32, i32) {
    %c0_i32 = arith.constant 0 : i32
    %c0_i32_0 = arith.constant 0 : i32
    %c0_i32_1 = arith.constant 0 : i32
    %c0_i32_2 = arith.constant 0 : i32
    return %c0_i32, %c0_i32_0, %c0_i32_1 : i32, i32, i32
  }
  func.func @transform_6(%arg0: i32) -> (i32, i32) {
    %c0_i32 = arith.constant 0 : i32
    %c0_i32_0 = arith.constant 0 : i32
    %c0_i32_1 = arith.constant 0 : i32
    return %c0_i32, %c0_i32_0 : i32, i32
  }
  func.func @transform_7(%arg0: i32) -> (i32, i32) {
    %c0_i32 = arith.constant 0 : i32
    %c0_i32_0 = arith.constant 0 : i32
    %c0_i32_1 = arith.constant 0 : i32
    return %c0_i32, %c0_i32_0 : i32, i32
  }
  func.func @transform_8(%arg0: i32) -> (i32, i32) {
    %c0_i32 = arith.constant 0 : i32
    %c0_i32_0 = arith.constant 0 : i32
    %c0_i32_1 = arith.constant 0 : i32
    return %c0_i32, %c0_i32_0 : i32, i32
  }
  func.func @transform_9(%arg0: i32) -> (i32, i32) {
    %c0_i32 = arith.constant 0 : i32
    %c0_i32_0 = arith.constant 0 : i32
    %c0_i32_1 = arith.constant 0 : i32
    return %c0_i32, %c0_i32_0 : i32, i32
  }
  func.func @transform_10(%arg0: i32) -> (i32, i32, i32) {
    %c0_i32 = arith.constant 0 : i32
    %c0_i32_0 = arith.constant 0 : i32
    %c0_i32_1 = arith.constant 0 : i32
    %c0_i32_2 = arith.constant 0 : i32
    return %c0_i32, %c0_i32_0, %c0_i32_1 : i32, i32, i32
  }
  func.func @transform_11(%arg0: i32) -> (i32, i32, i32) {
    %c0_i32 = arith.constant 0 : i32
    %c0_i32_0 = arith.constant 0 : i32
    %c0_i32_1 = arith.constant 0 : i32
    %c0_i32_2 = arith.constant 0 : i32
    return %c0_i32, %c0_i32_0, %c0_i32_1 : i32, i32, i32
  }
  func.func @transform_12(%arg0: i32) -> (i32, i32) {
    %c0_i32 = arith.constant 0 : i32
    %c0_i32_0 = arith.constant 0 : i32
    %c0_i32_1 = arith.constant 0 : i32
    return %c0_i32, %c0_i32_0 : i32, i32
  }
  func.func @transform_13(%arg0: i32) -> (i32, i32) {
    %c0_i32 = arith.constant 0 : i32
    %c0_i32_0 = arith.constant 0 : i32
    %c0_i32_1 = arith.constant 0 : i32
    return %c0_i32, %c0_i32_0 : i32, i32
  }
  func.func @transform_14(%arg0: i32) -> (i32, i32, i32) {
    %c0_i32 = arith.constant 0 : i32
    %c0_i32_0 = arith.constant 0 : i32
    %c0_i32_1 = arith.constant 0 : i32
    return %arg0, %c0_i32, %c0_i32_0 : i32, i32, i32
  }
}

</mosaic_0001>

<llo_original>
// kernel: stgc_block_forward.1
$region0: #{stgc_block_forward.1}
  #allocation0 [shape = 'u32[]', space=smem, size = 0x4, offset = 0x4, fixed_abs, tag = 'smem constant byte address 0x4 - core index']
  #allocation1 [shape = 'u32[144,128]{1,0:T(1,128)}', space=vmem, size = 0x12000, scoped, tag = 'internal scratch']
  %s0 = inlined_call_operand.vmem [shape: f32[2,16,128], index: 0, kind: input, shape index: {}]
  %s1 = inlined_call_operand.vmem [shape: f32[2,4,16], index: 1, kind: input, shape index: {}]
  %s2 = inlined_call_operand.vmem [shape: f32[2,4,1], index: 2, kind: input, shape index: {}]
  %s3 = inlined_call_operand.vmem [shape: f32[6,128,128], index: 3, kind: input, shape index: {}]
  %s4 = inlined_call_operand.vmem [shape: f32[6,16,4], index: 4, kind: input, shape index: {}]
  %s5 = inlined_call_operand.vmem [shape: f32[2,16,4], index: 5, kind: input, shape index: {}]
  %s6 = inlined_call_operand.vmem [shape: f32[16,1], index: 6, kind: input, shape index: {}]
  %s7 = inlined_call_operand.vmem [shape: f32[12,16], index: 7, kind: input, shape index: {}]
  %s8 = inlined_call_operand.vmem [shape: f32[12,1], index: 8, kind: input, shape index: {}]
  %s9 = inlined_call_operand.vmem [shape: f32[16,16], index: 9, kind: input, shape index: {}]
  %s10 = inlined_call_operand.vmem [shape: f32[7,16,12], index: 10, kind: input, shape index: {}]
  %s11 = inlined_call_operand.vmem [shape: f32[6,128,128], index: 11, kind: input, shape index: {}]
  %s12 = inlined_call_operand.vmem [shape: f32[16,12], index: 12, kind: input, shape index: {}]
  %s13 = inlined_call_operand.vmem [shape: f32[16,1], index: 13, kind: input, shape index: {}]
  %s14 = inlined_call_operand.vmem [shape: f32[2,16,128], index: 14, kind: output, shape index: {}]
  %s15 = sld [smem:[#allocation0]]
  $region89: #{stgc_block_forward.1} parent=0
    _
  %s17 = ssub.s32 1, %s15
  %s18 = scalar_select 0, %s17, %s15
  loop: start=0, step=1, limit=4
  $region2: #{stgc_block_forward.1} parent=0 // loop_pre_header
    _
  $region3: #{stgc_block_forward.1} parent=0 // loop_header
    %s20 = sphi 0, %s24
    %p21 = scmp.ge.s32.totalorder %s20, 4
    %s30 = sphi 0, %s32
    %s33 = sphi 0, %s30
    %s34 = sphi 0, %s33
    %s50 = sphi 0, %s34
    %s54 = sphi 0, %s54
    %s56 = sphi 0, %s54
    %s57 = sphi 0, %s56
    %s71 = sphi 0, %s57
    %s75 = sphi 0, %s75
    %s77 = sphi 0, %s75
    %s78 = sphi 0, %s77
    %s92 = sphi 0, %s78
    %s96 = sphi 0, %s96
    %s98 = sphi 0, %s96
    %s99 = sphi 0, %s98
    %s113 = sphi 0, %s99
    %s117 = sphi 0, %s117
    %s119 = sphi 0, %s117
    %s120 = sphi 0, %s119
    %s134 = sphi 0, %s120
    %s138 = sphi 0, %s138
    %s140 = sphi 0, %s138
    %s141 = sphi 0, %s140
    %s155 = sphi 0, %s141
    %s159 = sphi 0, %s159
    %s161 = sphi 0, %s159
    %s162 = sphi 0, %s161
    %s176 = sphi 0, %s162
    %s180 = sphi 0, %s180
    %s182 = sphi 0, %s180
    %s183 = sphi 0, %s182
    %s197 = sphi 0, %s183
    %s201 = sphi 0, %s201
    %s203 = sphi 0, %s201
    %s204 = sphi 0, %s203
    %s218 = sphi 0, %s204
    %s222 = sphi 0, %s222
    %s224 = sphi 0, %s222
    %s225 = sphi 0, %s224
    %s239 = sphi 0, %s225
    %s243 = sphi 0, %s243
    %s245 = sphi 0, %s243
    %s246 = sphi 0, %s245
    %s260 = sphi 0, %s246
    %s264 = sphi 0, %s264
    %s266 = sphi 0, %s264
    %s267 = sphi 0, %s266
    %s281 = sphi 0, %s267
    %s285 = sphi 0, %s285
    %s287 = sphi 0, %s285
    %s288 = sphi 0, %s287
    %s302 = sphi 0, %s288
    %s306 = sphi 0, %s306
    %s308 = sphi 0, %s306
    %s309 = sphi 0, %s308
    %s323 = sphi 0, %s309
    %s329 = sphi 0, %s331
    %s332 = sphi 0, %s329
    %s333 = sphi 0, %s332
    %s349 = sphi 0, %s333
  $region4: #{stgc_block_forward.1} parent=0 // loop_header_branch
    %23 = sbr.rel (%p21) target = $region8
  $region5: #{stgc_block_forward.1} parent=0 // loop_body
    %s25 = ssub.s32 %s20, 1
    %s26 = ssub.s32 %s20, 2
    %s27 = sadd.s32 %s20, 1
    %s28 = ssub.s32 %s20, %s27
    %p29 = scmp.eq.s32.totalorder %s28, 0
    %s31 = sadd.s32 %s30, 1
    %s32 = scalar_select %p29, %s30, %s31
    %p35 = pneg %p29
    %p36 = scmp.eq.s32.totalorder %s20, 1
    %p37 = por %p35, %p36
    %p38 = scmp.ne.s32.totalorder %s30, %s33
    %p39 = scmp.eq.s32.totalorder %s20, 0
    %p40 = por %p38, %p39
    %p41 = scmp.ne.s32.totalorder %s30, %s33
    %p42 = scmp.eq.s32.totalorder %s25, 1
    %p43 = por %p41, %p42
    %p44 = scmp.ne.s32.totalorder %s33, %s34
    %p45 = scmp.eq.s32.totalorder %s25, 0
    %p46 = por %p44, %p45
    %p47 = scmp.ne.s32.totalorder %s33, %s34
    %p48 = scmp.eq.s32.totalorder %s26, 1
    %p49 = por %p47, %p48
    %p51 = scmp.ne.s32.totalorder %s34, %s50
    %p52 = scmp.eq.s32.totalorder %s26, 0
    %p53 = por %p51, %p52
    %s55 = sadd.s32 %s54, 1
    %p58 = scmp.eq.s32.totalorder %s20, 1
    %p59 = scmp.ne.s32.totalorder %s54, %s56
    %p60 = scmp.eq.s32.totalorder %s20, 0
    %p61 = por %p59, %p60
    %p62 = scmp.ne.s32.totalorder %s54, %s56
    %p63 = scmp.eq.s32.totalorder %s25, 1
    %p64 = por %p62, %p63
    %p65 = scmp.ne.s32.totalorder %s56, %s57
    %p66 = scmp.eq.s32.totalorder %s25, 0
    %p67 = por %p65, %p66
    %p68 = scmp.ne.s32.totalorder %s56, %s57
    %p69 = scmp.eq.s32.totalorder %s26, 1
    %p70 = por %p68, %p69
    %p72 = scmp.ne.s32.totalorder %s57, %s71
    %p73 = scmp.eq.s32.totalorder %s26, 0
    %p74 = por %p72, %p73
    %s76 = sadd.s32 %s75, 1
    %p79 = scmp.eq.s32.totalorder %s20, 1
    %p80 = scmp.ne.s32.totalorder %s75, %s77
    %p81 = scmp.eq.s32.totalorder %s20, 0
    %p82 = por %p80, %p81
    %p83 = scmp.ne.s32.totalorder %s75, %s77
    %p84 = scmp.eq.s32.totalorder %s25, 1
    %p85 = por %p83, %p84
    %p86 = scmp.ne.s32.totalorder %s77, %s78
    %p87 = scmp.eq.s32.totalorder %s25, 0
    %p88 = por %p86, %p87
    %p89 = scmp.ne.s32.totalorder %s77, %s78
    %p90 = scmp.eq.s32.totalorder %s26, 1
    %p91 = por %p89, %p90
    %p93 = scmp.ne.s32.totalorder %s78, %s92
    %p94 = scmp.eq.s32.totalorder %s26, 0
    %p95 = por %p93, %p94
    %s97 = sadd.s32 %s96, 1
    %p100 = scmp.eq.s32.totalorder %s20, 1
    %p101 = scmp.ne.s32.totalorder %s96, %s98
    %p102 = scmp.eq.s32.totalorder %s20, 0
    %p103 = por %p101, %p102
    %p104 = scmp.ne.s32.totalorder %s96, %s98
    %p105 = scmp.eq.s32.totalorder %s25, 1
    %p106 = por %p104, %p105
    %p107 = scmp.ne.s32.totalorder %s98, %s99
    %p108 = scmp.eq.s32.totalorder %s25, 0
    %p109 = por %p107, %p108
    %p110 = scmp.ne.s32.totalorder %s98, %s99
    %p111 = scmp.eq.s32.totalorder %s26, 1
    %p112 = por %p110, %p111
    %p114 = scmp.ne.s32.totalorder %s99, %s113
    %p115 = scmp.eq.s32.totalorder %s26, 0
    %p116 = por %p114, %p115
    %s118 = sadd.s32 %s117, 1
    %p121 = scmp.eq.s32.totalorder %s20, 1
    %p122 = scmp.ne.s32.totalorder %s117, %s119
    %p123 = scmp.eq.s32.totalorder %s20, 0
    %p124 = por %p122, %p123
    %p125 = scmp.ne.s32.totalorder %s117, %s119
    %p126 = scmp.eq.s32.totalorder %s25, 1
    %p127 = por %p125, %p126
    %p128 = scmp.ne.s32.totalorder %s119, %s120
    %p129 = scmp.eq.s32.totalorder %s25, 0
    %p130 = por %p128, %p129
    %p131 = scmp.ne.s32.totalorder %s119, %s120
    %p132 = scmp.eq.s32.totalorder %s26, 1
    %p133 = por %p131, %p132
    %p135 = scmp.ne.s32.totalorder %s120, %s134
    %p136 = scmp.eq.s32.totalorder %s26, 0
    %p137 = por %p135, %p136
    %s139 = sadd.s32 %s138, 1
    %p142 = scmp.eq.s32.totalorder %s20, 1
    %p143 = scmp.ne.s32.totalorder %s138, %s140
    %p144 = scmp.eq.s32.totalorder %s20, 0
    %p145 = por %p143, %p144
    %p146 = scmp.ne.s32.totalorder %s138, %s140
    %p147 = scmp.eq.s32.totalorder %s25, 1
    %p148 = por %p146, %p147
    %p149 = scmp.ne.s32.totalorder %s140, %s141
    %p150 = scmp.eq.s32.totalorder %s25, 0
    %p151 = por %p149, %p150
    %p152 = scmp.ne.s32.totalorder %s140, %s141
    %p153 = scmp.eq.s32.totalorder %s26, 1
    %p154 = por %p152, %p153
    %p156 = scmp.ne.s32.totalorder %s141, %s155
    %p157 = scmp.eq.s32.totalorder %s26, 0
    %p158 = por %p156, %p157
    %s160 = sadd.s32 %s159, 1
    %p163 = scmp.eq.s32.totalorder %s20, 1
    %p164 = scmp.ne.s32.totalorder %s159, %s161
    %p165 = scmp.eq.s32.totalorder %s20, 0
    %p166 = por %p164, %p165
    %p167 = scmp.ne.s32.totalorder %s159, %s161
    %p168 = scmp.eq.s32.totalorder %s25, 1
    %p169 = por %p167, %p168
    %p170 = scmp.ne.s32.totalorder %s161, %s162
    %p171 = scmp.eq.s32.totalorder %s25, 0
    %p172 = por %p170, %p171
    %p173 = scmp.ne.s32.totalorder %s161, %s162
    %p174 = scmp.eq.s32.totalorder %s26, 1
    %p175 = por %p173, %p174
    %p177 = scmp.ne.s32.totalorder %s162, %s176
    %p178 = scmp.eq.s32.totalorder %s26, 0
    %p179 = por %p177, %p178
    %s181 = sadd.s32 %s180, 1
    %p184 = scmp.eq.s32.totalorder %s20, 1
    %p185 = scmp.ne.s32.totalorder %s180, %s182
    %p186 = scmp.eq.s32.totalorder %s20, 0
    %p187 = por %p185, %p186
    %p188 = scmp.ne.s32.totalorder %s180, %s182
    %p189 = scmp.eq.s32.totalorder %s25, 1
    %p190 = por %p188, %p189
    %p191 = scmp.ne.s32.totalorder %s182, %s183
    %p192 = scmp.eq.s32.totalorder %s25, 0
    %p193 = por %p191, %p192
    %p194 = scmp.ne.s32.totalorder %s182, %s183
    %p195 = scmp.eq.s32.totalorder %s26, 1
    %p196 = por %p194, %p195
    %p198 = scmp.ne.s32.totalorder %s183, %s197
    %p199 = scmp.eq.s32.totalorder %s26, 0
    %p200 = por %p198, %p199
    %s202 = sadd.s32 %s201, 1
    %p205 = scmp.eq.s32.totalorder %s20, 1
    %p206 = scmp.ne.s32.totalorder %s201, %s203
    %p207 = scmp.eq.s32.totalorder %s20, 0
    %p208 = por %p206, %p207
    %p209 = scmp.ne.s32.totalorder %s201, %s203
    %p210 = scmp.eq.s32.totalorder %s25, 1
    %p211 = por %p209, %p210
    %p212 = scmp.ne.s32.totalorder %s203, %s204
    %p213 = scmp.eq.s32.totalorder %s25, 0
    %p214 = por %p212, %p213
    %p215 = scmp.ne.s32.totalorder %s203, %s204
    %p216 = scmp.eq.s32.totalorder %s26, 1
    %p217 = por %p215, %p216
    %p219 = scmp.ne.s32.totalorder %s204, %s218
    %p220 = scmp.eq.s32.totalorder %s26, 0
    %p221 = por %p219, %p220
    %s223 = sadd.s32 %s222, 1
    %p226 = scmp.eq.s32.totalorder %s20, 1
    %p227 = scmp.ne.s32.totalorder %s222, %s224
    %p228 = scmp.eq.s32.totalorder %s20, 0
    %p229 = por %p227, %p228
    %p230 = scmp.ne.s32.totalorder %s222, %s224
    %p231 = scmp.eq.s32.totalorder %s25, 1
    %p232 = por %p230, %p231
    %p233 = scmp.ne.s32.totalorder %s224, %s225
    %p234 = scmp.eq.s32.totalorder %s25, 0
    %p235 = por %p233, %p234
    %p236 = scmp.ne.s32.totalorder %s224, %s225
    %p237 = scmp.eq.s32.totalorder %s26, 1
    %p238 = por %p236, %p237
    %p240 = scmp.ne.s32.totalorder %s225, %s239
    %p241 = scmp.eq.s32.totalorder %s26, 0
    %p242 = por %p240, %p241
    %s244 = sadd.s32 %s243, 1
    %p247 = scmp.eq.s32.totalorder %s20, 1
    %p248 = scmp.ne.s32.totalorder %s243, %s245
    %p249 = scmp.eq.s32.totalorder %s20, 0
    %p250 = por %p248, %p249
    %p251 = scmp.ne.s32.totalorder %s243, %s245
    %p252 = scmp.eq.s32.totalorder %s25, 1
    %p253 = por %p251, %p252
    %p254 = scmp.ne.s32.totalorder %s245, %s246
    %p255 = scmp.eq.s32.totalorder %s25, 0
    %p256 = por %p254, %p255
    %p257 = scmp.ne.s32.totalorder %s245, %s246
    %p258 = scmp.eq.s32.totalorder %s26, 1
    %p259 = por %p257, %p258
    %p261 = scmp.ne.s32.totalorder %s246, %s260
    %p262 = scmp.eq.s32.totalorder %s26, 0
    %p263 = por %p261, %p262
    %s265 = sadd.s32 %s264, 1
    %p268 = scmp.eq.s32.totalorder %s20, 1
    %p269 = scmp.ne.s32.totalorder %s264, %s266
    %p270 = scmp.eq.s32.totalorder %s20, 0
    %p271 = por %p269, %p270
    %p272 = scmp.ne.s32.totalorder %s264, %s266
    %p273 = scmp.eq.s32.totalorder %s25, 1
    %p274 = por %p272, %p273
    %p275 = scmp.ne.s32.totalorder %s266, %s267
    %p276 = scmp.eq.s32.totalorder %s25, 0
    %p277 = por %p275, %p276
    %p278 = scmp.ne.s32.totalorder %s266, %s267
    %p279 = scmp.eq.s32.totalorder %s26, 1
    %p280 = por %p278, %p279
    %p282 = scmp.ne.s32.totalorder %s267, %s281
    %p283 = scmp.eq.s32.totalorder %s26, 0
    %p284 = por %p282, %p283
    %s286 = sadd.s32 %s285, 1
    %p289 = scmp.eq.s32.totalorder %s20, 1
    %p290 = scmp.ne.s32.totalorder %s285, %s287
    %p291 = scmp.eq.s32.totalorder %s20, 0
    %p292 = por %p290, %p291
    %p293 = scmp.ne.s32.totalorder %s285, %s287
    %p294 = scmp.eq.s32.totalorder %s25, 1
    %p295 = por %p293, %p294
    %p296 = scmp.ne.s32.totalorder %s287, %s288
    %p297 = scmp.eq.s32.totalorder %s25, 0
    %p298 = por %p296, %p297
    %p299 = scmp.ne.s32.totalorder %s287, %s288
    %p300 = scmp.eq.s32.totalorder %s26, 1
    %p301 = por %p299, %p300
    %p303 = scmp.ne.s32.totalorder %s288, %s302
    %p304 = scmp.eq.s32.totalorder %s26, 0
    %p305 = por %p303, %p304
    %s307 = sadd.s32 %s306, 1
    %p310 = scmp.eq.s32.totalorder %s20, 1
    %p311 = scmp.ne.s32.totalorder %s306, %s308
    %p312 = scmp.eq.s32.totalorder %s20, 0
    %p313 = por %p311, %p312
    %p314 = scmp.ne.s32.totalorder %s306, %s308
    %p315 = scmp.eq.s32.totalorder %s25, 1
    %p316 = por %p314, %p315
    %p317 = scmp.ne.s32.totalorder %s308, %s309
    %p318 = scmp.eq.s32.totalorder %s25, 0
    %p319 = por %p317, %p318
    %p320 = scmp.ne.s32.totalorder %s308, %s309
    %p321 = scmp.eq.s32.totalorder %s26, 1
    %p322 = por %p320, %p321
    %p324 = scmp.ne.s32.totalorder %s309, %s323
    %p325 = scmp.eq.s32.totalorder %s26, 0
    %p326 = por %p324, %p325
    %s327 = ssub.s32 %s20, %s27
    %p328 = scmp.eq.s32.totalorder %s327, 0
    %s330 = sadd.s32 %s329, 1
    %s331 = scalar_select %p328, %s329, %s330
    %p334 = pneg %p328
    %p335 = scmp.eq.s32.totalorder %s20, 1
    %p336 = por %p334, %p335
    %p337 = scmp.ne.s32.totalorder %s329, %s332
    %p338 = scmp.eq.s32.totalorder %s20, 0
    %p339 = por %p337, %p338
    %p340 = scmp.ne.s32.totalorder %s329, %s332
    %p341 = scmp.eq.s32.totalorder %s25, 1
    %p342 = por %p340, %p341
    %p343 = scmp.ne.s32.totalorder %s332, %s333
    %p344 = scmp.eq.s32.totalorder %s25, 0
    %p345 = por %p343, %p344
    %p346 = scmp.ne.s32.totalorder %s332, %s333
    %p347 = scmp.eq.s32.totalorder %s26, 1
    %p348 = por %p346, %p347
    %p350 = scmp.ne.s32.totalorder %s333, %s349
    %p351 = scmp.eq.s32.totalorder %s26, 0
    %p352 = por %p350, %p351
    %p353 = scmp.le.s32.totalorder 1, %s20
    %p354 = scmp.lt.s32.totalorder %s20, 3
    %p355 = pnand %p353, %p354
    %p356 = pneg %p355
    // Predicated region
    $region9: #{stgc_block_forward.1} parent=5 // pred_check
      _
    $region10: #{stgc_block_forward.1} parent=5 // pred_check_branch
      %358 = sbr.rel (%p355) target = $region12
    $region11: #{stgc_block_forward.1} parent=5 // pred_region
      %s359 = ssub.s32 %s20, 1
      // Predicated region
      $region13: #{stgc_block_forward.1} parent=11 // pred_check
        %p360 = pneg %p67
      $region14: #{stgc_block_forward.1} parent=11 // pred_check_branch
        %362 = sbr.rel (%p360) target = $region16
      $region15: #{stgc_block_forward.1} parent=11 // pred_region
        _
      $region16: #{stgc_block_forward.1} parent=11 // pred_fallthru
        _
      // Predicated region
      $region17: #{stgc_block_forward.1} parent=11 // pred_check
        %p363 = pneg %p88
      $region18: #{stgc_block_forward.1} parent=11 // pred_check_branch
        %365 = sbr.rel (%p363) target = $region20
      $region19: #{stgc_block_forward.1} parent=11 // pred_region
        _
      $region20: #{stgc_block_forward.1} parent=11 // pred_fallthru
        _
      // Predicated region
      $region21: #{stgc_block_forward.1} parent=11 // pred_check
        %p366 = pneg %p109
      $region22: #{stgc_block_forward.1} parent=11 // pred_check_branch
        %368 = sbr.rel (%p366) target = $region24
      $region23: #{stgc_block_forward.1} parent=11 // pred_region
        _
      $region24: #{stgc_block_forward.1} parent=11 // pred_fallthru
        _
      // Predicated region
      $region25: #{stgc_block_forward.1} parent=11 // pred_check
        %p369 = pneg %p130
      $region26: #{stgc_block_forward.1} parent=11 // pred_check_branch
        %371 = sbr.rel (%p369) target = $region28
      $region27: #{stgc_block_forward.1} parent=11 // pred_region
        _
      $region28: #{stgc_block_forward.1} parent=11 // pred_fallthru
        _
      // Predicated region
      $region29: #{stgc_block_forward.1} parent=11 // pred_check
        %p372 = pneg %p151
      $region30: #{stgc_block_forward.1} parent=11 // pred_check_branch
        %374 = sbr.rel (%p372) target = $region32
      $region31: #{stgc_block_forward.1} parent=11 // pred_region
        _
      $region32: #{stgc_block_forward.1} parent=11 // pred_fallthru
        _
      // Predicated region
      $region33: #{stgc_block_forward.1} parent=11 // pred_check
        %p375 = pneg %p172
      $region34: #{stgc_block_forward.1} parent=11 // pred_check_branch
        %377 = sbr.rel (%p375) target = $region36
      $region35: #{stgc_block_forward.1} parent=11 // pred_region
        _
      $region36: #{stgc_block_forward.1} parent=11 // pred_fallthru
        _
      // Predicated region
      $region37: #{stgc_block_forward.1} parent=11 // pred_check
        %p378 = pneg %p193
      $region38: #{stgc_block_forward.1} parent=11 // pred_check_branch
        %380 = sbr.rel (%p378) target = $region40
      $region39: #{stgc_block_forward.1} parent=11 // pred_region
        _
      $region40: #{stgc_block_forward.1} parent=11 // pred_fallthru
        _
      // Predicated region
      $region41: #{stgc_block_forward.1} parent=11 // pred_check
        %p381 = pneg %p214
      $region42: #{stgc_block_forward.1} parent=11 // pred_check_branch
        %383 = sbr.rel (%p381) target = $region44
      $region43: #{stgc_block_forward.1} parent=11 // pred_region
        _
      $region44: #{stgc_block_forward.1} parent=11 // pred_fallthru
        _
      // Predicated region
      $region45: #{stgc_block_forward.1} parent=11 // pred_check
        %p384 = pneg %p235
      $region46: #{stgc_block_forward.1} parent=11 // pred_check_branch
        %386 = sbr.rel (%p384) target = $region48
      $region47: #{stgc_block_forward.1} parent=11 // pred_region
        _
      $region48: #{stgc_block_forward.1} parent=11 // pred_fallthru
        _
      // Predicated region
      $region49: #{stgc_block_forward.1} parent=11 // pred_check
        %p387 = pneg %p256
      $region50: #{stgc_block_forward.1} parent=11 // pred_check_branch
        %389 = sbr.rel (%p387) target = $region52
      $region51: #{stgc_block_forward.1} parent=11 // pred_region
        _
      $region52: #{stgc_block_forward.1} parent=11 // pred_fallthru
        _
      // Predicated region
      $region53: #{stgc_block_forward.1} parent=11 // pred_check
        %p390 = pneg %p277
      $region54: #{stgc_block_forward.1} parent=11 // pred_check_branch
        %392 = sbr.rel (%p390) target = $region56
      $region55: #{stgc_block_forward.1} parent=11 // pred_region
        _
      $region56: #{stgc_block_forward.1} parent=11 // pred_fallthru
        _
      // Predicated region
      $region57: #{stgc_block_forward.1} parent=11 // pred_check
        %p393 = pneg %p298
      $region58: #{stgc_block_forward.1} parent=11 // pred_check_branch
        %395 = sbr.rel (%p393) target = $region60
      $region59: #{stgc_block_forward.1} parent=11 // pred_region
        _
      $region60: #{stgc_block_forward.1} parent=11 // pred_fallthru
        _
      // Predicated region
      $region61: #{stgc_block_forward.1} parent=11 // pred_check
        %p396 = pneg %p319
      $region62: #{stgc_block_forward.1} parent=11 // pred_check_branch
        %398 = sbr.rel (%p396) target = $region64
      $region63: #{stgc_block_forward.1} parent=11 // pred_region
        _
      $region64: #{stgc_block_forward.1} parent=11 // pred_fallthru
        _
    $region12: #{stgc_block_forward.1} parent=5 // pred_fallthru
      _
    %p399 = scmp.lt.s32.totalorder %s20, 2
    // Predicated region
    $region65: #{stgc_block_forward.1} parent=5 // pred_check
      %p400 = pneg %p399
    $region66: #{stgc_block_forward.1} parent=5 // pred_check_branch
      %402 = sbr.rel (%p400) target = $region68
    $region67: #{stgc_block_forward.1} parent=5 // pred_region
      // Predicated region
      $region69: #{stgc_block_forward.1} parent=67 // pred_check
        %p403 = pneg %p40
      $region70: #{stgc_block_forward.1} parent=67 // pred_check_branch
        %405 = sbr.rel (%p403) target = $region72
      $region71: #{stgc_block_forward.1} parent=67 // pred_region
        %p406 = scmp.lt.s32.totalorder %s20, 1
        %s407 = scalar_select %p406, %s20, 1
        %s408 = smul.addr %s407, 2
        %s409 = smul.addr %s408, 8
        %s410 = scalar_lea.vmem %s0, %s409
      $region72: #{stgc_block_forward.1} parent=67 // pred_fallthru
        _
    $region68: #{stgc_block_forward.1} parent=5 // pred_fallthru
      _
    %p411 = scmp.le.s32.totalorder 1, %s20
    %p412 = scmp.lt.s32.totalorder %s20, 3
    %p413 = pnand %p411, %p412
    %p414 = pneg %p413
    // Predicated region
    $region73: #{stgc_block_forward.1} parent=5 // pred_check
      _
    $region74: #{stgc_block_forward.1} parent=5 // pred_check_branch
      %416 = sbr.rel (%p413) target = $region76
    $region75: #{stgc_block_forward.1} parent=5 // pred_region
      %s417 = ssub.s32 %s20, 1
      %p418 = scmp.lt.s32.totalorder %s25, 1
      %s419 = scalar_select %p418, %s25, 1
      %s420 = smul.addr %s419, 2
      %s421 = smul.addr %s420, 8
      %s422 = scalar_lea.vmem %s0, %s421
      %p423 = pneg %p46
      %p424 = pneg %p43
      %p425 = pneg %p67
      %p426 = pneg %p64
      %p427 = pneg %p88
      %p428 = pneg %p85
      %p429 = pneg %p109
      %p430 = pneg %p106
      %p431 = pneg %p130
      %p432 = pneg %p127
      %p433 = pneg %p151
      %p434 = pneg %p148
      %p435 = pneg %p172
      %p436 = pneg %p169
      %p437 = pneg %p193
      %p438 = pneg %p190
      %p439 = pneg %p214
      %p440 = pneg %p211
      %p441 = pneg %p235
      %p442 = pneg %p232
      %p443 = pneg %p256
      %p444 = pneg %p253
      %p445 = pneg %p277
      %p446 = pneg %p274
      %p447 = pneg %p298
      %p448 = pneg %p295
      %p449 = pneg %p319
      %p450 = pneg %p316
      %p451 = pneg %p345
      %p452 = pneg %p342
      %p453 = scmp.lt.s32.totalorder %s25, 1
      %s454 = scalar_select %p453, %s25, 1
      %s455 = smul.addr %s454, 2
      %s456 = smul.addr %s455, 8
      %s457 = scalar_lea.vmem %s14, %s456
      %p458 = scmp.lt.s32.totalorder %s25, 1
      %s459 = scalar_select %p458, %s25, 1
      %s460 = smul.addr %s459, 2
      %s461 = smul.addr %s460, 8
      %s462 = scalar_lea.vmem %s0, %s461
      %p463 = scmp.lt.s32.totalorder %s25, 1
      %s464 = scalar_select %p463, %s25, 1
      %s465 = smul.addr %s464, 2
      %s466 = smul.addr %s465, 8
      %s467 = scalar_lea.vmem %s14, %s466
      %v468 = vld [vmem:[%s462] sm:$0xff]
      %v469 = vld [vmem:[%s462 + $0x8] sm:$0xff]
      %v470 = vld [vmem:[%s1] sm:$0xf]
      %v471 = vld [vmem:[%s2] sm:$0xf]
      %473 = vset.pattern.permute.xlu0 0
      %474 = vperm.xlu0 %473, %v471
      %v475 = vpop.permute.xlu0 %474
      %vm477 = vcmask 130048
      %v479 = vsel %vm477, %v470, 0
      %481 = vmatprep.subr.mxu0 0.0
      %482 = vmatpush1.msra.mxu0 0.0
      %483 = vmatprep.subr.mxu0 0.0
      %484 = vmatpush1.msra.mxu0 0.0
      %485 = vmatprep.subr.mxu0 0.0
      %486 = vmatpush1.msra.mxu0 0.0
      %487 = vmatprep.subr.mxu0 0.0
      %488 = vmatpush1.msra.mxu0 0.0
      %489 = vmatprep.subr.mxu0 0.0
      %490 = vmatpush1.msra.mxu0 0.0
      %491 = vmatprep.subr.mxu0 0.0
      %492 = vmatpush1.msra.mxu0 0.0
      %493 = vmatprep.subr.mxu0 0.0
      %494 = vmatpush1.msra.mxu0 0.0
      %495 = vmatprep.subr.mxu0 0.0
      %496 = vmatpush1.msra.mxu0 0.0
      %497 = vmatprep.subr.mxu0 0.0
      %498 = vmatpush1.msra.mxu0 0.0
      %499 = vmatprep.subr.mxu0 0.0
      %500 = vmatpush1.msra.mxu0 0.0
      %501 = vmatprep.subr.mxu0 0.0
      %502 = vmatpush1.msra.mxu0 0.0
      %503 = vmatprep.subr.mxu0 0.0
      %504 = vmatpush1.msra.mxu0 0.0
      %505 = vmatprep.subr.mxu0 0.0
      %506 = vmatpush1.msra.mxu0 0.0
      %507 = vmatprep.subr.mxu0 0.0
      %508 = vmatpush1.msra.mxu0 0.0
      %509 = vmatprep.subr.mxu0 0.0
      %510 = vmatpush1.msra.mxu0 %v469
      %511 = vmatprep.subr.mxu0 0.0
      %512 = vmatpush1.msra.mxu0 %v468
      %513 = vmatprep.subr.mxu0 0.0
      %514 = vmatpush2.msra.mxu0 0.0
      %515 = vmatprep.subr.mxu0 0.0
      %516 = vmatpush2.msra.mxu0 0.0
      %517 = vmatprep.subr.mxu0 0.0
      %518 = vmatpush2.msra.mxu0 0.0
      %519 = vmatprep.subr.mxu0 0.0
      %520 = vmatpush2.msra.mxu0 0.0
      %521 = vmatprep.subr.mxu0 0.0
      %522 = vmatpush2.msra.mxu0 0.0
      %523 = vmatprep.subr.mxu0 0.0
      %524 = vmatpush2.msra.mxu0 0.0
      %525 = vmatprep.subr.mxu0 0.0
      %526 = vmatpush2.msra.mxu0 0.0
      %527 = vmatprep.subr.mxu0 0.0
      %528 = vmatpush2.msra.mxu0 0.0
      %529 = vmatprep.subr.mxu0 0.0
      %530 = vmatpush2.msra.mxu0 0.0
      %531 = vmatprep.subr.mxu0 0.0
      %532 = vmatpush2.msra.mxu0 0.0
      %533 = vmatprep.subr.mxu0 0.0
      %534 = vmatpush2.msra.mxu0 0.0
      %535 = vmatprep.subr.mxu0 0.0
      %536 = vmatpush2.msra.mxu0 0.0
      %537 = vmatprep.subr.mxu0 0.0
      %538 = vmatpush2.msra.mxu0 0.0
      %539 = vmatprep.subr.mxu0 0.0
      %540 = vmatpush2.msra.mxu0 0.0
      %541 = vmatprep.subr.mxu0 0.0
      %542 = vmatpush2.msra.mxu0 0.0
      %543 = vmatprep.subr.mxu0 0.0
      %544 = vmatpush2.msra.mxu0 0.0
      %545 = vmatprep.mubr.f32.mxu0 0.0
      %546 = vmatmul.mubr.f32.gmra.mxu0 %v479
      %v547 = vpop.f32.mrf.mxu0
      %v548 = vadd.f32 %v475, %v547
      %v549 = vpop.f32.mrf.mxu0
      %550 = vdwg.mxu0
      %v551 = vmax.f32 %v548, 0.0
      %v552 = vld [vmem:[%s3] sm:$0xff]
      %v553 = vld [vmem:[%s3 + $0x8] sm:$0xff]
      %v554 = vld [vmem:[%s3 + $0x10] sm:$0xff]
      %v555 = vld [vmem:[%s3 + $0x18] sm:$0xff]
      %v556 = vld [vmem:[%s3 + $0x20] sm:$0xff]
      %v557 = vld [vmem:[%s3 + $0x28] sm:$0xff]
      %v558 = vld [vmem:[%s3 + $0x30] sm:$0xff]
      %v559 = vld [vmem:[%s3 + $0x38] sm:$0xff]
      %v560 = vld [vmem:[%s3 + $0x40] sm:$0xff]
      %v561 = vld [vmem:[%s3 + $0x48] sm:$0xff]
      %v562 = vld [vmem:[%s3 + $0x50] sm:$0xff]
      %v563 = vld [vmem:[%s3 + $0x58] sm:$0xff]
      %v564 = vld [vmem:[%s3 + $0x60] sm:$0xff]
      %v565 = vld [vmem:[%s3 + $0x68] sm:$0xff]
      %v566 = vld [vmem:[%s3 + $0x70] sm:$0xff]
      %v567 = vld [vmem:[%s3 + $0x78] sm:$0xff]
      %568 = vmatprep.subr.mxu0 0.0
      %569 = vmatpush1.msra.mxu0 %v567
      %570 = vmatprep.subr.mxu0 0.0
      %571 = vmatpush1.msra.mxu0 %v566
      %572 = vmatprep.subr.mxu0 0.0
      %573 = vmatpush1.msra.mxu0 %v565
      %574 = vmatprep.subr.mxu0 0.0
      %575 = vmatpush1.msra.mxu0 %v564
      %576 = vmatprep.subr.mxu0 0.0
      %577 = vmatpush1.msra.mxu0 %v563
      %578 = vmatprep.subr.mxu0 0.0
      %579 = vmatpush1.msra.mxu0 %v562
      %580 = vmatprep.subr.mxu0 0.0
      %581 = vmatpush1.msra.mxu0 %v561
      %582 = vmatprep.subr.mxu0 0.0
      %583 = vmatpush1.msra.mxu0 %v560
      %584 = vmatprep.subr.mxu0 0.0
      %585 = vmatpush1.msra.mxu0 %v559
      %586 = vmatprep.subr.mxu0 0.0
      %587 = vmatpush1.msra.mxu0 %v558
      %588 = vmatprep.subr.mxu0 0.0
      %589 = vmatpush1.msra.mxu0 %v557
      %590 = vmatprep.subr.mxu0 0.0
      %591 = vmatpush1.msra.mxu0 %v556
      %592 = vmatprep.subr.mxu0 0.0
      %593 = vmatpush1.msra.mxu0 %v555
      %594 = vmatprep.subr.mxu0 0.0
      %595 = vmatpush1.msra.mxu0 %v554
      %596 = vmatprep.subr.mxu0 0.0
      %597 = vmatpush1.msra.mxu0 %v553
      %598 = vmatprep.subr.mxu0 0.0
      %599 = vmatpush1.msra.mxu0 %v552
      %600 = vmatprep.subr.mxu0 0.0
      %601 = vmatpush2.msra.mxu0 0.0
      %602 = vmatprep.subr.mxu0 0.0
      %603 = vmatpush2.msra.mxu0 0.0
      %604 = vmatprep.subr.mxu0 0.0
      %605 = vmatpush2.msra.mxu0 0.0
      %606 = vmatprep.subr.mxu0 0.0
      %607 = vmatpush2.msra.mxu0 0.0
      %608 = vmatprep.subr.mxu0 0.0
      %609 = vmatpush2.msra.mxu0 0.0
      %610 = vmatprep.subr.mxu0 0.0
      %611 = vmatpush2.msra.mxu0 0.0
      %612 = vmatprep.subr.mxu0 0.0
      %613 = vmatpush2.msra.mxu0 0.0
      %614 = vmatprep.subr.mxu0 0.0
      %615 = vmatpush2.msra.mxu0 0.0
      %616 = vmatprep.subr.mxu0 0.0
      %617 = vmatpush2.msra.mxu0 0.0
      %618 = vmatprep.subr.mxu0 0.0
      %619 = vmatpush2.msra.mxu0 0.0
      %620 = vmatprep.subr.mxu0 0.0
      %621 = vmatpush2.msra.mxu0 0.0
      %622 = vmatprep.subr.mxu0 0.0
      %623 = vmatpush2.msra.mxu0 0.0
      %624 = vmatprep.subr.mxu0 0.0
      %625 = vmatpush2.msra.mxu0 0.0
      %626 = vmatprep.subr.mxu0 0.0
      %627 = vmatpush2.msra.mxu0 0.0
      %628 = vmatprep.subr.mxu0 0.0
      %629 = vmatpush2.msra.mxu0 0.0
      %630 = vmatprep.subr.mxu0 0.0
      %631 = vmatpush2.msra.mxu0 0.0
      %632 = vmatprep.mubr.f32.mxu0 0.0
      %633 = vmatmul.mubr.f32.gmra.mxu0 %v551
      %v634 = vpop.f32.mrf.mxu0
      %v635 = vadd.f32 0.0, %v634
      %v636 = vpop.f32.mrf.mxu0
      %637 = vdwg.mxu0
      %v638 = vld [vmem:[%s4] sm:$0xff]
      %v639 = vld [vmem:[%s4 + $0x8] sm:$0xff]
      %s640 = scalar_lea.vmem %s3, 128
      %v641 = vld [vmem:[%s640] sm:$0xff]
      %v642 = vld [vmem:[%s640 + $0x8] sm:$0xff]
      %v643 = vld [vmem:[%s640 + $0x10] sm:$0xff]
      %v644 = vld [vmem:[%s640 + $0x18] sm:$0xff]
      %v645 = vld [vmem:[%s640 + $0x20] sm:$0xff]
      %v646 = vld [vmem:[%s640 + $0x28] sm:$0xff]
      %v647 = vld [vmem:[%s640 + $0x30] sm:$0xff]
      %v648 = vld [vmem:[%s640 + $0x38] sm:$0xff]
      %v649 = vld [vmem:[%s640 + $0x40] sm:$0xff]
      %v650 = vld [vmem:[%s640 + $0x48] sm:$0xff]
      %v651 = vld [vmem:[%s640 + $0x50] sm:$0xff]
      %v652 = vld [vmem:[%s640 + $0x58] sm:$0xff]
      %v653 = vld [vmem:[%s640 + $0x60] sm:$0xff]
      %v654 = vld [vmem:[%s640 + $0x68] sm:$0xff]
      %v655 = vld [vmem:[%s640 + $0x70] sm:$0xff]
      %v656 = vld [vmem:[%s640 + $0x78] sm:$0xff]
      %657 = vmatprep.subr.mxu0 0.0
      %658 = vmatpush1.msra.mxu0 %v656
      %659 = vmatprep.subr.mxu0 0.0
      %660 = vmatpush1.msra.mxu0 %v655
      %661 = vmatprep.subr.mxu0 0.0
      %662 = vmatpush1.msra.mxu0 %v654
      %663 = vmatprep.subr.mxu0 0.0
      %664 = vmatpush1.msra.mxu0 %v653
      %665 = vmatprep.subr.mxu0 0.0
      %666 = vmatpush1.msra.mxu0 %v652
      %667 = vmatprep.subr.mxu0 0.0
      %668 = vmatpush1.msra.mxu0 %v651
      %669 = vmatprep.subr.mxu0 0.0
      %670 = vmatpush1.msra.mxu0 %v650
      %671 = vmatprep.subr.mxu0 0.0
      %672 = vmatpush1.msra.mxu0 %v649
      %673 = vmatprep.subr.mxu0 0.0
      %674 = vmatpush1.msra.mxu0 %v648
      %675 = vmatprep.subr.mxu0 0.0
      %676 = vmatpush1.msra.mxu0 %v647
      %677 = vmatprep.subr.mxu0 0.0
      %678 = vmatpush1.msra.mxu0 %v646
      %679 = vmatprep.subr.mxu0 0.0
      %680 = vmatpush1.msra.mxu0 %v645
      %681 = vmatprep.subr.mxu0 0.0
      %682 = vmatpush1.msra.mxu0 %v644
      %683 = vmatprep.subr.mxu0 0.0
      %684 = vmatpush1.msra.mxu0 %v643
      %685 = vmatprep.subr.mxu0 0.0
      %686 = vmatpush1.msra.mxu0 %v642
      %687 = vmatprep.subr.mxu0 0.0
      %688 = vmatpush1.msra.mxu0 %v641
      %689 = vmatprep.subr.mxu0 0.0
      %690 = vmatpush2.msra.mxu0 0.0
      %691 = vmatprep.subr.mxu0 0.0
      %692 = vmatpush2.msra.mxu0 0.0
      %693 = vmatprep.subr.mxu0 0.0
      %694 = vmatpush2.msra.mxu0 0.0
      %695 = vmatprep.subr.mxu0 0.0
      %696 = vmatpush2.msra.mxu0 0.0
      %697 = vmatprep.subr.mxu0 0.0
      %698 = vmatpush2.msra.mxu0 0.0
      %699 = vmatprep.subr.mxu0 0.0
      %700 = vmatpush2.msra.mxu0 0.0
      %701 = vmatprep.subr.mxu0 0.0
      %702 = vmatpush2.msra.mxu0 0.0
      %703 = vmatprep.subr.mxu0 0.0
      %704 = vmatpush2.msra.mxu0 0.0
      %705 = vmatprep.subr.mxu0 0.0
      %706 = vmatpush2.msra.mxu0 0.0
      %707 = vmatprep.subr.mxu0 0.0
      %708 = vmatpush2.msra.mxu0 0.0
      %709 = vmatprep.subr.mxu0 0.0
      %710 = vmatpush2.msra.mxu0 0.0
      %711 = vmatprep.subr.mxu0 0.0
      %712 = vmatpush2.msra.mxu0 0.0
      %713 = vmatprep.subr.mxu0 0.0
      %714 = vmatpush2.msra.mxu0 0.0
      %715 = vmatprep.subr.mxu0 0.0
      %716 = vmatpush2.msra.mxu0 0.0
      %717 = vmatprep.subr.mxu0 0.0
      %718 = vmatpush2.msra.mxu0 0.0
      %719 = vmatprep.subr.mxu0 0.0
      %720 = vmatpush2.msra.mxu0 0.0
      %721 = vmatprep.mubr.f32.mxu0 0.0
      %722 = vmatmul.mubr.f32.gmra.mxu0 %v551
      %v723 = vpop.f32.mrf.mxu0
      %v724 = vadd.f32 0.0, %v723
      %v725 = vpop.f32.mrf.mxu0
      %726 = vdwg.mxu0
      %s727 = scalar_lea.vmem %s4, 16
      %v728 = vld [vmem:[%s727] sm:$0xff]
      %v729 = vld [vmem:[%s727 + $0x8] sm:$0xff]
      %vm730 = vcmask 31744
      %v732 = vsel %vm730, %v728, 0
      %v735 = vsel %vm730, %v729, 0
      %vm737 = vcmask 1043456
      %v739 = vsel %vm737, %v724, 0
      %741 = vmatprep.subr.mxu0 0.0
      %742 = vmatpush1.msra.mxu0 0.0
      %743 = vmatprep.subr.mxu0 0.0
      %744 = vmatpush1.msra.mxu0 0.0
      %745 = vmatprep.subr.mxu0 0.0
      %746 = vmatpush1.msra.mxu0 0.0
      %747 = vmatprep.subr.mxu0 0.0
      %748 = vmatpush1.msra.mxu0 0.0
      %749 = vmatprep.subr.mxu0 0.0
      %750 = vmatpush1.msra.mxu0 0.0
      %751 = vmatprep.subr.mxu0 0.0
      %752 = vmatpush1.msra.mxu0 0.0
      %753 = vmatprep.subr.mxu0 0.0
      %754 = vmatpush1.msra.mxu0 0.0
      %755 = vmatprep.subr.mxu0 0.0
      %756 = vmatpush1.msra.mxu0 0.0
      %757 = vmatprep.subr.mxu0 0.0
      %758 = vmatpush1.msra.mxu0 0.0
      %759 = vmatprep.subr.mxu0 0.0
      %760 = vmatpush1.msra.mxu0 0.0
      %761 = vmatprep.subr.mxu0 0.0
      %762 = vmatpush1.msra.mxu0 0.0
      %763 = vmatprep.subr.mxu0 0.0
      %764 = vmatpush1.msra.mxu0 0.0
      %765 = vmatprep.subr.mxu0 0.0
      %766 = vmatpush1.msra.mxu0 0.0
      %767 = vmatprep.subr.mxu0 0.0
      %768 = vmatpush1.msra.mxu0 0.0
      %769 = vmatprep.subr.mxu0 0.0
      %770 = vmatpush1.msra.mxu0 0.0
      %771 = vmatprep.subr.mxu0 0.0
      %772 = vmatpush1.msra.mxu0 %v739
      %773 = vmatprep.subr.mxu0 0.0
      %774 = vmatpush2.msra.mxu0 0.0
      %775 = vmatprep.subr.mxu0 0.0
      %776 = vmatpush2.msra.mxu0 0.0
      %777 = vmatprep.subr.mxu0 0.0
      %778 = vmatpush2.msra.mxu0 0.0
      %779 = vmatprep.subr.mxu0 0.0
      %780 = vmatpush2.msra.mxu0 0.0
      %781 = vmatprep.subr.mxu0 0.0
      %782 = vmatpush2.msra.mxu0 0.0
      %783 = vmatprep.subr.mxu0 0.0
      %784 = vmatpush2.msra.mxu0 0.0
      %785 = vmatprep.subr.mxu0 0.0
      %786 = vmatpush2.msra.mxu0 0.0
      %787 = vmatprep.subr.mxu0 0.0
      %788 = vmatpush2.msra.mxu0 0.0
      %789 = vmatprep.subr.mxu0 0.0
      %790 = vmatpush2.msra.mxu0 0.0
      %791 = vmatprep.subr.mxu0 0.0
      %792 = vmatpush2.msra.mxu0 0.0
      %793 = vmatprep.subr.mxu0 0.0
      %794 = vmatpush2.msra.mxu0 0.0
      %795 = vmatprep.subr.mxu0 0.0
      %796 = vmatpush2.msra.mxu0 0.0
      %797 = vmatprep.subr.mxu0 0.0
      %798 = vmatpush2.msra.mxu0 0.0
      %799 = vmatprep.subr.mxu0 0.0
      %800 = vmatpush2.msra.mxu0 0.0
      %801 = vmatprep.subr.mxu0 0.0
      %802 = vmatpush2.msra.mxu0 0.0
      %803 = vmatprep.subr.mxu0 0.0
      %804 = vmatpush2.msra.mxu0 0.0
      %805 = vmatprep.mubr.f32.mxu0 0.0
      %806 = vmatmul.mubr.f32.gmra.mxu0 %v732
      %v807 = vpop.f32.mrf.mxu0
      %v808 = vadd.f32 0.0, %v807
      %v809 = vpop.f32.mrf.mxu0
      %810 = vmatprep.mubr.f32.mxu0 0.0
      %811 = vmatmul.mubr.f32.gmra.mxu0 %v735
      %v812 = vpop.f32.mrf.mxu0
      %v813 = vadd.f32 0.0, %v812
      %v814 = vpop.f32.mrf.mxu0
      %815 = vdwg.mxu0
      %v817 = vsel %vm730, %v638, 0
      %v820 = vsel %vm730, %v639, 0
      %v823 = vsel %vm737, %v635, 0
      %825 = vmatprep.subr.mxu0 0.0
      %826 = vmatpush1.msra.mxu0 0.0
      %827 = vmatprep.subr.mxu0 0.0
      %828 = vmatpush1.msra.mxu0 0.0
      %829 = vmatprep.subr.mxu0 0.0
      %830 = vmatpush1.msra.mxu0 0.0
      %831 = vmatprep.subr.mxu0 0.0
      %832 = vmatpush1.msra.mxu0 0.0
      %833 = vmatprep.subr.mxu0 0.0
      %834 = vmatpush1.msra.mxu0 0.0
      %835 = vmatprep.subr.mxu0 0.0
      %836 = vmatpush1.msra.mxu0 0.0
      %837 = vmatprep.subr.mxu0 0.0
      %838 = vmatpush1.msra.mxu0 0.0
      %839 = vmatprep.subr.mxu0 0.0
      %840 = vmatpush1.msra.mxu0 0.0
      %841 = vmatprep.subr.mxu0 0.0
      %842 = vmatpush1.msra.mxu0 0.0
      %843 = vmatprep.subr.mxu0 0.0
      %844 = vmatpush1.msra.mxu0 0.0
      %845 = vmatprep.subr.mxu0 0.0
      %846 = vmatpush1.msra.mxu0 0.0
      %847 = vmatprep.subr.mxu0 0.0
      %848 = vmatpush1.msra.mxu0 0.0
      %849 = vmatprep.subr.mxu0 0.0
      %850 = vmatpush1.msra.mxu0 0.0
      %851 = vmatprep.subr.mxu0 0.0
      %852 = vmatpush1.msra.mxu0 0.0
      %853 = vmatprep.subr.mxu0 0.0
      %854 = vmatpush1.msra.mxu0 0.0
      %855 = vmatprep.subr.mxu0 0.0
      %856 = vmatpush1.msra.mxu0 %v823
      %857 = vmatprep.subr.mxu0 0.0
      %858 = vmatpush2.msra.mxu0 0.0
      %859 = vmatprep.subr.mxu0 0.0
      %860 = vmatpush2.msra.mxu0 0.0
      %861 = vmatprep.subr.mxu0 0.0
      %862 = vmatpush2.msra.mxu0 0.0
      %863 = vmatprep.subr.mxu0 0.0
      %864 = vmatpush2.msra.mxu0 0.0
      %865 = vmatprep.subr.mxu0 0.0
      %866 = vmatpush2.msra.mxu0 0.0
      %867 = vmatprep.subr.mxu0 0.0
      %868 = vmatpush2.msra.mxu0 0.0
      %869 = vmatprep.subr.mxu0 0.0
      %870 = vmatpush2.msra.mxu0 0.0
      %871 = vmatprep.subr.mxu0 0.0
      %872 = vmatpush2.msra.mxu0 0.0
      %873 = vmatprep.subr.mxu0 0.0
      %874 = vmatpush2.msra.mxu0 0.0
      %875 = vmatprep.subr.mxu0 0.0
      %876 = vmatpush2.msra.mxu0 0.0
      %877 = vmatprep.subr.mxu0 0.0
      %878 = vmatpush2.msra.mxu0 0.0
      %879 = vmatprep.subr.mxu0 0.0
      %880 = vmatpush2.msra.mxu0 0.0
      %881 = vmatprep.subr.mxu0 0.0
      %882 = vmatpush2.msra.mxu0 0.0
      %883 = vmatprep.subr.mxu0 0.0
      %884 = vmatpush2.msra.mxu0 0.0
      %885 = vmatprep.subr.mxu0 0.0
      %886 = vmatpush2.msra.mxu0 0.0
      %887 = vmatprep.subr.mxu0 0.0
      %888 = vmatpush2.msra.mxu0 0.0
      %889 = vmatprep.mubr.f32.mxu0 0.0
      %890 = vmatmul.mubr.f32.gmra.mxu0 %v817
      %v891 = vpop.f32.mrf.mxu0
      %v892 = vadd.f32 %v808, %v891
      %v893 = vpop.f32.mrf.mxu0
      %894 = vmatprep.mubr.f32.mxu0 0.0
      %895 = vmatmul.mubr.f32.gmra.mxu0 %v820
      %v896 = vpop.f32.mrf.mxu0
      %v897 = vadd.f32 %v813, %v896
      %v898 = vpop.f32.mrf.mxu0
      %899 = vdwg.mxu0
      %s900 = scalar_lea.vmem %s3, 256
      %v901 = vld [vmem:[%s900] sm:$0xff]
      %v902 = vld [vmem:[%s900 + $0x8] sm:$0xff]
      %v903 = vld [vmem:[%s900 + $0x10] sm:$0xff]
      %v904 = vld [vmem:[%s900 + $0x18] sm:$0xff]
      %v905 = vld [vmem:[%s900 + $0x20] sm:$0xff]
      %v906 = vld [vmem:[%s900 + $0x28] sm:$0xff]
      %v907 = vld [vmem:[%s900 + $0x30] sm:$0xff]
      %v908 = vld [vmem:[%s900 + $0x38] sm:$0xff]
      %v909 = vld [vmem:[%s900 + $0x40] sm:$0xff]
      %v910 = vld [vmem:[%s900 + $0x48] sm:$0xff]
      %v911 = vld [vmem:[%s900 + $0x50] sm:$0xff]
      %v912 = vld [vmem:[%s900 + $0x58] sm:$0xff]
      %v913 = vld [vmem:[%s900 + $0x60] sm:$0xff]
      %v914 = vld [vmem:[%s900 + $0x68] sm:$0xff]
      %v915 = vld [vmem:[%s900 + $0x70] sm:$0xff]
      %v916 = vld [vmem:[%s900 + $0x78] sm:$0xff]
      %917 = vmatprep.subr.mxu0 0.0
      %918 = vmatpush1.msra.mxu0 %v916
      %919 = vmatprep.subr.mxu0 0.0
      %920 = vmatpush1.msra.mxu0 %v915
      %921 = vmatprep.subr.mxu0 0.0
      %922 = vmatpush1.msra.mxu0 %v914
      %923 = vmatprep.subr.mxu0 0.0
      %924 = vmatpush1.msra.mxu0 %v913
      %925 = vmatprep.subr.mxu0 0.0
      %926 = vmatpush1.msra.mxu0 %v912
      %927 = vmatprep.subr.mxu0 0.0
      %928 = vmatpush1.msra.mxu0 %v911
      %929 = vmatprep.subr.mxu0 0.0
      %930 = vmatpush1.msra.mxu0 %v910
      %931 = vmatprep.subr.mxu0 0.0
      %932 = vmatpush1.msra.mxu0 %v909
      %933 = vmatprep.subr.mxu0 0.0
      %934 = vmatpush1.msra.mxu0 %v908
      %935 = vmatprep.subr.mxu0 0.0
      %936 = vmatpush1.msra.mxu0 %v907
      %937 = vmatprep.subr.mxu0 0.0
      %938 = vmatpush1.msra.mxu0 %v906
      %939 = vmatprep.subr.mxu0 0.0
      %940 = vmatpush1.msra.mxu0 %v905
      %941 = vmatprep.subr.mxu0 0.0
      %942 = vmatpush1.msra.mxu0 %v904
      %943 = vmatprep.subr.mxu0 0.0
      %944 = vmatpush1.msra.mxu0 %v903
      %945 = vmatprep.subr.mxu0 0.0
      %946 = vmatpush1.msra.mxu0 %v902
      %947 = vmatprep.subr.mxu0 0.0
      %948 = vmatpush1.msra.mxu0 %v901
      %949 = vmatprep.subr.mxu0 0.0
      %950 = vmatpush2.msra.mxu0 0.0
      %951 = vmatprep.subr.mxu0 0.0
      %952 = vmatpush2.msra.mxu0 0.0
      %953 = vmatprep.subr.mxu0 0.0
      %954 = vmatpush2.msra.mxu0 0.0
      %955 = vmatprep.subr.mxu0 0.0
      %956 = vmatpush2.msra.mxu0 0.0
      %957 = vmatprep.subr.mxu0 0.0
      %958 = vmatpush2.msra.mxu0 0.0
      %959 = vmatprep.subr.mxu0 0.0
      %960 = vmatpush2.msra.mxu0 0.0
      %961 = vmatprep.subr.mxu0 0.0
      %962 = vmatpush2.msra.mxu0 0.0
      %963 = vmatprep.subr.mxu0 0.0
      %964 = vmatpush2.msra.mxu0 0.0
      %965 = vmatprep.subr.mxu0 0.0
      %966 = vmatpush2.msra.mxu0 0.0
      %967 = vmatprep.subr.mxu0 0.0
      %968 = vmatpush2.msra.mxu0 0.0
      %969 = vmatprep.subr.mxu0 0.0
      %970 = vmatpush2.msra.mxu0 0.0
      %971 = vmatprep.subr.mxu0 0.0
      %972 = vmatpush2.msra.mxu0 0.0
      %973 = vmatprep.subr.mxu0 0.0
      %974 = vmatpush2.msra.mxu0 0.0
      %975 = vmatprep.subr.mxu0 0.0
      %976 = vmatpush2.msra.mxu0 0.0
      %977 = vmatprep.subr.mxu0 0.0
      %978 = vmatpush2.msra.mxu0 0.0
      %979 = vmatprep.subr.mxu0 0.0
      %980 = vmatpush2.msra.mxu0 0.0
      %981 = vmatprep.mubr.f32.mxu0 0.0
      %982 = vmatmul.mubr.f32.gmra.mxu0 %v551
      %v983 = vpop.f32.mrf.mxu0
      %v984 = vadd.f32 0.0, %v983
      %v985 = vpop.f32.mrf.mxu0
      %986 = vdwg.mxu0
      %s987 = scalar_lea.vmem %s4, 32
      %v988 = vld [vmem:[%s987] sm:$0xff]
      %v989 = vld [vmem:[%s987 + $0x8] sm:$0xff]
      %v991 = vsel %vm730, %v988, 0
      %v994 = vsel %vm730, %v989, 0
      %v997 = vsel %vm737, %v984, 0
      %999 = vmatprep.subr.mxu0 0.0
      %1000 = vmatpush1.msra.mxu0 0.0
      %1001 = vmatprep.subr.mxu0 0.0
      %1002 = vmatpush1.msra.mxu0 0.0
      %1003 = vmatprep.subr.mxu0 0.0
      %1004 = vmatpush1.msra.mxu0 0.0
      %1005 = vmatprep.subr.mxu0 0.0
      %1006 = vmatpush1.msra.mxu0 0.0
      %1007 = vmatprep.subr.mxu0 0.0
      %1008 = vmatpush1.msra.mxu0 0.0
      %1009 = vmatprep.subr.mxu0 0.0
      %1010 = vmatpush1.msra.mxu0 0.0
      %1011 = vmatprep.subr.mxu0 0.0
      %1012 = vmatpush1.msra.mxu0 0.0
      %1013 = vmatprep.subr.mxu0 0.0
      %1014 = vmatpush1.msra.mxu0 0.0
      %1015 = vmatprep.subr.mxu0 0.0
      %1016 = vmatpush1.msra.mxu0 0.0
      %1017 = vmatprep.subr.mxu0 0.0
      %1018 = vmatpush1.msra.mxu0 0.0
      %1019 = vmatprep.subr.mxu0 0.0
      %1020 = vmatpush1.msra.mxu0 0.0
      %1021 = vmatprep.subr.mxu0 0.0
      %1022 = vmatpush1.msra.mxu0 0.0
      %1023 = vmatprep.subr.mxu0 0.0
      %1024 = vmatpush1.msra.mxu0 0.0
      %1025 = vmatprep.subr.mxu0 0.0
      %1026 = vmatpush1.msra.mxu0 0.0
      %1027 = vmatprep.subr.mxu0 0.0
      %1028 = vmatpush1.msra.mxu0 0.0
      %1029 = vmatprep.subr.mxu0 0.0
      %1030 = vmatpush1.msra.mxu0 %v997
      %1031 = vmatprep.subr.mxu0 0.0
      %1032 = vmatpush2.msra.mxu0 0.0
      %1033 = vmatprep.subr.mxu0 0.0
      %1034 = vmatpush2.msra.mxu0 0.0
      %1035 = vmatprep.subr.mxu0 0.0
      %1036 = vmatpush2.msra.mxu0 0.0
      %1037 = vmatprep.subr.mxu0 0.0
      %1038 = vmatpush2.msra.mxu0 0.0
      %1039 = vmatprep.subr.mxu0 0.0
      %1040 = vmatpush2.msra.mxu0 0.0
      %1041 = vmatprep.subr.mxu0 0.0
      %1042 = vmatpush2.msra.mxu0 0.0
      %1043 = vmatprep.subr.mxu0 0.0
      %1044 = vmatpush2.msra.mxu0 0.0
      %1045 = vmatprep.subr.mxu0 0.0
      %1046 = vmatpush2.msra.mxu0 0.0
      %1047 = vmatprep.subr.mxu0 0.0
      %1048 = vmatpush2.msra.mxu0 0.0
      %1049 = vmatprep.subr.mxu0 0.0
      %1050 = vmatpush2.msra.mxu0 0.0
      %1051 = vmatprep.subr.mxu0 0.0
      %1052 = vmatpush2.msra.mxu0 0.0
      %1053 = vmatprep.subr.mxu0 0.0
      %1054 = vmatpush2.msra.mxu0 0.0
      %1055 = vmatprep.subr.mxu0 0.0
      %1056 = vmatpush2.msra.mxu0 0.0
      %1057 = vmatprep.subr.mxu0 0.0
      %1058 = vmatpush2.msra.mxu0 0.0
      %1059 = vmatprep.subr.mxu0 0.0
      %1060 = vmatpush2.msra.mxu0 0.0
      %1061 = vmatprep.subr.mxu0 0.0
      %1062 = vmatpush2.msra.mxu0 0.0
      %1063 = vmatprep.mubr.f32.mxu0 0.0
      %1064 = vmatmul.mubr.f32.gmra.mxu0 %v991
      %v1065 = vpop.f32.mrf.mxu0
      %v1066 = vadd.f32 0.0, %v1065
      %v1067 = vpop.f32.mrf.mxu0
      %1068 = vmatprep.mubr.f32.mxu0 0.0
      %1069 = vmatmul.mubr.f32.gmra.mxu0 %v994
      %v1070 = vpop.f32.mrf.mxu0
      %v1071 = vadd.f32 0.0, %v1070
      %v1072 = vpop.f32.mrf.mxu0
      %1073 = vdwg.mxu0
      %v1074 = vadd.f32 %v892, %v1066
      %v1075 = vadd.f32 %v897, %v1071
      %v1076 = vld [vmem:[%s5] sm:$0xff]
      %v1077 = vld [vmem:[%s5 + $0x8] sm:$0xff]
      %v1079 = vsel %vm730, %v1076, 0
      %v1082 = vsel %vm730, %v1077, 0
      %v1085 = vsel %vm737, %v551, 0
      %1087 = vmatprep.subr.mxu0 0.0
      %1088 = vmatpush1.msra.mxu0 0.0
      %1089 = vmatprep.subr.mxu0 0.0
      %1090 = vmatpush1.msra.mxu0 0.0
      %1091 = vmatprep.subr.mxu0 0.0
      %1092 = vmatpush1.msra.mxu0 0.0
      %1093 = vmatprep.subr.mxu0 0.0
      %1094 = vmatpush1.msra.mxu0 0.0
      %1095 = vmatprep.subr.mxu0 0.0
      %1096 = vmatpush1.msra.mxu0 0.0
      %1097 = vmatprep.subr.mxu0 0.0
      %1098 = vmatpush1.msra.mxu0 0.0
      %1099 = vmatprep.subr.mxu0 0.0
      %1100 = vmatpush1.msra.mxu0 0.0
      %1101 = vmatprep.subr.mxu0 0.0
      %1102 = vmatpush1.msra.mxu0 0.0
      %1103 = vmatprep.subr.mxu0 0.0
      %1104 = vmatpush1.msra.mxu0 0.0
      %1105 = vmatprep.subr.mxu0 0.0
      %1106 = vmatpush1.msra.mxu0 0.0
      %1107 = vmatprep.subr.mxu0 0.0
      %1108 = vmatpush1.msra.mxu0 0.0
      %1109 = vmatprep.subr.mxu0 0.0
      %1110 = vmatpush1.msra.mxu0 0.0
      %1111 = vmatprep.subr.mxu0 0.0
      %1112 = vmatpush1.msra.mxu0 0.0
      %1113 = vmatprep.subr.mxu0 0.0
      %1114 = vmatpush1.msra.mxu0 0.0
      %1115 = vmatprep.subr.mxu0 0.0
      %1116 = vmatpush1.msra.mxu0 0.0
      %1117 = vmatprep.subr.mxu0 0.0
      %1118 = vmatpush1.msra.mxu0 %v1085
      %1119 = vmatprep.subr.mxu0 0.0
      %1120 = vmatpush2.msra.mxu0 0.0
      %1121 = vmatprep.subr.mxu0 0.0
      %1122 = vmatpush2.msra.mxu0 0.0
      %1123 = vmatprep.subr.mxu0 0.0
      %1124 = vmatpush2.msra.mxu0 0.0
      %1125 = vmatprep.subr.mxu0 0.0
      %1126 = vmatpush2.msra.mxu0 0.0
      %1127 = vmatprep.subr.mxu0 0.0
      %1128 = vmatpush2.msra.mxu0 0.0
      %1129 = vmatprep.subr.mxu0 0.0
      %1130 = vmatpush2.msra.mxu0 0.0
      %1131 = vmatprep.subr.mxu0 0.0
      %1132 = vmatpush2.msra.mxu0 0.0
      %1133 = vmatprep.subr.mxu0 0.0
      %1134 = vmatpush2.msra.mxu0 0.0
      %1135 = vmatprep.subr.mxu0 0.0
      %1136 = vmatpush2.msra.mxu0 0.0
      %1137 = vmatprep.subr.mxu0 0.0
      %1138 = vmatpush2.msra.mxu0 0.0
      %1139 = vmatprep.subr.mxu0 0.0
      %1140 = vmatpush2.msra.mxu0 0.0
      %1141 = vmatprep.subr.mxu0 0.0
      %1142 = vmatpush2.msra.mxu0 0.0
      %1143 = vmatprep.subr.mxu0 0.0
      %1144 = vmatpush2.msra.mxu0 0.0
      %1145 = vmatprep.subr.mxu0 0.0
      %1146 = vmatpush2.msra.mxu0 0.0
      %1147 = vmatprep.subr.mxu0 0.0
      %1148 = vmatpush2.msra.mxu0 0.0
      %1149 = vmatprep.subr.mxu0 0.0
      %1150 = vmatpush2.msra.mxu0 0.0
      %1151 = vmatprep.mubr.f32.mxu0 0.0
      %1152 = vmatmul.mubr.f32.gmra.mxu0 %v1079
      %v1153 = vpop.f32.mrf.mxu0
      %v1154 = vadd.f32 0.0, %v1153
      %v1155 = vpop.f32.mrf.mxu0
      %1156 = vmatprep.mubr.f32.mxu0 0.0
      %1157 = vmatmul.mubr.f32.gmra.mxu0 %v1082
      %v1158 = vpop.f32.mrf.mxu0
      %v1159 = vadd.f32 0.0, %v1158
      %v1160 = vpop.f32.mrf.mxu0
      %1161 = vdwg.mxu0
      %v1162 = vadd.f32 %v1074, %v1154
      %v1163 = vadd.f32 %v1075, %v1159
      %s1164 = scalar_lea.vmem %s1, 4
      %v1165 = vld [vmem:[%s1164] sm:$0xf]
      %s1166 = scalar_lea.vmem %s2, 4
      %v1167 = vld [vmem:[%s1166] sm:$0xf]
      %1169 = vset.pattern.permute.xlu0 0
      %1170 = vperm.xlu0 %1169, %v1167
      %v1171 = vpop.permute.xlu0 %1170
      %v1174 = vsel %vm477, %v1165, 0
      %1176 = vmatprep.subr.mxu0 0.0
      %1177 = vmatpush1.msra.mxu0 0.0
      %1178 = vmatprep.subr.mxu0 0.0
      %1179 = vmatpush1.msra.mxu0 0.0
      %1180 = vmatprep.subr.mxu0 0.0
      %1181 = vmatpush1.msra.mxu0 0.0
      %1182 = vmatprep.subr.mxu0 0.0
      %1183 = vmatpush1.msra.mxu0 0.0
      %1184 = vmatprep.subr.mxu0 0.0
      %1185 = vmatpush1.msra.mxu0 0.0
      %1186 = vmatprep.subr.mxu0 0.0
      %1187 = vmatpush1.msra.mxu0 0.0
      %1188 = vmatprep.subr.mxu0 0.0
      %1189 = vmatpush1.msra.mxu0 0.0
      %1190 = vmatprep.subr.mxu0 0.0
      %1191 = vmatpush1.msra.mxu0 0.0
      %1192 = vmatprep.subr.mxu0 0.0
      %1193 = vmatpush1.msra.mxu0 0.0
      %1194 = vmatprep.subr.mxu0 0.0
      %1195 = vmatpush1.msra.mxu0 0.0
      %1196 = vmatprep.subr.mxu0 0.0
      %1197 = vmatpush1.msra.mxu0 0.0
      %1198 = vmatprep.subr.mxu0 0.0
      %1199 = vmatpush1.msra.mxu0 0.0
      %1200 = vmatprep.subr.mxu0 0.0
      %1201 = vmatpush1.msra.mxu0 0.0
      %1202 = vmatprep.subr.mxu0 0.0
      %1203 = vmatpush1.msra.mxu0 0.0
      %1204 = vmatprep.subr.mxu0 0.0
      %1205 = vmatpush1.msra.mxu0 %v469
      %1206 = vmatprep.subr.mxu0 0.0
      %1207 = vmatpush1.msra.mxu0 %v468
      %1208 = vmatprep.subr.mxu0 0.0
      %1209 = vmatpush2.msra.mxu0 0.0
      %1210 = vmatprep.subr.mxu0 0.0
      %1211 = vmatpush2.msra.mxu0 0.0
      %1212 = vmatprep.subr.mxu0 0.0
      %1213 = vmatpush2.msra.mxu0 0.0
      %1214 = vmatprep.subr.mxu0 0.0
      %1215 = vmatpush2.msra.mxu0 0.0
      %1216 = vmatprep.subr.mxu0 0.0
      %1217 = vmatpush2.msra.mxu0 0.0
      %1218 = vmatprep.subr.mxu0 0.0
      %1219 = vmatpush2.msra.mxu0 0.0
      %1220 = vmatprep.subr.mxu0 0.0
      %1221 = vmatpush2.msra.mxu0 0.0
      %1222 = vmatprep.subr.mxu0 0.0
      %1223 = vmatpush2.msra.mxu0 0.0
      %1224 = vmatprep.subr.mxu0 0.0
      %1225 = vmatpush2.msra.mxu0 0.0
      %1226 = vmatprep.subr.mxu0 0.0
      %1227 = vmatpush2.msra.mxu0 0.0
      %1228 = vmatprep.subr.mxu0 0.0
      %1229 = vmatpush2.msra.mxu0 0.0
      %1230 = vmatprep.subr.mxu0 0.0
      %1231 = vmatpush2.msra.mxu0 0.0
      %1232 = vmatprep.subr.mxu0 0.0
      %1233 = vmatpush2.msra.mxu0 0.0
      %1234 = vmatprep.subr.mxu0 0.0
      %1235 = vmatpush2.msra.mxu0 0.0
      %1236 = vmatprep.subr.mxu0 0.0
      %1237 = vmatpush2.msra.mxu0 0.0
      %1238 = vmatprep.subr.mxu0 0.0
      %1239 = vmatpush2.msra.mxu0 0.0
      %1240 = vmatprep.mubr.f32.mxu0 0.0
      %1241 = vmatmul.mubr.f32.gmra.mxu0 %v1174
      %v1242 = vpop.f32.mrf.mxu0
      %v1243 = vadd.f32 %v1171, %v1242
      %v1244 = vpop.f32.mrf.mxu0
      %1245 = vdwg.mxu0
      %v1246 = vmax.f32 %v1243, 0.0
      %s1247 = scalar_lea.vmem %s3, 384
      %v1248 = vld [vmem:[%s1247] sm:$0xff]
      %v1249 = vld [vmem:[%s1247 + $0x8] sm:$0xff]
      %v1250 = vld [vmem:[%s1247 + $0x10] sm:$0xff]
      %v1251 = vld [vmem:[%s1247 + $0x18] sm:$0xff]
      %v1252 = vld [vmem:[%s1247 + $0x20] sm:$0xff]
      %v1253 = vld [vmem:[%s1247 + $0x28] sm:$0xff]
      %v1254 = vld [vmem:[%s1247 + $0x30] sm:$0xff]
      %v1255 = vld [vmem:[%s1247 + $0x38] sm:$0xff]
      %v1256 = vld [vmem:[%s1247 + $0x40] sm:$0xff]
      %v1257 = vld [vmem:[%s1247 + $0x48] sm:$0xff]
      %v1258 = vld [vmem:[%s1247 + $0x50] sm:$0xff]
      %v1259 = vld [vmem:[%s1247 + $0x58] sm:$0xff]
      %v1260 = vld [vmem:[%s1247 + $0x60] sm:$0xff]
      %v1261 = vld [vmem:[%s1247 + $0x68] sm:$0xff]
      %v1262 = vld [vmem:[%s1247 + $0x70] sm:$0xff]
      %v1263 = vld [vmem:[%s1247 + $0x78] sm:$0xff]
      %1264 = vmatprep.subr.mxu0 0.0
      %1265 = vmatpush1.msra.mxu0 %v1263
      %1266 = vmatprep.subr.mxu0 0.0
      %1267 = vmatpush1.msra.mxu0 %v1262
      %1268 = vmatprep.subr.mxu0 0.0
      %1269 = vmatpush1.msra.mxu0 %v1261
      %1270 = vmatprep.subr.mxu0 0.0
      %1271 = vmatpush1.msra.mxu0 %v1260
      %1272 = vmatprep.subr.mxu0 0.0
      %1273 = vmatpush1.msra.mxu0 %v1259
      %1274 = vmatprep.subr.mxu0 0.0
      %1275 = vmatpush1.msra.mxu0 %v1258
      %1276 = vmatprep.subr.mxu0 0.0
      %1277 = vmatpush1.msra.mxu0 %v1257
      %1278 = vmatprep.subr.mxu0 0.0
      %1279 = vmatpush1.msra.mxu0 %v1256
      %1280 = vmatprep.subr.mxu0 0.0
      %1281 = vmatpush1.msra.mxu0 %v1255
      %1282 = vmatprep.subr.mxu0 0.0
      %1283 = vmatpush1.msra.mxu0 %v1254
      %1284 = vmatprep.subr.mxu0 0.0
      %1285 = vmatpush1.msra.mxu0 %v1253
      %1286 = vmatprep.subr.mxu0 0.0
      %1287 = vmatpush1.msra.mxu0 %v1252
      %1288 = vmatprep.subr.mxu0 0.0
      %1289 = vmatpush1.msra.mxu0 %v1251
      %1290 = vmatprep.subr.mxu0 0.0
      %1291 = vmatpush1.msra.mxu0 %v1250
      %1292 = vmatprep.subr.mxu0 0.0
      %1293 = vmatpush1.msra.mxu0 %v1249
      %1294 = vmatprep.subr.mxu0 0.0
      %1295 = vmatpush1.msra.mxu0 %v1248
      %1296 = vmatprep.subr.mxu0 0.0
      %1297 = vmatpush2.msra.mxu0 0.0
      %1298 = vmatprep.subr.mxu0 0.0
      %1299 = vmatpush2.msra.mxu0 0.0
      %1300 = vmatprep.subr.mxu0 0.0
      %1301 = vmatpush2.msra.mxu0 0.0
      %1302 = vmatprep.subr.mxu0 0.0
      %1303 = vmatpush2.msra.mxu0 0.0
      %1304 = vmatprep.subr.mxu0 0.0
      %1305 = vmatpush2.msra.mxu0 0.0
      %1306 = vmatprep.subr.mxu0 0.0
      %1307 = vmatpush2.msra.mxu0 0.0
      %1308 = vmatprep.subr.mxu0 0.0
      %1309 = vmatpush2.msra.mxu0 0.0
      %1310 = vmatprep.subr.mxu0 0.0
      %1311 = vmatpush2.msra.mxu0 0.0
      %1312 = vmatprep.subr.mxu0 0.0
      %1313 = vmatpush2.msra.mxu0 0.0
      %1314 = vmatprep.subr.mxu0 0.0
      %1315 = vmatpush2.msra.mxu0 0.0
      %1316 = vmatprep.subr.mxu0 0.0
      %1317 = vmatpush2.msra.mxu0 0.0
      %1318 = vmatprep.subr.mxu0 0.0
      %1319 = vmatpush2.msra.mxu0 0.0
      %1320 = vmatprep.subr.mxu0 0.0
      %1321 = vmatpush2.msra.mxu0 0.0
      %1322 = vmatprep.subr.mxu0 0.0
      %1323 = vmatpush2.msra.mxu0 0.0
      %1324 = vmatprep.subr.mxu0 0.0
      %1325 = vmatpush2.msra.mxu0 0.0
      %1326 = vmatprep.subr.mxu0 0.0
      %1327 = vmatpush2.msra.mxu0 0.0
      %1328 = vmatprep.mubr.f32.mxu0 0.0
      %1329 = vmatmul.mubr.f32.gmra.mxu0 %v1246
      %v1330 = vpop.f32.mrf.mxu0
      %v1331 = vadd.f32 0.0, %v1330
      %v1332 = vpop.f32.mrf.mxu0
      %1333 = vdwg.mxu0
      %s1334 = scalar_lea.vmem %s4, 48
      %v1335 = vld [vmem:[%s1334] sm:$0xff]
      %v1336 = vld [vmem:[%s1334 + $0x8] sm:$0xff]
      %v1338 = vsel %vm730, %v1335, 0
      %v1341 = vsel %vm730, %v1336, 0
      %v1344 = vsel %vm737, %v1331, 0
      %1346 = vmatprep.subr.mxu0 0.0
      %1347 = vmatpush1.msra.mxu0 0.0
      %1348 = vmatprep.subr.mxu0 0.0
      %1349 = vmatpush1.msra.mxu0 0.0
      %1350 = vmatprep.subr.mxu0 0.0
      %1351 = vmatpush1.msra.mxu0 0.0
      %1352 = vmatprep.subr.mxu0 0.0
      %1353 = vmatpush1.msra.mxu0 0.0
      %1354 = vmatprep.subr.mxu0 0.0
      %1355 = vmatpush1.msra.mxu0 0.0
      %1356 = vmatprep.subr.mxu0 0.0
      %1357 = vmatpush1.msra.mxu0 0.0
      %1358 = vmatprep.subr.mxu0 0.0
      %1359 = vmatpush1.msra.mxu0 0.0
      %1360 = vmatprep.subr.mxu0 0.0
      %1361 = vmatpush1.msra.mxu0 0.0
      %1362 = vmatprep.subr.mxu0 0.0
      %1363 = vmatpush1.msra.mxu0 0.0
      %1364 = vmatprep.subr.mxu0 0.0
      %1365 = vmatpush1.msra.mxu0 0.0
      %1366 = vmatprep.subr.mxu0 0.0
      %1367 = vmatpush1.msra.mxu0 0.0
      %1368 = vmatprep.subr.mxu0 0.0
      %1369 = vmatpush1.msra.mxu0 0.0
      %1370 = vmatprep.subr.mxu0 0.0
      %1371 = vmatpush1.msra.mxu0 0.0
      %1372 = vmatprep.subr.mxu0 0.0
      %1373 = vmatpush1.msra.mxu0 0.0
      %1374 = vmatprep.subr.mxu0 0.0
      %1375 = vmatpush1.msra.mxu0 0.0
      %1376 = vmatprep.subr.mxu0 0.0
      %1377 = vmatpush1.msra.mxu0 %v1344
      %1378 = vmatprep.subr.mxu0 0.0
      %1379 = vmatpush2.msra.mxu0 0.0
      %1380 = vmatprep.subr.mxu0 0.0
      %1381 = vmatpush2.msra.mxu0 0.0
      %1382 = vmatprep.subr.mxu0 0.0
      %1383 = vmatpush2.msra.mxu0 0.0
      %1384 = vmatprep.subr.mxu0 0.0
      %1385 = vmatpush2.msra.mxu0 0.0
      %1386 = vmatprep.subr.mxu0 0.0
      %1387 = vmatpush2.msra.mxu0 0.0
      %1388 = vmatprep.subr.mxu0 0.0
      %1389 = vmatpush2.msra.mxu0 0.0
      %1390 = vmatprep.subr.mxu0 0.0
      %1391 = vmatpush2.msra.mxu0 0.0
      %1392 = vmatprep.subr.mxu0 0.0
      %1393 = vmatpush2.msra.mxu0 0.0
      %1394 = vmatprep.subr.mxu0 0.0
      %1395 = vmatpush2.msra.mxu0 0.0
      %1396 = vmatprep.subr.mxu0 0.0
      %1397 = vmatpush2.msra.mxu0 0.0
      %1398 = vmatprep.subr.mxu0 0.0
      %1399 = vmatpush2.msra.mxu0 0.0
      %1400 = vmatprep.subr.mxu0 0.0
      %1401 = vmatpush2.msra.mxu0 0.0
      %1402 = vmatprep.subr.mxu0 0.0
      %1403 = vmatpush2.msra.mxu0 0.0
      %1404 = vmatprep.subr.mxu0 0.0
      %1405 = vmatpush2.msra.mxu0 0.0
      %1406 = vmatprep.subr.mxu0 0.0
      %1407 = vmatpush2.msra.mxu0 0.0
      %1408 = vmatprep.subr.mxu0 0.0
      %1409 = vmatpush2.msra.mxu0 0.0
      %1410 = vmatprep.mubr.f32.mxu0 0.0
      %1411 = vmatmul.mubr.f32.gmra.mxu0 %v1338
      %v1412 = vpop.f32.mrf.mxu0
      %v1413 = vadd.f32 0.0, %v1412
      %v1414 = vpop.f32.mrf.mxu0
      %1415 = vmatprep.mubr.f32.mxu0 0.0
      %1416 = vmatmul.mubr.f32.gmra.mxu0 %v1341
      %v1417 = vpop.f32.mrf.mxu0
      %v1418 = vadd.f32 0.0, %v1417
      %v1419 = vpop.f32.mrf.mxu0
      %1420 = vdwg.mxu0
      %v1421 = vadd.f32 %v1162, %v1413
      %v1422 = vadd.f32 %v1163, %v1418
      %s1423 = scalar_lea.vmem %s3, 512
      %v1424 = vld [vmem:[%s1423] sm:$0xff]
      %v1425 = vld [vmem:[%s1423 + $0x8] sm:$0xff]
      %v1426 = vld [vmem:[%s1423 + $0x10] sm:$0xff]
      %v1427 = vld [vmem:[%s1423 + $0x18] sm:$0xff]
      %v1428 = vld [vmem:[%s1423 + $0x20] sm:$0xff]
      %v1429 = vld [vmem:[%s1423 + $0x28] sm:$0xff]
      %v1430 = vld [vmem:[%s1423 + $0x30] sm:$0xff]
      %v1431 = vld [vmem:[%s1423 + $0x38] sm:$0xff]
      %v1432 = vld [vmem:[%s1423 + $0x40] sm:$0xff]
      %v1433 = vld [vmem:[%s1423 + $0x48] sm:$0xff]
      %v1434 = vld [vmem:[%s1423 + $0x50] sm:$0xff]
      %v1435 = vld [vmem:[%s1423 + $0x58] sm:$0xff]
      %v1436 = vld [vmem:[%s1423 + $0x60] sm:$0xff]
      %v1437 = vld [vmem:[%s1423 + $0x68] sm:$0xff]
      %v1438 = vld [vmem:[%s1423 + $0x70] sm:$0xff]
      %v1439 = vld [vmem:[%s1423 + $0x78] sm:$0xff]
      %1440 = vmatprep.subr.mxu0 0.0
      %1441 = vmatpush1.msra.mxu0 %v1439
      %1442 = vmatprep.subr.mxu0 0.0
      %1443 = vmatpush1.msra.mxu0 %v1438
      %1444 = vmatprep.subr.mxu0 0.0
      %1445 = vmatpush1.msra.mxu0 %v1437
      %1446 = vmatprep.subr.mxu0 0.0
      %1447 = vmatpush1.msra.mxu0 %v1436
      %1448 = vmatprep.subr.mxu0 0.0
      %1449 = vmatpush1.msra.mxu0 %v1435
      %1450 = vmatprep.subr.mxu0 0.0
      %1451 = vmatpush1.msra.mxu0 %v1434
      %1452 = vmatprep.subr.mxu0 0.0
      %1453 = vmatpush1.msra.mxu0 %v1433
      %1454 = vmatprep.subr.mxu0 0.0
      %1455 = vmatpush1.msra.mxu0 %v1432
      %1456 = vmatprep.subr.mxu0 0.0
      %1457 = vmatpush1.msra.mxu0 %v1431
      %1458 = vmatprep.subr.mxu0 0.0
      %1459 = vmatpush1.msra.mxu0 %v1430
      %1460 = vmatprep.subr.mxu0 0.0
      %1461 = vmatpush1.msra.mxu0 %v1429
      %1462 = vmatprep.subr.mxu0 0.0
      %1463 = vmatpush1.msra.mxu0 %v1428
      %1464 = vmatprep.subr.mxu0 0.0
      %1465 = vmatpush1.msra.mxu0 %v1427
      %1466 = vmatprep.subr.mxu0 0.0
      %1467 = vmatpush1.msra.mxu0 %v1426
      %1468 = vmatprep.subr.mxu0 0.0
      %1469 = vmatpush1.msra.mxu0 %v1425
      %1470 = vmatprep.subr.mxu0 0.0
      %1471 = vmatpush1.msra.mxu0 %v1424
      %1472 = vmatprep.subr.mxu0 0.0
      %1473 = vmatpush2.msra.mxu0 0.0
      %1474 = vmatprep.subr.mxu0 0.0
      %1475 = vmatpush2.msra.mxu0 0.0
      %1476 = vmatprep.subr.mxu0 0.0
      %1477 = vmatpush2.msra.mxu0 0.0
      %1478 = vmatprep.subr.mxu0 0.0
      %1479 = vmatpush2.msra.mxu0 0.0
      %1480 = vmatprep.subr.mxu0 0.0
      %1481 = vmatpush2.msra.mxu0 0.0
      %1482 = vmatprep.subr.mxu0 0.0
      %1483 = vmatpush2.msra.mxu0 0.0
      %1484 = vmatprep.subr.mxu0 0.0
      %1485 = vmatpush2.msra.mxu0 0.0
      %1486 = vmatprep.subr.mxu0 0.0
      %1487 = vmatpush2.msra.mxu0 0.0
      %1488 = vmatprep.subr.mxu0 0.0
      %1489 = vmatpush2.msra.mxu0 0.0
      %1490 = vmatprep.subr.mxu0 0.0
      %1491 = vmatpush2.msra.mxu0 0.0
      %1492 = vmatprep.subr.mxu0 0.0
      %1493 = vmatpush2.msra.mxu0 0.0
      %1494 = vmatprep.subr.mxu0 0.0
      %1495 = vmatpush2.msra.mxu0 0.0
      %1496 = vmatprep.subr.mxu0 0.0
      %1497 = vmatpush2.msra.mxu0 0.0
      %1498 = vmatprep.subr.mxu0 0.0
      %1499 = vmatpush2.msra.mxu0 0.0
      %1500 = vmatprep.subr.mxu0 0.0
      %1501 = vmatpush2.msra.mxu0 0.0
      %1502 = vmatprep.subr.mxu0 0.0
      %1503 = vmatpush2.msra.mxu0 0.0
      %1504 = vmatprep.mubr.f32.mxu0 0.0
      %1505 = vmatmul.mubr.f32.gmra.mxu0 %v1246
      %v1506 = vpop.f32.mrf.mxu0
      %v1507 = vadd.f32 0.0, %v1506
      %v1508 = vpop.f32.mrf.mxu0
      %1509 = vdwg.mxu0
      %s1510 = scalar_lea.vmem %s4, 64
      %v1511 = vld [vmem:[%s1510] sm:$0xff]
      %v1512 = vld [vmem:[%s1510 + $0x8] sm:$0xff]
      %v1514 = vsel %vm730, %v1511, 0
      %v1517 = vsel %vm730, %v1512, 0
      %v1520 = vsel %vm737, %v1507, 0
      %1522 = vmatprep.subr.mxu0 0.0
      %1523 = vmatpush1.msra.mxu0 0.0
      %1524 = vmatprep.subr.mxu0 0.0
      %1525 = vmatpush1.msra.mxu0 0.0
      %1526 = vmatprep.subr.mxu0 0.0
      %1527 = vmatpush1.msra.mxu0 0.0
      %1528 = vmatprep.subr.mxu0 0.0
      %1529 = vmatpush1.msra.mxu0 0.0
      %1530 = vmatprep.subr.mxu0 0.0
      %1531 = vmatpush1.msra.mxu0 0.0
      %1532 = vmatprep.subr.mxu0 0.0
      %1533 = vmatpush1.msra.mxu0 0.0
      %1534 = vmatprep.subr.mxu0 0.0
      %1535 = vmatpush1.msra.mxu0 0.0
      %1536 = vmatprep.subr.mxu0 0.0
      %1537 = vmatpush1.msra.mxu0 0.0
      %1538 = vmatprep.subr.mxu0 0.0
      %1539 = vmatpush1.msra.mxu0 0.0
      %1540 = vmatprep.subr.mxu0 0.0
      %1541 = vmatpush1.msra.mxu0 0.0
      %1542 = vmatprep.subr.mxu0 0.0
      %1543 = vmatpush1.msra.mxu0 0.0
      %1544 = vmatprep.subr.mxu0 0.0
      %1545 = vmatpush1.msra.mxu0 0.0
      %1546 = vmatprep.subr.mxu0 0.0
      %1547 = vmatpush1.msra.mxu0 0.0
      %1548 = vmatprep.subr.mxu0 0.0
      %1549 = vmatpush1.msra.mxu0 0.0
      %1550 = vmatprep.subr.mxu0 0.0
      %1551 = vmatpush1.msra.mxu0 0.0
      %1552 = vmatprep.subr.mxu0 0.0
      %1553 = vmatpush1.msra.mxu0 %v1520
      %1554 = vmatprep.subr.mxu0 0.0
      %1555 = vmatpush2.msra.mxu0 0.0
      %1556 = vmatprep.subr.mxu0 0.0
      %1557 = vmatpush2.msra.mxu0 0.0
      %1558 = vmatprep.subr.mxu0 0.0
      %1559 = vmatpush2.msra.mxu0 0.0
      %1560 = vmatprep.subr.mxu0 0.0
      %1561 = vmatpush2.msra.mxu0 0.0
      %1562 = vmatprep.subr.mxu0 0.0
      %1563 = vmatpush2.msra.mxu0 0.0
      %1564 = vmatprep.subr.mxu0 0.0
      %1565 = vmatpush2.msra.mxu0 0.0
      %1566 = vmatprep.subr.mxu0 0.0
      %1567 = vmatpush2.msra.mxu0 0.0
      %1568 = vmatprep.subr.mxu0 0.0
      %1569 = vmatpush2.msra.mxu0 0.0
      %1570 = vmatprep.subr.mxu0 0.0
      %1571 = vmatpush2.msra.mxu0 0.0
      %1572 = vmatprep.subr.mxu0 0.0
      %1573 = vmatpush2.msra.mxu0 0.0
      %1574 = vmatprep.subr.mxu0 0.0
      %1575 = vmatpush2.msra.mxu0 0.0
      %1576 = vmatprep.subr.mxu0 0.0
      %1577 = vmatpush2.msra.mxu0 0.0
      %1578 = vmatprep.subr.mxu0 0.0
      %1579 = vmatpush2.msra.mxu0 0.0
      %1580 = vmatprep.subr.mxu0 0.0
      %1581 = vmatpush2.msra.mxu0 0.0
      %1582 = vmatprep.subr.mxu0 0.0
      %1583 = vmatpush2.msra.mxu0 0.0
      %1584 = vmatprep.subr.mxu0 0.0
      %1585 = vmatpush2.msra.mxu0 0.0
      %1586 = vmatprep.mubr.f32.mxu0 0.0
      %1587 = vmatmul.mubr.f32.gmra.mxu0 %v1514
      %v1588 = vpop.f32.mrf.mxu0
      %v1589 = vadd.f32 0.0, %v1588
      %v1590 = vpop.f32.mrf.mxu0
      %1591 = vmatprep.mubr.f32.mxu0 0.0
      %1592 = vmatmul.mubr.f32.gmra.mxu0 %v1517
      %v1593 = vpop.f32.mrf.mxu0
      %v1594 = vadd.f32 0.0, %v1593
      %v1595 = vpop.f32.mrf.mxu0
      %1596 = vdwg.mxu0
      %v1597 = vadd.f32 %v1421, %v1589
      %v1598 = vadd.f32 %v1422, %v1594
      %s1599 = scalar_lea.vmem %s3, 640
      %v1600 = vld [vmem:[%s1599] sm:$0xff]
      %v1601 = vld [vmem:[%s1599 + $0x8] sm:$0xff]
      %v1602 = vld [vmem:[%s1599 + $0x10] sm:$0xff]
      %v1603 = vld [vmem:[%s1599 + $0x18] sm:$0xff]
      %v1604 = vld [vmem:[%s1599 + $0x20] sm:$0xff]
      %v1605 = vld [vmem:[%s1599 + $0x28] sm:$0xff]
      %v1606 = vld [vmem:[%s1599 + $0x30] sm:$0xff]
      %v1607 = vld [vmem:[%s1599 + $0x38] sm:$0xff]
      %v1608 = vld [vmem:[%s1599 + $0x40] sm:$0xff]
      %v1609 = vld [vmem:[%s1599 + $0x48] sm:$0xff]
      %v1610 = vld [vmem:[%s1599 + $0x50] sm:$0xff]
      %v1611 = vld [vmem:[%s1599 + $0x58] sm:$0xff]
      %v1612 = vld [vmem:[%s1599 + $0x60] sm:$0xff]
      %v1613 = vld [vmem:[%s1599 + $0x68] sm:$0xff]
      %v1614 = vld [vmem:[%s1599 + $0x70] sm:$0xff]
      %v1615 = vld [vmem:[%s1599 + $0x78] sm:$0xff]
      %1616 = vmatprep.subr.mxu0 0.0
      %1617 = vmatpush1.msra.mxu0 %v1615
      %1618 = vmatprep.subr.mxu0 0.0
      %1619 = vmatpush1.msra.mxu0 %v1614
      %1620 = vmatprep.subr.mxu0 0.0
      %1621 = vmatpush1.msra.mxu0 %v1613
      %1622 = vmatprep.subr.mxu0 0.0
      %1623 = vmatpush1.msra.mxu0 %v1612
      %1624 = vmatprep.subr.mxu0 0.0
      %1625 = vmatpush1.msra.mxu0 %v1611
      %1626 = vmatprep.subr.mxu0 0.0
      %1627 = vmatpush1.msra.mxu0 %v1610
      %1628 = vmatprep.subr.mxu0 0.0
      %1629 = vmatpush1.msra.mxu0 %v1609
      %1630 = vmatprep.subr.mxu0 0.0
      %1631 = vmatpush1.msra.mxu0 %v1608
      %1632 = vmatprep.subr.mxu0 0.0
      %1633 = vmatpush1.msra.mxu0 %v1607
      %1634 = vmatprep.subr.mxu0 0.0
      %1635 = vmatpush1.msra.mxu0 %v1606
      %1636 = vmatprep.subr.mxu0 0.0
      %1637 = vmatpush1.msra.mxu0 %v1605
      %1638 = vmatprep.subr.mxu0 0.0
      %1639 = vmatpush1.msra.mxu0 %v1604
      %1640 = vmatprep.subr.mxu0 0.0
      %1641 = vmatpush1.msra.mxu0 %v1603
      %1642 = vmatprep.subr.mxu0 0.0
      %1643 = vmatpush1.msra.mxu0 %v1602
      %1644 = vmatprep.subr.mxu0 0.0
      %1645 = vmatpush1.msra.mxu0 %v1601
      %1646 = vmatprep.subr.mxu0 0.0
      %1647 = vmatpush1.msra.mxu0 %v1600
      %1648 = vmatprep.subr.mxu0 0.0
      %1649 = vmatpush2.msra.mxu0 0.0
      %1650 = vmatprep.subr.mxu0 0.0
      %1651 = vmatpush2.msra.mxu0 0.0
      %1652 = vmatprep.subr.mxu0 0.0
      %1653 = vmatpush2.msra.mxu0 0.0
      %1654 = vmatprep.subr.mxu0 0.0
      %1655 = vmatpush2.msra.mxu0 0.0
      %1656 = vmatprep.subr.mxu0 0.0
      %1657 = vmatpush2.msra.mxu0 0.0
      %1658 = vmatprep.subr.mxu0 0.0
      %1659 = vmatpush2.msra.mxu0 0.0
      %1660 = vmatprep.subr.mxu0 0.0
      %1661 = vmatpush2.msra.mxu0 0.0
      %1662 = vmatprep.subr.mxu0 0.0
      %1663 = vmatpush2.msra.mxu0 0.0
      %1664 = vmatprep.subr.mxu0 0.0
      %1665 = vmatpush2.msra.mxu0 0.0
      %1666 = vmatprep.subr.mxu0 0.0
      %1667 = vmatpush2.msra.mxu0 0.0
      %1668 = vmatprep.subr.mxu0 0.0
      %1669 = vmatpush2.msra.mxu0 0.0
      %1670 = vmatprep.subr.mxu0 0.0
      %1671 = vmatpush2.msra.mxu0 0.0
      %1672 = vmatprep.subr.mxu0 0.0
      %1673 = vmatpush2.msra.mxu0 0.0
      %1674 = vmatprep.subr.mxu0 0.0
      %1675 = vmatpush2.msra.mxu0 0.0
      %1676 = vmatprep.subr.mxu0 0.0
      %1677 = vmatpush2.msra.mxu0 0.0
      %1678 = vmatprep.subr.mxu0 0.0
      %1679 = vmatpush2.msra.mxu0 0.0
      %1680 = vmatprep.mubr.f32.mxu0 0.0
      %1681 = vmatmul.mubr.f32.gmra.mxu0 %v1246
      %v1682 = vpop.f32.mrf.mxu0
      %v1683 = vadd.f32 0.0, %v1682
      %v1684 = vpop.f32.mrf.mxu0
      %1685 = vdwg.mxu0
      %s1686 = scalar_lea.vmem %s4, 80
      %v1687 = vld [vmem:[%s1686] sm:$0xff]
      %v1688 = vld [vmem:[%s1686 + $0x8] sm:$0xff]
      %v1690 = vsel %vm730, %v1687, 0
      %v1693 = vsel %vm730, %v1688, 0
      %v1696 = vsel %vm737, %v1683, 0
      %1698 = vmatprep.subr.mxu0 0.0
      %1699 = vmatpush1.msra.mxu0 0.0
      %1700 = vmatprep.subr.mxu0 0.0
      %1701 = vmatpush1.msra.mxu0 0.0
      %1702 = vmatprep.subr.mxu0 0.0
      %1703 = vmatpush1.msra.mxu0 0.0
      %1704 = vmatprep.subr.mxu0 0.0
      %1705 = vmatpush1.msra.mxu0 0.0
      %1706 = vmatprep.subr.mxu0 0.0
      %1707 = vmatpush1.msra.mxu0 0.0
      %1708 = vmatprep.subr.mxu0 0.0
      %1709 = vmatpush1.msra.mxu0 0.0
      %1710 = vmatprep.subr.mxu0 0.0
      %1711 = vmatpush1.msra.mxu0 0.0
      %1712 = vmatprep.subr.mxu0 0.0
      %1713 = vmatpush1.msra.mxu0 0.0
      %1714 = vmatprep.subr.mxu0 0.0
      %1715 = vmatpush1.msra.mxu0 0.0
      %1716 = vmatprep.subr.mxu0 0.0
      %1717 = vmatpush1.msra.mxu0 0.0
      %1718 = vmatprep.subr.mxu0 0.0
      %1719 = vmatpush1.msra.mxu0 0.0
      %1720 = vmatprep.subr.mxu0 0.0
      %1721 = vmatpush1.msra.mxu0 0.0
      %1722 = vmatprep.subr.mxu0 0.0
      %1723 = vmatpush1.msra.mxu0 0.0
      %1724 = vmatprep.subr.mxu0 0.0
      %1725 = vmatpush1.msra.mxu0 0.0
      %1726 = vmatprep.subr.mxu0 0.0
      %1727 = vmatpush1.msra.mxu0 0.0
      %1728 = vmatprep.subr.mxu0 0.0
      %1729 = vmatpush1.msra.mxu0 %v1696
      %1730 = vmatprep.subr.mxu0 0.0
      %1731 = vmatpush2.msra.mxu0 0.0
      %1732 = vmatprep.subr.mxu0 0.0
      %1733 = vmatpush2.msra.mxu0 0.0
      %1734 = vmatprep.subr.mxu0 0.0
      %1735 = vmatpush2.msra.mxu0 0.0
      %1736 = vmatprep.subr.mxu0 0.0
      %1737 = vmatpush2.msra.mxu0 0.0
      %1738 = vmatprep.subr.mxu0 0.0
      %1739 = vmatpush2.msra.mxu0 0.0
      %1740 = vmatprep.subr.mxu0 0.0
      %1741 = vmatpush2.msra.mxu0 0.0
      %1742 = vmatprep.subr.mxu0 0.0
      %1743 = vmatpush2.msra.mxu0 0.0
      %1744 = vmatprep.subr.mxu0 0.0
      %1745 = vmatpush2.msra.mxu0 0.0
      %1746 = vmatprep.subr.mxu0 0.0
      %1747 = vmatpush2.msra.mxu0 0.0
      %1748 = vmatprep.subr.mxu0 0.0
      %1749 = vmatpush2.msra.mxu0 0.0
      %1750 = vmatprep.subr.mxu0 0.0
      %1751 = vmatpush2.msra.mxu0 0.0
      %1752 = vmatprep.subr.mxu0 0.0
      %1753 = vmatpush2.msra.mxu0 0.0
      %1754 = vmatprep.subr.mxu0 0.0
      %1755 = vmatpush2.msra.mxu0 0.0
      %1756 = vmatprep.subr.mxu0 0.0
      %1757 = vmatpush2.msra.mxu0 0.0
      %1758 = vmatprep.subr.mxu0 0.0
      %1759 = vmatpush2.msra.mxu0 0.0
      %1760 = vmatprep.subr.mxu0 0.0
      %1761 = vmatpush2.msra.mxu0 0.0
      %1762 = vmatprep.mubr.f32.mxu0 0.0
      %1763 = vmatmul.mubr.f32.gmra.mxu0 %v1690
      %v1764 = vpop.f32.mrf.mxu0
      %v1765 = vadd.f32 0.0, %v1764
      %v1766 = vpop.f32.mrf.mxu0
      %1767 = vmatprep.mubr.f32.mxu0 0.0
      %1768 = vmatmul.mubr.f32.gmra.mxu0 %v1693
      %v1769 = vpop.f32.mrf.mxu0
      %v1770 = vadd.f32 0.0, %v1769
      %v1771 = vpop.f32.mrf.mxu0
      %1772 = vdwg.mxu0
      %v1773 = vadd.f32 %v1597, %v1765
      %v1774 = vadd.f32 %v1598, %v1770
      %s1775 = scalar_lea.vmem %s5, 16
      %v1776 = vld [vmem:[%s1775] sm:$0xff]
      %v1777 = vld [vmem:[%s1775 + $0x8] sm:$0xff]
      %v1779 = vsel %vm730, %v1776, 0
      %v1782 = vsel %vm730, %v1777, 0
      %v1785 = vsel %vm737, %v1246, 0
      %1787 = vmatprep.subr.mxu0 0.0
      %1788 = vmatpush1.msra.mxu0 0.0
      %1789 = vmatprep.subr.mxu0 0.0
      %1790 = vmatpush1.msra.mxu0 0.0
      %1791 = vmatprep.subr.mxu0 0.0
      %1792 = vmatpush1.msra.mxu0 0.0
      %1793 = vmatprep.subr.mxu0 0.0
      %1794 = vmatpush1.msra.mxu0 0.0
      %1795 = vmatprep.subr.mxu0 0.0
      %1796 = vmatpush1.msra.mxu0 0.0
      %1797 = vmatprep.subr.mxu0 0.0
      %1798 = vmatpush1.msra.mxu0 0.0
      %1799 = vmatprep.subr.mxu0 0.0
      %1800 = vmatpush1.msra.mxu0 0.0
      %1801 = vmatprep.subr.mxu0 0.0
      %1802 = vmatpush1.msra.mxu0 0.0
      %1803 = vmatprep.subr.mxu0 0.0
      %1804 = vmatpush1.msra.mxu0 0.0
      %1805 = vmatprep.subr.mxu0 0.0
      %1806 = vmatpush1.msra.mxu0 0.0
      %1807 = vmatprep.subr.mxu0 0.0
      %1808 = vmatpush1.msra.mxu0 0.0
      %1809 = vmatprep.subr.mxu0 0.0
      %1810 = vmatpush1.msra.mxu0 0.0
      %1811 = vmatprep.subr.mxu0 0.0
      %1812 = vmatpush1.msra.mxu0 0.0
      %1813 = vmatprep.subr.mxu0 0.0
      %1814 = vmatpush1.msra.mxu0 0.0
      %1815 = vmatprep.subr.mxu0 0.0
      %1816 = vmatpush1.msra.mxu0 0.0
      %1817 = vmatprep.subr.mxu0 0.0
      %1818 = vmatpush1.msra.mxu0 %v1785
      %1819 = vmatprep.subr.mxu0 0.0
      %1820 = vmatpush2.msra.mxu0 0.0
      %1821 = vmatprep.subr.mxu0 0.0
      %1822 = vmatpush2.msra.mxu0 0.0
      %1823 = vmatprep.subr.mxu0 0.0
      %1824 = vmatpush2.msra.mxu0 0.0
      %1825 = vmatprep.subr.mxu0 0.0
      %1826 = vmatpush2.msra.mxu0 0.0
      %1827 = vmatprep.subr.mxu0 0.0
      %1828 = vmatpush2.msra.mxu0 0.0
      %1829 = vmatprep.subr.mxu0 0.0
      %1830 = vmatpush2.msra.mxu0 0.0
      %1831 = vmatprep.subr.mxu0 0.0
      %1832 = vmatpush2.msra.mxu0 0.0
      %1833 = vmatprep.subr.mxu0 0.0
      %1834 = vmatpush2.msra.mxu0 0.0
      %1835 = vmatprep.subr.mxu0 0.0
      %1836 = vmatpush2.msra.mxu0 0.0
      %1837 = vmatprep.subr.mxu0 0.0
      %1838 = vmatpush2.msra.mxu0 0.0
      %1839 = vmatprep.subr.mxu0 0.0
      %1840 = vmatpush2.msra.mxu0 0.0
      %1841 = vmatprep.subr.mxu0 0.0
      %1842 = vmatpush2.msra.mxu0 0.0
      %1843 = vmatprep.subr.mxu0 0.0
      %1844 = vmatpush2.msra.mxu0 0.0
      %1845 = vmatprep.subr.mxu0 0.0
      %1846 = vmatpush2.msra.mxu0 0.0
      %1847 = vmatprep.subr.mxu0 0.0
      %1848 = vmatpush2.msra.mxu0 0.0
      %1849 = vmatprep.subr.mxu0 0.0
      %1850 = vmatpush2.msra.mxu0 0.0
      %1851 = vmatprep.mubr.f32.mxu0 0.0
      %1852 = vmatmul.mubr.f32.gmra.mxu0 %v1779
      %v1853 = vpop.f32.mrf.mxu0
      %v1854 = vadd.f32 0.0, %v1853
      %v1855 = vpop.f32.mrf.mxu0
      %1856 = vmatprep.mubr.f32.mxu0 0.0
      %1857 = vmatmul.mubr.f32.gmra.mxu0 %v1782
      %v1858 = vpop.f32.mrf.mxu0
      %v1859 = vadd.f32 0.0, %v1858
      %v1860 = vpop.f32.mrf.mxu0
      %1861 = vdwg.mxu0
      %v1862 = vadd.f32 %v1773, %v1854
      %v1863 = vadd.f32 %v1774, %v1859
      %v1864 = vld [vmem:[%s6] sm:$0xff]
      %v1865 = vld [vmem:[%s6 + $0x8] sm:$0xff]
      %1867 = vset.pattern.permute.xlu0 0
      %1868 = vperm.xlu0 %1867, %v1864
      %v1869 = vpop.permute.xlu0 %1868
      %1872 = vset.pattern.permute.xlu0 0
      %1873 = vperm.xlu0 %1872, %v1865
      %v1874 = vpop.permute.xlu0 %1873
      %v1876 = vadd.f32 %v1862, %v1869
      %v1877 = vadd.f32 %v1863, %v1874
      %v1878 = vadd.f32 %v1876, %v468
      %v1879 = vadd.f32 %v1877, %v469
      %v1880 = vmax.f32 %v1878, 0.0
      %v1881 = vmax.f32 %v1879, 0.0
      %v1882 = vld [vmem:[%s7] sm:$0xff]
      %v1883 = vld [vmem:[%s7 + $0x8] sm:$0xf]
      %v1884 = vld [vmem:[%s8] sm:$0xff]
      %v1885 = vld [vmem:[%s8 + $0x8] sm:$0xf]
      %1887 = vset.pattern.permute.xlu0 0
      %1888 = vperm.xlu0 %1887, %v1884
      %v1889 = vpop.permute.xlu0 %1888
      %1892 = vset.pattern.permute.xlu0 0
      %1893 = vperm.xlu0 %1892, %v1885
      %v1894 = vpop.permute.xlu0 %1893
      %v1897 = vsel %vm477, %v1882, 0
      %v1900 = vsel %vm477, %v1883, 0
      %1902 = vmatprep.subr.mxu0 0.0
      %1903 = vmatpush1.msra.mxu0 0.0
      %1904 = vmatprep.subr.mxu0 0.0
      %1905 = vmatpush1.msra.mxu0 0.0
      %1906 = vmatprep.subr.mxu0 0.0
      %1907 = vmatpush1.msra.mxu0 0.0
      %1908 = vmatprep.subr.mxu0 0.0
      %1909 = vmatpush1.msra.mxu0 0.0
      %1910 = vmatprep.subr.mxu0 0.0
      %1911 = vmatpush1.msra.mxu0 0.0
      %1912 = vmatprep.subr.mxu0 0.0
      %1913 = vmatpush1.msra.mxu0 0.0
      %1914 = vmatprep.subr.mxu0 0.0
      %1915 = vmatpush1.msra.mxu0 0.0
      %1916 = vmatprep.subr.mxu0 0.0
      %1917 = vmatpush1.msra.mxu0 0.0
      %1918 = vmatprep.subr.mxu0 0.0
      %1919 = vmatpush1.msra.mxu0 0.0
      %1920 = vmatprep.subr.mxu0 0.0
      %1921 = vmatpush1.msra.mxu0 0.0
      %1922 = vmatprep.subr.mxu0 0.0
      %1923 = vmatpush1.msra.mxu0 0.0
      %1924 = vmatprep.subr.mxu0 0.0
      %1925 = vmatpush1.msra.mxu0 0.0
      %1926 = vmatprep.subr.mxu0 0.0
      %1927 = vmatpush1.msra.mxu0 0.0
      %1928 = vmatprep.subr.mxu0 0.0
      %1929 = vmatpush1.msra.mxu0 0.0
      %1930 = vmatprep.subr.mxu0 0.0
      %1931 = vmatpush1.msra.mxu0 %v1881
      %1932 = vmatprep.subr.mxu0 0.0
      %1933 = vmatpush1.msra.mxu0 %v1880
      %1934 = vmatprep.subr.mxu0 0.0
      %1935 = vmatpush2.msra.mxu0 0.0
      %1936 = vmatprep.subr.mxu0 0.0
      %1937 = vmatpush2.msra.mxu0 0.0
      %1938 = vmatprep.subr.mxu0 0.0
      %1939 = vmatpush2.msra.mxu0 0.0
      %1940 = vmatprep.subr.mxu0 0.0
      %1941 = vmatpush2.msra.mxu0 0.0
      %1942 = vmatprep.subr.mxu0 0.0
      %1943 = vmatpush2.msra.mxu0 0.0
      %1944 = vmatprep.subr.mxu0 0.0
      %1945 = vmatpush2.msra.mxu0 0.0
      %1946 = vmatprep.subr.mxu0 0.0
      %1947 = vmatpush2.msra.mxu0 0.0
      %1948 = vmatprep.subr.mxu0 0.0
      %1949 = vmatpush2.msra.mxu0 0.0
      %1950 = vmatprep.subr.mxu0 0.0
      %1951 = vmatpush2.msra.mxu0 0.0
      %1952 = vmatprep.subr.mxu0 0.0
      %1953 = vmatpush2.msra.mxu0 0.0
      %1954 = vmatprep.subr.mxu0 0.0
      %1955 = vmatpush2.msra.mxu0 0.0
      %1956 = vmatprep.subr.mxu0 0.0
      %1957 = vmatpush2.msra.mxu0 0.0
      %1958 = vmatprep.subr.mxu0 0.0
      %1959 = vmatpush2.msra.mxu0 0.0
      %1960 = vmatprep.subr.mxu0 0.0
      %1961 = vmatpush2.msra.mxu0 0.0
      %1962 = vmatprep.subr.mxu0 0.0
      %1963 = vmatpush2.msra.mxu0 0.0
      %1964 = vmatprep.subr.mxu0 0.0
      %1965 = vmatpush2.msra.mxu0 0.0
      %1966 = vmatprep.mubr.f32.mxu0 0.0
      %1967 = vmatmul.mubr.f32.gmra.mxu0 %v1897
      %v1968 = vpop.f32.mrf.mxu0
      %v1969 = vadd.f32 %v1889, %v1968
      %v1970 = vpop.f32.mrf.mxu0
      %1971 = vmatprep.mubr.f32.mxu0 0.0
      %1972 = vmatmul.mubr.f32.gmra.mxu0 %v1900
      %v1973 = vpop.f32.mrf.mxu0
      %v1974 = vadd.f32 %v1894, %v1973
      %v1975 = vpop.f32.mrf.mxu0
      %1976 = vdwg.mxu0
      %v1977 = vmax.f32 %v1969, 0.0
      %v1978 = vmax.f32 %v1974, 0.0
      %v1979 = vld [vmem:[%s11] sm:$0xff]
      %v1980 = vld [vmem:[%s11 + $0x8] sm:$0xff]
      %v1981 = vld [vmem:[%s11 + $0x10] sm:$0xff]
      %v1982 = vld [vmem:[%s11 + $0x18] sm:$0xff]
      %v1983 = vld [vmem:[%s11 + $0x20] sm:$0xff]
      %v1984 = vld [vmem:[%s11 + $0x28] sm:$0xff]
      %v1985 = vld [vmem:[%s11 + $0x30] sm:$0xff]
      %v1986 = vld [vmem:[%s11 + $0x38] sm:$0xff]
      %v1987 = vld [vmem:[%s11 + $0x40] sm:$0xff]
      %v1988 = vld [vmem:[%s11 + $0x48] sm:$0xff]
      %v1989 = vld [vmem:[%s11 + $0x50] sm:$0xff]
      %v1990 = vld [vmem:[%s11 + $0x58] sm:$0xff]
      %v1991 = vld [vmem:[%s11 + $0x60] sm:$0xff]
      %v1992 = vld [vmem:[%s11 + $0x68] sm:$0xff]
      %v1993 = vld [vmem:[%s11 + $0x70] sm:$0xff]
      %v1994 = vld [vmem:[%s11 + $0x78] sm:$0xff]
      %1995 = vmatprep.subr.mxu0 0.0
      %1996 = vmatpush1.msra.mxu0 %v1994
      %1997 = vmatprep.subr.mxu0 0.0
      %1998 = vmatpush1.msra.mxu0 %v1993
      %1999 = vmatprep.subr.mxu0 0.0
      %2000 = vmatpush1.msra.mxu0 %v1992
      %2001 = vmatprep.subr.mxu0 0.0
      %2002 = vmatpush1.msra.mxu0 %v1991
      %2003 = vmatprep.subr.mxu0 0.0
      %2004 = vmatpush1.msra.mxu0 %v1990
      %2005 = vmatprep.subr.mxu0 0.0
      %2006 = vmatpush1.msra.mxu0 %v1989
      %2007 = vmatprep.subr.mxu0 0.0
      %2008 = vmatpush1.msra.mxu0 %v1988
      %2009 = vmatprep.subr.mxu0 0.0
      %2010 = vmatpush1.msra.mxu0 %v1987
      %2011 = vmatprep.subr.mxu0 0.0
      %2012 = vmatpush1.msra.mxu0 %v1986
      %2013 = vmatprep.subr.mxu0 0.0
      %2014 = vmatpush1.msra.mxu0 %v1985
      %2015 = vmatprep.subr.mxu0 0.0
      %2016 = vmatpush1.msra.mxu0 %v1984
      %2017 = vmatprep.subr.mxu0 0.0
      %2018 = vmatpush1.msra.mxu0 %v1983
      %2019 = vmatprep.subr.mxu0 0.0
      %2020 = vmatpush1.msra.mxu0 %v1982
      %2021 = vmatprep.subr.mxu0 0.0
      %2022 = vmatpush1.msra.mxu0 %v1981
      %2023 = vmatprep.subr.mxu0 0.0
      %2024 = vmatpush1.msra.mxu0 %v1980
      %2025 = vmatprep.subr.mxu0 0.0
      %2026 = vmatpush1.msra.mxu0 %v1979
      %2027 = vmatprep.subr.mxu0 0.0
      %2028 = vmatpush2.msra.mxu0 0.0
      %2029 = vmatprep.subr.mxu0 0.0
      %2030 = vmatpush2.msra.mxu0 0.0
      %2031 = vmatprep.subr.mxu0 0.0
      %2032 = vmatpush2.msra.mxu0 0.0
      %2033 = vmatprep.subr.mxu0 0.0
      %2034 = vmatpush2.msra.mxu0 0.0
      %2035 = vmatprep.subr.mxu0 0.0
      %2036 = vmatpush2.msra.mxu0 0.0
      %2037 = vmatprep.subr.mxu0 0.0
      %2038 = vmatpush2.msra.mxu0 0.0
      %2039 = vmatprep.subr.mxu0 0.0
      %2040 = vmatpush2.msra.mxu0 0.0
      %2041 = vmatprep.subr.mxu0 0.0
      %2042 = vmatpush2.msra.mxu0 0.0
      %2043 = vmatprep.subr.mxu0 0.0
      %2044 = vmatpush2.msra.mxu0 0.0
      %2045 = vmatprep.subr.mxu0 0.0
      %2046 = vmatpush2.msra.mxu0 0.0
      %2047 = vmatprep.subr.mxu0 0.0
      %2048 = vmatpush2.msra.mxu0 0.0
      %2049 = vmatprep.subr.mxu0 0.0
      %2050 = vmatpush2.msra.mxu0 0.0
      %2051 = vmatprep.subr.mxu0 0.0
      %2052 = vmatpush2.msra.mxu0 0.0
      %2053 = vmatprep.subr.mxu0 0.0
      %2054 = vmatpush2.msra.mxu0 0.0
      %2055 = vmatprep.subr.mxu0 0.0
      %2056 = vmatpush2.msra.mxu0 0.0
      %2057 = vmatprep.subr.mxu0 0.0
      %2058 = vmatpush2.msra.mxu0 0.0
      %2059 = vmatprep.mubr.f32.mxu0 0.0
      %2060 = vmatmul.mubr.f32.gmra.mxu0 %v1977
      %v2061 = vpop.f32.mrf.mxu0
      %v2062 = vadd.f32 0.0, %v2061
      %v2063 = vpop.f32.mrf.mxu0
      %2064 = vmatprep.mubr.f32.mxu0 0.0
      %2065 = vmatmul.mubr.f32.gmra.mxu0 %v1978
      %v2066 = vpop.f32.mrf.mxu0
      %v2067 = vadd.f32 0.0, %v2066
      %v2068 = vpop.f32.mrf.mxu0
      %2069 = vdwg.mxu0
      %s2070 = scalar_lea.vmem %s11, 128
      %v2071 = vld [vmem:[%s2070] sm:$0xff]
      %v2072 = vld [vmem:[%s2070 + $0x8] sm:$0xff]
      %v2073 = vld [vmem:[%s2070 + $0x10] sm:$0xff]
      %v2074 = vld [vmem:[%s2070 + $0x18] sm:$0xff]
      %v2075 = vld [vmem:[%s2070 + $0x20] sm:$0xff]
      %v2076 = vld [vmem:[%s2070 + $0x28] sm:$0xff]
      %v2077 = vld [vmem:[%s2070 + $0x30] sm:$0xff]
      %v2078 = vld [vmem:[%s2070 + $0x38] sm:$0xff]
      %v2079 = vld [vmem:[%s2070 + $0x40] sm:$0xff]
      %v2080 = vld [vmem:[%s2070 + $0x48] sm:$0xff]
      %v2081 = vld [vmem:[%s2070 + $0x50] sm:$0xff]
      %v2082 = vld [vmem:[%s2070 + $0x58] sm:$0xff]
      %v2083 = vld [vmem:[%s2070 + $0x60] sm:$0xff]
      %v2084 = vld [vmem:[%s2070 + $0x68] sm:$0xff]
      %v2085 = vld [vmem:[%s2070 + $0x70] sm:$0xff]
      %v2086 = vld [vmem:[%s2070 + $0x78] sm:$0xff]
      %2087 = vmatprep.subr.mxu0 0.0
      %2088 = vmatpush1.msra.mxu0 %v2086
      %2089 = vmatprep.subr.mxu0 0.0
      %2090 = vmatpush1.msra.mxu0 %v2085
      %2091 = vmatprep.subr.mxu0 0.0
      %2092 = vmatpush1.msra.mxu0 %v2084
      %2093 = vmatprep.subr.mxu0 0.0
      %2094 = vmatpush1.msra.mxu0 %v2083
      %2095 = vmatprep.subr.mxu0 0.0
      %2096 = vmatpush1.msra.mxu0 %v2082
      %2097 = vmatprep.subr.mxu0 0.0
      %2098 = vmatpush1.msra.mxu0 %v2081
      %2099 = vmatprep.subr.mxu0 0.0
      %2100 = vmatpush1.msra.mxu0 %v2080
      %2101 = vmatprep.subr.mxu0 0.0
      %2102 = vmatpush1.msra.mxu0 %v2079
      %2103 = vmatprep.subr.mxu0 0.0
      %2104 = vmatpush1.msra.mxu0 %v2078
      %2105 = vmatprep.subr.mxu0 0.0
      %2106 = vmatpush1.msra.mxu0 %v2077
      %2107 = vmatprep.subr.mxu0 0.0
      %2108 = vmatpush1.msra.mxu0 %v2076
      %2109 = vmatprep.subr.mxu0 0.0
      %2110 = vmatpush1.msra.mxu0 %v2075
      %2111 = vmatprep.subr.mxu0 0.0
      %2112 = vmatpush1.msra.mxu0 %v2074
      %2113 = vmatprep.subr.mxu0 0.0
      %2114 = vmatpush1.msra.mxu0 %v2073
      %2115 = vmatprep.subr.mxu0 0.0
      %2116 = vmatpush1.msra.mxu0 %v2072
      %2117 = vmatprep.subr.mxu0 0.0
      %2118 = vmatpush1.msra.mxu0 %v2071
      %2119 = vmatprep.subr.mxu0 0.0
      %2120 = vmatpush2.msra.mxu0 0.0
      %2121 = vmatprep.subr.mxu0 0.0
      %2122 = vmatpush2.msra.mxu0 0.0
      %2123 = vmatprep.subr.mxu0 0.0
      %2124 = vmatpush2.msra.mxu0 0.0
      %2125 = vmatprep.subr.mxu0 0.0
      %2126 = vmatpush2.msra.mxu0 0.0
      %2127 = vmatprep.subr.mxu0 0.0
      %2128 = vmatpush2.msra.mxu0 0.0
      %2129 = vmatprep.subr.mxu0 0.0
      %2130 = vmatpush2.msra.mxu0 0.0
      %2131 = vmatprep.subr.mxu0 0.0
      %2132 = vmatpush2.msra.mxu0 0.0
      %2133 = vmatprep.subr.mxu0 0.0
      %2134 = vmatpush2.msra.mxu0 0.0
      %2135 = vmatprep.subr.mxu0 0.0
      %2136 = vmatpush2.msra.mxu0 0.0
      %2137 = vmatprep.subr.mxu0 0.0
      %2138 = vmatpush2.msra.mxu0 0.0
      %2139 = vmatprep.subr.mxu0 0.0
      %2140 = vmatpush2.msra.mxu0 0.0
      %2141 = vmatprep.subr.mxu0 0.0
      %2142 = vmatpush2.msra.mxu0 0.0
      %2143 = vmatprep.subr.mxu0 0.0
      %2144 = vmatpush2.msra.mxu0 0.0
      %2145 = vmatprep.subr.mxu0 0.0
      %2146 = vmatpush2.msra.mxu0 0.0
      %2147 = vmatprep.subr.mxu0 0.0
      %2148 = vmatpush2.msra.mxu0 0.0
      %2149 = vmatprep.subr.mxu0 0.0
      %2150 = vmatpush2.msra.mxu0 0.0
      %2151 = vmatprep.mubr.f32.mxu0 0.0
      %2152 = vmatmul.mubr.f32.gmra.mxu0 %v1977
      %v2153 = vpop.f32.mrf.mxu0
      %v2154 = vadd.f32 0.0, %v2153
      %v2155 = vpop.f32.mrf.mxu0
      %2156 = vmatprep.mubr.f32.mxu0 0.0
      %2157 = vmatmul.mubr.f32.gmra.mxu0 %v1978
      %v2158 = vpop.f32.mrf.mxu0
      %v2159 = vadd.f32 0.0, %v2158
      %v2160 = vpop.f32.mrf.mxu0
      %2161 = vdwg.mxu0
      %s2162 = scalar_lea.vmem %s11, 256
      %v2163 = vld [vmem:[%s2162] sm:$0xff]
      %v2164 = vld [vmem:[%s2162 + $0x8] sm:$0xff]
      %v2165 = vld [vmem:[%s2162 + $0x10] sm:$0xff]
      %v2166 = vld [vmem:[%s2162 + $0x18] sm:$0xff]
      %v2167 = vld [vmem:[%s2162 + $0x20] sm:$0xff]
      %v2168 = vld [vmem:[%s2162 + $0x28] sm:$0xff]
      %v2169 = vld [vmem:[%s2162 + $0x30] sm:$0xff]
      %v2170 = vld [vmem:[%s2162 + $0x38] sm:$0xff]
      %v2171 = vld [vmem:[%s2162 + $0x40] sm:$0xff]
      %v2172 = vld [vmem:[%s2162 + $0x48] sm:$0xff]
      %v2173 = vld [vmem:[%s2162 + $0x50] sm:$0xff]
      %v2174 = vld [vmem:[%s2162 + $0x58] sm:$0xff]
      %v2175 = vld [vmem:[%s2162 + $0x60] sm:$0xff]
      %v2176 = vld [vmem:[%s2162 + $0x68] sm:$0xff]
      %v2177 = vld [vmem:[%s2162 + $0x70] sm:$0xff]
      %v2178 = vld [vmem:[%s2162 + $0x78] sm:$0xff]
      %2179 = vmatprep.subr.mxu0 0.0
      %2180 = vmatpush1.msra.mxu0 %v2178
      %2181 = vmatprep.subr.mxu0 0.0
      %2182 = vmatpush1.msra.mxu0 %v2177
      %2183 = vmatprep.subr.mxu0 0.0
      %2184 = vmatpush1.msra.mxu0 %v2176
      %2185 = vmatprep.subr.mxu0 0.0
      %2186 = vmatpush1.msra.mxu0 %v2175
      %2187 = vmatprep.subr.mxu0 0.0
      %2188 = vmatpush1.msra.mxu0 %v2174
      %2189 = vmatprep.subr.mxu0 0.0
      %2190 = vmatpush1.msra.mxu0 %v2173
      %2191 = vmatprep.subr.mxu0 0.0
      %2192 = vmatpush1.msra.mxu0 %v2172
      %2193 = vmatprep.subr.mxu0 0.0
      %2194 = vmatpush1.msra.mxu0 %v2171
      %2195 = vmatprep.subr.mxu0 0.0
      %2196 = vmatpush1.msra.mxu0 %v2170
      %2197 = vmatprep.subr.mxu0 0.0
      %2198 = vmatpush1.msra.mxu0 %v2169
      %2199 = vmatprep.subr.mxu0 0.0
      %2200 = vmatpush1.msra.mxu0 %v2168
      %2201 = vmatprep.subr.mxu0 0.0
      %2202 = vmatpush1.msra.mxu0 %v2167
      %2203 = vmatprep.subr.mxu0 0.0
      %2204 = vmatpush1.msra.mxu0 %v2166
      %2205 = vmatprep.subr.mxu0 0.0
      %2206 = vmatpush1.msra.mxu0 %v2165
      %2207 = vmatprep.subr.mxu0 0.0
      %2208 = vmatpush1.msra.mxu0 %v2164
      %2209 = vmatprep.subr.mxu0 0.0
      %2210 = vmatpush1.msra.mxu0 %v2163
      %2211 = vmatprep.subr.mxu0 0.0
      %2212 = vmatpush2.msra.mxu0 0.0
      %2213 = vmatprep.subr.mxu0 0.0
      %2214 = vmatpush2.msra.mxu0 0.0
      %2215 = vmatprep.subr.mxu0 0.0
      %2216 = vmatpush2.msra.mxu0 0.0
      %2217 = vmatprep.subr.mxu0 0.0
      %2218 = vmatpush2.msra.mxu0 0.0
      %2219 = vmatprep.subr.mxu0 0.0
      %2220 = vmatpush2.msra.mxu0 0.0
      %2221 = vmatprep.subr.mxu0 0.0
      %2222 = vmatpush2.msra.mxu0 0.0
      %2223 = vmatprep.subr.mxu0 0.0
      %2224 = vmatpush2.msra.mxu0 0.0
      %2225 = vmatprep.subr.mxu0 0.0
      %2226 = vmatpush2.msra.mxu0 0.0
      %2227 = vmatprep.subr.mxu0 0.0
      %2228 = vmatpush2.msra.mxu0 0.0
      %2229 = vmatprep.subr.mxu0 0.0
      %2230 = vmatpush2.msra.mxu0 0.0
      %2231 = vmatprep.subr.mxu0 0.0
      %2232 = vmatpush2.msra.mxu0 0.0
      %2233 = vmatprep.subr.mxu0 0.0
      %2234 = vmatpush2.msra.mxu0 0.0
      %2235 = vmatprep.subr.mxu0 0.0
      %2236 = vmatpush2.msra.mxu0 0.0
      %2237 = vmatprep.subr.mxu0 0.0
      %2238 = vmatpush2.msra.mxu0 0.0
      %2239 = vmatprep.subr.mxu0 0.0
      %2240 = vmatpush2.msra.mxu0 0.0
      %2241 = vmatprep.subr.mxu0 0.0
      %2242 = vmatpush2.msra.mxu0 0.0
      %2243 = vmatprep.mubr.f32.mxu0 0.0
      %2244 = vmatmul.mubr.f32.gmra.mxu0 %v1977
      %v2245 = vpop.f32.mrf.mxu0
      %v2246 = vadd.f32 0.0, %v2245
      %v2247 = vpop.f32.mrf.mxu0
      %2248 = vmatprep.mubr.f32.mxu0 0.0
      %2249 = vmatmul.mubr.f32.gmra.mxu0 %v1978
      %v2250 = vpop.f32.mrf.mxu0
      %v2251 = vadd.f32 0.0, %v2250
      %v2252 = vpop.f32.mrf.mxu0
      %2253 = vdwg.mxu0
      %s2254 = scalar_lea.vmem %s11, 384
      %v2255 = vld [vmem:[%s2254] sm:$0xff]
      %v2256 = vld [vmem:[%s2254 + $0x8] sm:$0xff]
      %v2257 = vld [vmem:[%s2254 + $0x10] sm:$0xff]
      %v2258 = vld [vmem:[%s2254 + $0x18] sm:$0xff]
      %v2259 = vld [vmem:[%s2254 + $0x20] sm:$0xff]
      %v2260 = vld [vmem:[%s2254 + $0x28] sm:$0xff]
      %v2261 = vld [vmem:[%s2254 + $0x30] sm:$0xff]
      %v2262 = vld [vmem:[%s2254 + $0x38] sm:$0xff]
      %v2263 = vld [vmem:[%s2254 + $0x40] sm:$0xff]
      %v2264 = vld [vmem:[%s2254 + $0x48] sm:$0xff]
      %v2265 = vld [vmem:[%s2254 + $0x50] sm:$0xff]
      %v2266 = vld [vmem:[%s2254 + $0x58] sm:$0xff]
      %v2267 = vld [vmem:[%s2254 + $0x60] sm:$0xff]
      %v2268 = vld [vmem:[%s2254 + $0x68] sm:$0xff]
      %v2269 = vld [vmem:[%s2254 + $0x70] sm:$0xff]
      %v2270 = vld [vmem:[%s2254 + $0x78] sm:$0xff]
      %2271 = vmatprep.subr.mxu0 0.0
      %2272 = vmatpush1.msra.mxu0 %v2270
      %2273 = vmatprep.subr.mxu0 0.0
      %2274 = vmatpush1.msra.mxu0 %v2269
      %2275 = vmatprep.subr.mxu0 0.0
      %2276 = vmatpush1.msra.mxu0 %v2268
      %2277 = vmatprep.subr.mxu0 0.0
      %2278 = vmatpush1.msra.mxu0 %v2267
      %2279 = vmatprep.subr.mxu0 0.0
      %2280 = vmatpush1.msra.mxu0 %v2266
      %2281 = vmatprep.subr.mxu0 0.0
      %2282 = vmatpush1.msra.mxu0 %v2265
      %2283 = vmatprep.subr.mxu0 0.0
      %2284 = vmatpush1.msra.mxu0 %v2264
      %2285 = vmatprep.subr.mxu0 0.0
      %2286 = vmatpush1.msra.mxu0 %v2263
      %2287 = vmatprep.subr.mxu0 0.0
      %2288 = vmatpush1.msra.mxu0 %v2262
      %2289 = vmatprep.subr.mxu0 0.0
      %2290 = vmatpush1.msra.mxu0 %v2261
      %2291 = vmatprep.subr.mxu0 0.0
      %2292 = vmatpush1.msra.mxu0 %v2260
      %2293 = vmatprep.subr.mxu0 0.0
      %2294 = vmatpush1.msra.mxu0 %v2259
      %2295 = vmatprep.subr.mxu0 0.0
      %2296 = vmatpush1.msra.mxu0 %v2258
      %2297 = vmatprep.subr.mxu0 0.0
      %2298 = vmatpush1.msra.mxu0 %v2257
      %2299 = vmatprep.subr.mxu0 0.0
      %2300 = vmatpush1.msra.mxu0 %v2256
      %2301 = vmatprep.subr.mxu0 0.0
      %2302 = vmatpush1.msra.mxu0 %v2255
      %2303 = vmatprep.subr.mxu0 0.0
      %2304 = vmatpush2.msra.mxu0 0.0
      %2305 = vmatprep.subr.mxu0 0.0
      %2306 = vmatpush2.msra.mxu0 0.0
      %2307 = vmatprep.subr.mxu0 0.0
      %2308 = vmatpush2.msra.mxu0 0.0
      %2309 = vmatprep.subr.mxu0 0.0
      %2310 = vmatpush2.msra.mxu0 0.0
      %2311 = vmatprep.subr.mxu0 0.0
      %2312 = vmatpush2.msra.mxu0 0.0
      %2313 = vmatprep.subr.mxu0 0.0
      %2314 = vmatpush2.msra.mxu0 0.0
      %2315 = vmatprep.subr.mxu0 0.0
      %2316 = vmatpush2.msra.mxu0 0.0
      %2317 = vmatprep.subr.mxu0 0.0
      %2318 = vmatpush2.msra.mxu0 0.0
      %2319 = vmatprep.subr.mxu0 0.0
      %2320 = vmatpush2.msra.mxu0 0.0
      %2321 = vmatprep.subr.mxu0 0.0
      %2322 = vmatpush2.msra.mxu0 0.0
      %2323 = vmatprep.subr.mxu0 0.0
      %2324 = vmatpush2.msra.mxu0 0.0
      %2325 = vmatprep.subr.mxu0 0.0
      %2326 = vmatpush2.msra.mxu0 0.0
      %2327 = vmatprep.subr.mxu0 0.0
      %2328 = vmatpush2.msra.mxu0 0.0
      %2329 = vmatprep.subr.mxu0 0.0
      %2330 = vmatpush2.msra.mxu0 0.0
      %2331 = vmatprep.subr.mxu0 0.0
      %2332 = vmatpush2.msra.mxu0 0.0
      %2333 = vmatprep.subr.mxu0 0.0
      %2334 = vmatpush2.msra.mxu0 0.0
      %2335 = vmatprep.mubr.f32.mxu0 0.0
      %2336 = vmatmul.mubr.f32.gmra.mxu0 %v1977
      %v2337 = vpop.f32.mrf.mxu0
      %v2338 = vadd.f32 0.0, %v2337
      %v2339 = vpop.f32.mrf.mxu0
      %2340 = vmatprep.mubr.f32.mxu0 0.0
      %2341 = vmatmul.mubr.f32.gmra.mxu0 %v1978
      %v2342 = vpop.f32.mrf.mxu0
      %v2343 = vadd.f32 0.0, %v2342
      %v2344 = vpop.f32.mrf.mxu0
      %2345 = vdwg.mxu0
      %s2346 = scalar_lea.vmem %s11, 512
      %v2347 = vld [vmem:[%s2346] sm:$0xff]
      %v2348 = vld [vmem:[%s2346 + $0x8] sm:$0xff]
      %v2349 = vld [vmem:[%s2346 + $0x10] sm:$0xff]
      %v2350 = vld [vmem:[%s2346 + $0x18] sm:$0xff]
      %v2351 = vld [vmem:[%s2346 + $0x20] sm:$0xff]
      %v2352 = vld [vmem:[%s2346 + $0x28] sm:$0xff]
      %v2353 = vld [vmem:[%s2346 + $0x30] sm:$0xff]
      %v2354 = vld [vmem:[%s2346 + $0x38] sm:$0xff]
      %v2355 = vld [vmem:[%s2346 + $0x40] sm:$0xff]
      %v2356 = vld [vmem:[%s2346 + $0x48] sm:$0xff]
      %v2357 = vld [vmem:[%s2346 + $0x50] sm:$0xff]
      %v2358 = vld [vmem:[%s2346 + $0x58] sm:$0xff]
      %v2359 = vld [vmem:[%s2346 + $0x60] sm:$0xff]
      %v2360 = vld [vmem:[%s2346 + $0x68] sm:$0xff]
      %v2361 = vld [vmem:[%s2346 + $0x70] sm:$0xff]
      %v2362 = vld [vmem:[%s2346 + $0x78] sm:$0xff]
      %2363 = vmatprep.subr.mxu0 0.0
      %2364 = vmatpush1.msra.mxu0 %v2362
      %2365 = vmatprep.subr.mxu0 0.0
      %2366 = vmatpush1.msra.mxu0 %v2361
      %2367 = vmatprep.subr.mxu0 0.0
      %2368 = vmatpush1.msra.mxu0 %v2360
      %2369 = vmatprep.subr.mxu0 0.0
      %2370 = vmatpush1.msra.mxu0 %v2359
      %2371 = vmatprep.subr.mxu0 0.0
      %2372 = vmatpush1.msra.mxu0 %v2358
      %2373 = vmatprep.subr.mxu0 0.0
      %2374 = vmatpush1.msra.mxu0 %v2357
      %2375 = vmatprep.subr.mxu0 0.0
      %2376 = vmatpush1.msra.mxu0 %v2356
      %2377 = vmatprep.subr.mxu0 0.0
      %2378 = vmatpush1.msra.mxu0 %v2355
      %2379 = vmatprep.subr.mxu0 0.0
      %2380 = vmatpush1.msra.mxu0 %v2354
      %2381 = vmatprep.subr.mxu0 0.0
      %2382 = vmatpush1.msra.mxu0 %v2353
      %2383 = vmatprep.subr.mxu0 0.0
      %2384 = vmatpush1.msra.mxu0 %v2352
      %2385 = vmatprep.subr.mxu0 0.0
      %2386 = vmatpush1.msra.mxu0 %v2351
      %2387 = vmatprep.subr.mxu0 0.0
      %2388 = vmatpush1.msra.mxu0 %v2350
      %2389 = vmatprep.subr.mxu0 0.0
      %2390 = vmatpush1.msra.mxu0 %v2349
      %2391 = vmatprep.subr.mxu0 0.0
      %2392 = vmatpush1.msra.mxu0 %v2348
      %2393 = vmatprep.subr.mxu0 0.0
      %2394 = vmatpush1.msra.mxu0 %v2347
      %2395 = vmatprep.subr.mxu0 0.0
      %2396 = vmatpush2.msra.mxu0 0.0
      %2397 = vmatprep.subr.mxu0 0.0
      %2398 = vmatpush2.msra.mxu0 0.0
      %2399 = vmatprep.subr.mxu0 0.0
      %2400 = vmatpush2.msra.mxu0 0.0
      %2401 = vmatprep.subr.mxu0 0.0
      %2402 = vmatpush2.msra.mxu0 0.0
      %2403 = vmatprep.subr.mxu0 0.0
      %2404 = vmatpush2.msra.mxu0 0.0
      %2405 = vmatprep.subr.mxu0 0.0
      %2406 = vmatpush2.msra.mxu0 0.0
      %2407 = vmatprep.subr.mxu0 0.0
      %2408 = vmatpush2.msra.mxu0 0.0
      %2409 = vmatprep.subr.mxu0 0.0
      %2410 = vmatpush2.msra.mxu0 0.0
      %2411 = vmatprep.subr.mxu0 0.0
      %2412 = vmatpush2.msra.mxu0 0.0
      %2413 = vmatprep.subr.mxu0 0.0
      %2414 = vmatpush2.msra.mxu0 0.0
      %2415 = vmatprep.subr.mxu0 0.0
      %2416 = vmatpush2.msra.mxu0 0.0
      %2417 = vmatprep.subr.mxu0 0.0
      %2418 = vmatpush2.msra.mxu0 0.0
      %2419 = vmatprep.subr.mxu0 0.0
      %2420 = vmatpush2.msra.mxu0 0.0
      %2421 = vmatprep.subr.mxu0 0.0
      %2422 = vmatpush2.msra.mxu0 0.0
      %2423 = vmatprep.subr.mxu0 0.0
      %2424 = vmatpush2.msra.mxu0 0.0
      %2425 = vmatprep.subr.mxu0 0.0
      %2426 = vmatpush2.msra.mxu0 0.0
      %2427 = vmatprep.mubr.f32.mxu0 0.0
      %2428 = vmatmul.mubr.f32.gmra.mxu0 %v1977
      %v2429 = vpop.f32.mrf.mxu0
      %v2430 = vadd.f32 0.0, %v2429
      %v2431 = vpop.f32.mrf.mxu0
      %2432 = vmatprep.mubr.f32.mxu0 0.0
      %2433 = vmatmul.mubr.f32.gmra.mxu0 %v1978
      %v2434 = vpop.f32.mrf.mxu0
      %v2435 = vadd.f32 0.0, %v2434
      %v2436 = vpop.f32.mrf.mxu0
      %2437 = vdwg.mxu0
      %s2438 = scalar_lea.vmem %s11, 640
      %v2439 = vld [vmem:[%s2438] sm:$0xff]
      %v2440 = vld [vmem:[%s2438 + $0x8] sm:$0xff]
      %v2441 = vld [vmem:[%s2438 + $0x10] sm:$0xff]
      %v2442 = vld [vmem:[%s2438 + $0x18] sm:$0xff]
      %v2443 = vld [vmem:[%s2438 + $0x20] sm:$0xff]
      %v2444 = vld [vmem:[%s2438 + $0x28] sm:$0xff]
      %v2445 = vld [vmem:[%s2438 + $0x30] sm:$0xff]
      %v2446 = vld [vmem:[%s2438 + $0x38] sm:$0xff]
      %v2447 = vld [vmem:[%s2438 + $0x40] sm:$0xff]
      %v2448 = vld [vmem:[%s2438 + $0x48] sm:$0xff]
      %v2449 = vld [vmem:[%s2438 + $0x50] sm:$0xff]
      %v2450 = vld [vmem:[%s2438 + $0x58] sm:$0xff]
      %v2451 = vld [vmem:[%s2438 + $0x60] sm:$0xff]
      %v2452 = vld [vmem:[%s2438 + $0x68] sm:$0xff]
      %v2453 = vld [vmem:[%s2438 + $0x70] sm:$0xff]
      %v2454 = vld [vmem:[%s2438 + $0x78] sm:$0xff]
      %2455 = vmatprep.subr.mxu0 0.0
      %2456 = vmatpush1.msra.mxu0 %v2454
      %2457 = vmatprep.subr.mxu0 0.0
      %2458 = vmatpush1.msra.mxu0 %v2453
      %2459 = vmatprep.subr.mxu0 0.0
      %2460 = vmatpush1.msra.mxu0 %v2452
      %2461 = vmatprep.subr.mxu0 0.0
      %2462 = vmatpush1.msra.mxu0 %v2451
      %2463 = vmatprep.subr.mxu0 0.0
      %2464 = vmatpush1.msra.mxu0 %v2450
      %2465 = vmatprep.subr.mxu0 0.0
      %2466 = vmatpush1.msra.mxu0 %v2449
      %2467 = vmatprep.subr.mxu0 0.0
      %2468 = vmatpush1.msra.mxu0 %v2448
      %2469 = vmatprep.subr.mxu0 0.0
      %2470 = vmatpush1.msra.mxu0 %v2447
      %2471 = vmatprep.subr.mxu0 0.0
      %2472 = vmatpush1.msra.mxu0 %v2446
      %2473 = vmatprep.subr.mxu0 0.0
      %2474 = vmatpush1.msra.mxu0 %v2445
      %2475 = vmatprep.subr.mxu0 0.0
      %2476 = vmatpush1.msra.mxu0 %v2444
      %2477 = vmatprep.subr.mxu0 0.0
      %2478 = vmatpush1.msra.mxu0 %v2443
      %2479 = vmatprep.subr.mxu0 0.0
      %2480 = vmatpush1.msra.mxu0 %v2442
      %2481 = vmatprep.subr.mxu0 0.0
      %2482 = vmatpush1.msra.mxu0 %v2441
      %2483 = vmatprep.subr.mxu0 0.0
      %2484 = vmatpush1.msra.mxu0 %v2440
      %2485 = vmatprep.subr.mxu0 0.0
      %2486 = vmatpush1.msra.mxu0 %v2439
      %2487 = vmatprep.subr.mxu0 0.0
      %2488 = vmatpush2.msra.mxu0 0.0
      %2489 = vmatprep.subr.mxu0 0.0
      %2490 = vmatpush2.msra.mxu0 0.0
      %2491 = vmatprep.subr.mxu0 0.0
      %2492 = vmatpush2.msra.mxu0 0.0
      %2493 = vmatprep.subr.mxu0 0.0
      %2494 = vmatpush2.msra.mxu0 0.0
      %2495 = vmatprep.subr.mxu0 0.0
      %2496 = vmatpush2.msra.mxu0 0.0
      %2497 = vmatprep.subr.mxu0 0.0
      %2498 = vmatpush2.msra.mxu0 0.0
      %2499 = vmatprep.subr.mxu0 0.0
      %2500 = vmatpush2.msra.mxu0 0.0
      %2501 = vmatprep.subr.mxu0 0.0
      %2502 = vmatpush2.msra.mxu0 0.0
      %2503 = vmatprep.subr.mxu0 0.0
      %2504 = vmatpush2.msra.mxu0 0.0
      %2505 = vmatprep.subr.mxu0 0.0
      %2506 = vmatpush2.msra.mxu0 0.0
      %2507 = vmatprep.subr.mxu0 0.0
      %2508 = vmatpush2.msra.mxu0 0.0
      %2509 = vmatprep.subr.mxu0 0.0
      %2510 = vmatpush2.msra.mxu0 0.0
      %2511 = vmatprep.subr.mxu0 0.0
      %2512 = vmatpush2.msra.mxu0 0.0
      %2513 = vmatprep.subr.mxu0 0.0
      %2514 = vmatpush2.msra.mxu0 0.0
      %2515 = vmatprep.subr.mxu0 0.0
      %2516 = vmatpush2.msra.mxu0 0.0
      %2517 = vmatprep.subr.mxu0 0.0
      %2518 = vmatpush2.msra.mxu0 0.0
      %2519 = vmatprep.mubr.f32.mxu0 0.0
      %2520 = vmatmul.mubr.f32.gmra.mxu0 %v1977
      %v2521 = vpop.f32.mrf.mxu0
      %v2522 = vadd.f32 0.0, %v2521
      %v2523 = vpop.f32.mrf.mxu0
      %2524 = vmatprep.mubr.f32.mxu0 0.0
      %2525 = vmatmul.mubr.f32.gmra.mxu0 %v1978
      %v2526 = vpop.f32.mrf.mxu0
      %v2527 = vadd.f32 0.0, %v2526
      %v2528 = vpop.f32.mrf.mxu0
      %2529 = vdwg.mxu0
      %v2530 = vld [vmem:[%s9] sm:$0xff]
      %v2531 = vld [vmem:[%s9 + $0x8] sm:$0xff]
      %v2532 = vld [vmem:[%s10] sm:$0xff]
      %v2533 = vld [vmem:[%s10 + $0x8] sm:$0xff]
      %vm2534 = vcmask 97280
      %v2536 = vsel %vm2534, %v2532, 0
      %v2539 = vsel %vm2534, %v2533, 0
      %v2542 = vsel %vm737, %v2067, 0
      %2544 = vmatprep.subr.mxu0 0.0
      %2545 = vmatpush1.msra.mxu0 0.0
      %2546 = vmatprep.subr.mxu0 0.0
      %2547 = vmatpush1.msra.mxu0 0.0
      %2548 = vmatprep.subr.mxu0 0.0
      %2549 = vmatpush1.msra.mxu0 0.0
      %2550 = vmatprep.subr.mxu0 0.0
      %2551 = vmatpush1.msra.mxu0 0.0
      %2552 = vmatprep.subr.mxu0 0.0
      %2553 = vmatpush1.msra.mxu0 0.0
      %2554 = vmatprep.subr.mxu0 0.0
      %2555 = vmatpush1.msra.mxu0 0.0
      %2556 = vmatprep.subr.mxu0 0.0
      %2557 = vmatpush1.msra.mxu0 0.0
      %2558 = vmatprep.subr.mxu0 0.0
      %2559 = vmatpush1.msra.mxu0 0.0
      %2560 = vmatprep.subr.mxu0 0.0
      %2561 = vmatpush1.msra.mxu0 0.0
      %2562 = vmatprep.subr.mxu0 0.0
      %2563 = vmatpush1.msra.mxu0 0.0
      %2564 = vmatprep.subr.mxu0 0.0
      %2565 = vmatpush1.msra.mxu0 0.0
      %2566 = vmatprep.subr.mxu0 0.0
      %2567 = vmatpush1.msra.mxu0 0.0
      %2568 = vmatprep.subr.mxu0 0.0
      %2569 = vmatpush1.msra.mxu0 0.0
      %2570 = vmatprep.subr.mxu0 0.0
      %2571 = vmatpush1.msra.mxu0 0.0
      %2572 = vmatprep.subr.mxu0 0.0
      %2573 = vmatpush1.msra.mxu0 %v2542
      %2574 = vmatprep.subr.mxu0 0.0
      %2575 = vmatpush1.msra.mxu0 %v2062
      %2576 = vmatprep.subr.mxu0 0.0
      %2577 = vmatpush2.msra.mxu0 0.0
      %2578 = vmatprep.subr.mxu0 0.0
      %2579 = vmatpush2.msra.mxu0 0.0
      %2580 = vmatprep.subr.mxu0 0.0
      %2581 = vmatpush2.msra.mxu0 0.0
      %2582 = vmatprep.subr.mxu0 0.0
      %2583 = vmatpush2.msra.mxu0 0.0
      %2584 = vmatprep.subr.mxu0 0.0
      %2585 = vmatpush2.msra.mxu0 0.0
      %2586 = vmatprep.subr.mxu0 0.0
      %2587 = vmatpush2.msra.mxu0 0.0
      %2588 = vmatprep.subr.mxu0 0.0
      %2589 = vmatpush2.msra.mxu0 0.0
      %2590 = vmatprep.subr.mxu0 0.0
      %2591 = vmatpush2.msra.mxu0 0.0
      %2592 = vmatprep.subr.mxu0 0.0
      %2593 = vmatpush2.msra.mxu0 0.0
      %2594 = vmatprep.subr.mxu0 0.0
      %2595 = vmatpush2.msra.mxu0 0.0
      %2596 = vmatprep.subr.mxu0 0.0
      %2597 = vmatpush2.msra.mxu0 0.0
      %2598 = vmatprep.subr.mxu0 0.0
      %2599 = vmatpush2.msra.mxu0 0.0
      %2600 = vmatprep.subr.mxu0 0.0
      %2601 = vmatpush2.msra.mxu0 0.0
      %2602 = vmatprep.subr.mxu0 0.0
      %2603 = vmatpush2.msra.mxu0 0.0
      %2604 = vmatprep.subr.mxu0 0.0
      %2605 = vmatpush2.msra.mxu0 0.0
      %2606 = vmatprep.subr.mxu0 0.0
      %2607 = vmatpush2.msra.mxu0 0.0
      %2608 = vmatprep.mubr.f32.mxu0 0.0
      %2609 = vmatmul.mubr.f32.gmra.mxu0 %v2536
      %v2610 = vpop.f32.mrf.mxu0
      %v2611 = vadd.f32 0.0, %v2610
      %v2612 = vpop.f32.mrf.mxu0
      %2613 = vmatprep.mubr.f32.mxu0 0.0
      %2614 = vmatmul.mubr.f32.gmra.mxu0 %v2539
      %v2615 = vpop.f32.mrf.mxu0
      %v2616 = vadd.f32 0.0, %v2615
      %v2617 = vpop.f32.mrf.mxu0
      %2618 = vdwg.mxu0
      %v2620 = vsel %vm477, %v2530, 0
      %v2623 = vsel %vm477, %v2531, 0
      %2625 = vmatprep.subr.mxu0 0.0
      %2626 = vmatpush1.msra.mxu0 0.0
      %2627 = vmatprep.subr.mxu0 0.0
      %2628 = vmatpush1.msra.mxu0 0.0
      %2629 = vmatprep.subr.mxu0 0.0
      %2630 = vmatpush1.msra.mxu0 0.0
      %2631 = vmatprep.subr.mxu0 0.0
      %2632 = vmatpush1.msra.mxu0 0.0
      %2633 = vmatprep.subr.mxu0 0.0
      %2634 = vmatpush1.msra.mxu0 0.0
      %2635 = vmatprep.subr.mxu0 0.0
      %2636 = vmatpush1.msra.mxu0 0.0
      %2637 = vmatprep.subr.mxu0 0.0
      %2638 = vmatpush1.msra.mxu0 0.0
      %2639 = vmatprep.subr.mxu0 0.0
      %2640 = vmatpush1.msra.mxu0 0.0
      %2641 = vmatprep.subr.mxu0 0.0
      %2642 = vmatpush1.msra.mxu0 0.0
      %2643 = vmatprep.subr.mxu0 0.0
      %2644 = vmatpush1.msra.mxu0 0.0
      %2645 = vmatprep.subr.mxu0 0.0
      %2646 = vmatpush1.msra.mxu0 0.0
      %2647 = vmatprep.subr.mxu0 0.0
      %2648 = vmatpush1.msra.mxu0 0.0
      %2649 = vmatprep.subr.mxu0 0.0
      %2650 = vmatpush1.msra.mxu0 0.0
      %2651 = vmatprep.subr.mxu0 0.0
      %2652 = vmatpush1.msra.mxu0 0.0
      %2653 = vmatprep.subr.mxu0 0.0
      %2654 = vmatpush1.msra.mxu0 %v1881
      %2655 = vmatprep.subr.mxu0 0.0
      %2656 = vmatpush1.msra.mxu0 %v1880
      %2657 = vmatprep.subr.mxu0 0.0
      %2658 = vmatpush2.msra.mxu0 0.0
      %2659 = vmatprep.subr.mxu0 0.0
      %2660 = vmatpush2.msra.mxu0 0.0
      %2661 = vmatprep.subr.mxu0 0.0
      %2662 = vmatpush2.msra.mxu0 0.0
      %2663 = vmatprep.subr.mxu0 0.0
      %2664 = vmatpush2.msra.mxu0 0.0
      %2665 = vmatprep.subr.mxu0 0.0
      %2666 = vmatpush2.msra.mxu0 0.0
      %2667 = vmatprep.subr.mxu0 0.0
      %2668 = vmatpush2.msra.mxu0 0.0
      %2669 = vmatprep.subr.mxu0 0.0
      %2670 = vmatpush2.msra.mxu0 0.0
      %2671 = vmatprep.subr.mxu0 0.0
      %2672 = vmatpush2.msra.mxu0 0.0
      %2673 = vmatprep.subr.mxu0 0.0
      %2674 = vmatpush2.msra.mxu0 0.0
      %2675 = vmatprep.subr.mxu0 0.0
      %2676 = vmatpush2.msra.mxu0 0.0
      %2677 = vmatprep.subr.mxu0 0.0
      %2678 = vmatpush2.msra.mxu0 0.0
      %2679 = vmatprep.subr.mxu0 0.0
      %2680 = vmatpush2.msra.mxu0 0.0
      %2681 = vmatprep.subr.mxu0 0.0
      %2682 = vmatpush2.msra.mxu0 0.0
      %2683 = vmatprep.subr.mxu0 0.0
      %2684 = vmatpush2.msra.mxu0 0.0
      %2685 = vmatprep.subr.mxu0 0.0
      %2686 = vmatpush2.msra.mxu0 0.0
      %2687 = vmatprep.subr.mxu0 0.0
      %2688 = vmatpush2.msra.mxu0 0.0
      %2689 = vmatprep.mubr.f32.mxu0 0.0
      %2690 = vmatmul.mubr.f32.gmra.mxu0 %v2620
      %v2691 = vpop.f32.mrf.mxu0
      %v2692 = vadd.f32 %v2611, %v2691
      %v2693 = vpop.f32.mrf.mxu0
      %2694 = vmatprep.mubr.f32.mxu0 0.0
      %2695 = vmatmul.mubr.f32.gmra.mxu0 %v2623
      %v2696 = vpop.f32.mrf.mxu0
      %v2697 = vadd.f32 %v2616, %v2696
      %v2698 = vpop.f32.mrf.mxu0
      %2699 = vdwg.mxu0
      %s2700 = scalar_lea.vmem %s10, 16
      %v2701 = vld [vmem:[%s2700] sm:$0xff]
      %v2702 = vld [vmem:[%s2700 + $0x8] sm:$0xff]
      %v2704 = vsel %vm2534, %v2701, 0
      %v2707 = vsel %vm2534, %v2702, 0
      %v2710 = vsel %vm737, %v2159, 0
      %2712 = vmatprep.subr.mxu0 0.0
      %2713 = vmatpush1.msra.mxu0 0.0
      %2714 = vmatprep.subr.mxu0 0.0
      %2715 = vmatpush1.msra.mxu0 0.0
      %2716 = vmatprep.subr.mxu0 0.0
      %2717 = vmatpush1.msra.mxu0 0.0
      %2718 = vmatprep.subr.mxu0 0.0
      %2719 = vmatpush1.msra.mxu0 0.0
      %2720 = vmatprep.subr.mxu0 0.0
      %2721 = vmatpush1.msra.mxu0 0.0
      %2722 = vmatprep.subr.mxu0 0.0
      %2723 = vmatpush1.msra.mxu0 0.0
      %2724 = vmatprep.subr.mxu0 0.0
      %2725 = vmatpush1.msra.mxu0 0.0
      %2726 = vmatprep.subr.mxu0 0.0
      %2727 = vmatpush1.msra.mxu0 0.0
      %2728 = vmatprep.subr.mxu0 0.0
      %2729 = vmatpush1.msra.mxu0 0.0
      %2730 = vmatprep.subr.mxu0 0.0
      %2731 = vmatpush1.msra.mxu0 0.0
      %2732 = vmatprep.subr.mxu0 0.0
      %2733 = vmatpush1.msra.mxu0 0.0
      %2734 = vmatprep.subr.mxu0 0.0
      %2735 = vmatpush1.msra.mxu0 0.0
      %2736 = vmatprep.subr.mxu0 0.0
      %2737 = vmatpush1.msra.mxu0 0.0
      %2738 = vmatprep.subr.mxu0 0.0
      %2739 = vmatpush1.msra.mxu0 0.0
      %2740 = vmatprep.subr.mxu0 0.0
      %2741 = vmatpush1.msra.mxu0 %v2710
      %2742 = vmatprep.subr.mxu0 0.0
      %2743 = vmatpush1.msra.mxu0 %v2154
      %2744 = vmatprep.subr.mxu0 0.0
      %2745 = vmatpush2.msra.mxu0 0.0
      %2746 = vmatprep.subr.mxu0 0.0
      %2747 = vmatpush2.msra.mxu0 0.0
      %2748 = vmatprep.subr.mxu0 0.0
      %2749 = vmatpush2.msra.mxu0 0.0
      %2750 = vmatprep.subr.mxu0 0.0
      %2751 = vmatpush2.msra.mxu0 0.0
      %2752 = vmatprep.subr.mxu0 0.0
      %2753 = vmatpush2.msra.mxu0 0.0
      %2754 = vmatprep.subr.mxu0 0.0
      %2755 = vmatpush2.msra.mxu0 0.0
      %2756 = vmatprep.subr.mxu0 0.0
      %2757 = vmatpush2.msra.mxu0 0.0
      %2758 = vmatprep.subr.mxu0 0.0
      %2759 = vmatpush2.msra.mxu0 0.0
      %2760 = vmatprep.subr.mxu0 0.0
      %2761 = vmatpush2.msra.mxu0 0.0
      %2762 = vmatprep.subr.mxu0 0.0
      %2763 = vmatpush2.msra.mxu0 0.0
      %2764 = vmatprep.subr.mxu0 0.0
      %2765 = vmatpush2.msra.mxu0 0.0
      %2766 = vmatprep.subr.mxu0 0.0
      %2767 = vmatpush2.msra.mxu0 0.0
      %2768 = vmatprep.subr.mxu0 0.0
      %2769 = vmatpush2.msra.mxu0 0.0
      %2770 = vmatprep.subr.mxu0 0.0
      %2771 = vmatpush2.msra.mxu0 0.0
      %2772 = vmatprep.subr.mxu0 0.0
      %2773 = vmatpush2.msra.mxu0 0.0
      %2774 = vmatprep.subr.mxu0 0.0
      %2775 = vmatpush2.msra.mxu0 0.0
      %2776 = vmatprep.mubr.f32.mxu0 0.0
      %2777 = vmatmul.mubr.f32.gmra.mxu0 %v2704
      %v2778 = vpop.f32.mrf.mxu0
      %v2779 = vadd.f32 0.0, %v2778
      %v2780 = vpop.f32.mrf.mxu0
      %2781 = vmatprep.mubr.f32.mxu0 0.0
      %2782 = vmatmul.mubr.f32.gmra.mxu0 %v2707
      %v2783 = vpop.f32.mrf.mxu0
      %v2784 = vadd.f32 0.0, %v2783
      %v2785 = vpop.f32.mrf.mxu0
      %2786 = vdwg.mxu0
      %v2787 = vadd.f32 %v2692, %v2779
      %v2788 = vadd.f32 %v2697, %v2784
      %s2789 = scalar_lea.vmem %s10, 32
      %v2790 = vld [vmem:[%s2789] sm:$0xff]
      %v2791 = vld [vmem:[%s2789 + $0x8] sm:$0xff]
      %v2793 = vsel %vm2534, %v2790, 0
      %v2796 = vsel %vm2534, %v2791, 0
      %v2799 = vsel %vm737, %v2251, 0
      %2801 = vmatprep.subr.mxu0 0.0
      %2802 = vmatpush1.msra.mxu0 0.0
      %2803 = vmatprep.subr.mxu0 0.0
      %2804 = vmatpush1.msra.mxu0 0.0
      %2805 = vmatprep.subr.mxu0 0.0
      %2806 = vmatpush1.msra.mxu0 0.0
      %2807 = vmatprep.subr.mxu0 0.0
      %2808 = vmatpush1.msra.mxu0 0.0
      %2809 = vmatprep.subr.mxu0 0.0
      %2810 = vmatpush1.msra.mxu0 0.0
      %2811 = vmatprep.subr.mxu0 0.0
      %2812 = vmatpush1.msra.mxu0 0.0
      %2813 = vmatprep.subr.mxu0 0.0
      %2814 = vmatpush1.msra.mxu0 0.0
      %2815 = vmatprep.subr.mxu0 0.0
      %2816 = vmatpush1.msra.mxu0 0.0
      %2817 = vmatprep.subr.mxu0 0.0
      %2818 = vmatpush1.msra.mxu0 0.0
      %2819 = vmatprep.subr.mxu0 0.0
      %2820 = vmatpush1.msra.mxu0 0.0
      %2821 = vmatprep.subr.mxu0 0.0
      %2822 = vmatpush1.msra.mxu0 0.0
      %2823 = vmatprep.subr.mxu0 0.0
      %2824 = vmatpush1.msra.mxu0 0.0
      %2825 = vmatprep.subr.mxu0 0.0
      %2826 = vmatpush1.msra.mxu0 0.0
      %2827 = vmatprep.subr.mxu0 0.0
      %2828 = vmatpush1.msra.mxu0 0.0
      %2829 = vmatprep.subr.mxu0 0.0
      %2830 = vmatpush1.msra.mxu0 %v2799
      %2831 = vmatprep.subr.mxu0 0.0
      %2832 = vmatpush1.msra.mxu0 %v2246
      %2833 = vmatprep.subr.mxu0 0.0
      %2834 = vmatpush2.msra.mxu0 0.0
      %2835 = vmatprep.subr.mxu0 0.0
      %2836 = vmatpush2.msra.mxu0 0.0
      %2837 = vmatprep.subr.mxu0 0.0
      %2838 = vmatpush2.msra.mxu0 0.0
      %2839 = vmatprep.subr.mxu0 0.0
      %2840 = vmatpush2.msra.mxu0 0.0
      %2841 = vmatprep.subr.mxu0 0.0
      %2842 = vmatpush2.msra.mxu0 0.0
      %2843 = vmatprep.subr.mxu0 0.0
      %2844 = vmatpush2.msra.mxu0 0.0
      %2845 = vmatprep.subr.mxu0 0.0
      %2846 = vmatpush2.msra.mxu0 0.0
      %2847 = vmatprep.subr.mxu0 0.0
      %2848 = vmatpush2.msra.mxu0 0.0
      %2849 = vmatprep.subr.mxu0 0.0
      %2850 = vmatpush2.msra.mxu0 0.0
      %2851 = vmatprep.subr.mxu0 0.0
      %2852 = vmatpush2.msra.mxu0 0.0
      %2853 = vmatprep.subr.mxu0 0.0
      %2854 = vmatpush2.msra.mxu0 0.0
      %2855 = vmatprep.subr.mxu0 0.0
      %2856 = vmatpush2.msra.mxu0 0.0
      %2857 = vmatprep.subr.mxu0 0.0
      %2858 = vmatpush2.msra.mxu0 0.0
      %2859 = vmatprep.subr.mxu0 0.0
      %2860 = vmatpush2.msra.mxu0 0.0
      %2861 = vmatprep.subr.mxu0 0.0
      %2862 = vmatpush2.msra.mxu0 0.0
      %2863 = vmatprep.subr.mxu0 0.0
      %2864 = vmatpush2.msra.mxu0 0.0
      %2865 = vmatprep.mubr.f32.mxu0 0.0
      %2866 = vmatmul.mubr.f32.gmra.mxu0 %v2793
      %v2867 = vpop.f32.mrf.mxu0
      %v2868 = vadd.f32 0.0, %v2867
      %v2869 = vpop.f32.mrf.mxu0
      %2870 = vmatprep.mubr.f32.mxu0 0.0
      %2871 = vmatmul.mubr.f32.gmra.mxu0 %v2796
      %v2872 = vpop.f32.mrf.mxu0
      %v2873 = vadd.f32 0.0, %v2872
      %v2874 = vpop.f32.mrf.mxu0
      %2875 = vdwg.mxu0
      %v2876 = vadd.f32 %v2787, %v2868
      %v2877 = vadd.f32 %v2788, %v2873
      %s2878 = scalar_lea.vmem %s10, 48
      %v2879 = vld [vmem:[%s2878] sm:$0xff]
      %v2880 = vld [vmem:[%s2878 + $0x8] sm:$0xff]
      %v2882 = vsel %vm2534, %v2879, 0
      %v2885 = vsel %vm2534, %v2880, 0
      %v2888 = vsel %vm737, %v1978, 0
      %2890 = vmatprep.subr.mxu0 0.0
      %2891 = vmatpush1.msra.mxu0 0.0
      %2892 = vmatprep.subr.mxu0 0.0
      %2893 = vmatpush1.msra.mxu0 0.0
      %2894 = vmatprep.subr.mxu0 0.0
      %2895 = vmatpush1.msra.mxu0 0.0
      %2896 = vmatprep.subr.mxu0 0.0
      %2897 = vmatpush1.msra.mxu0 0.0
      %2898 = vmatprep.subr.mxu0 0.0
      %2899 = vmatpush1.msra.mxu0 0.0
      %2900 = vmatprep.subr.mxu0 0.0
      %2901 = vmatpush1.msra.mxu0 0.0
      %2902 = vmatprep.subr.mxu0 0.0
      %2903 = vmatpush1.msra.mxu0 0.0
      %2904 = vmatprep.subr.mxu0 0.0
      %2905 = vmatpush1.msra.mxu0 0.0
      %2906 = vmatprep.subr.mxu0 0.0
      %2907 = vmatpush1.msra.mxu0 0.0
      %2908 = vmatprep.subr.mxu0 0.0
      %2909 = vmatpush1.msra.mxu0 0.0
      %2910 = vmatprep.subr.mxu0 0.0
      %2911 = vmatpush1.msra.mxu0 0.0
      %2912 = vmatprep.subr.mxu0 0.0
      %2913 = vmatpush1.msra.mxu0 0.0
      %2914 = vmatprep.subr.mxu0 0.0
      %2915 = vmatpush1.msra.mxu0 0.0
      %2916 = vmatprep.subr.mxu0 0.0
      %2917 = vmatpush1.msra.mxu0 0.0
      %2918 = vmatprep.subr.mxu0 0.0
      %2919 = vmatpush1.msra.mxu0 %v2888
      %2920 = vmatprep.subr.mxu0 0.0
      %2921 = vmatpush1.msra.mxu0 %v1977
      %2922 = vmatprep.subr.mxu0 0.0
      %2923 = vmatpush2.msra.mxu0 0.0
      %2924 = vmatprep.subr.mxu0 0.0
      %2925 = vmatpush2.msra.mxu0 0.0
      %2926 = vmatprep.subr.mxu0 0.0
      %2927 = vmatpush2.msra.mxu0 0.0
      %2928 = vmatprep.subr.mxu0 0.0
      %2929 = vmatpush2.msra.mxu0 0.0
      %2930 = vmatprep.subr.mxu0 0.0
      %2931 = vmatpush2.msra.mxu0 0.0
      %2932 = vmatprep.subr.mxu0 0.0
      %2933 = vmatpush2.msra.mxu0 0.0
      %2934 = vmatprep.subr.mxu0 0.0
      %2935 = vmatpush2.msra.mxu0 0.0
      %2936 = vmatprep.subr.mxu0 0.0
      %2937 = vmatpush2.msra.mxu0 0.0
      %2938 = vmatprep.subr.mxu0 0.0
      %2939 = vmatpush2.msra.mxu0 0.0
      %2940 = vmatprep.subr.mxu0 0.0
      %2941 = vmatpush2.msra.mxu0 0.0
      %2942 = vmatprep.subr.mxu0 0.0
      %2943 = vmatpush2.msra.mxu0 0.0
      %2944 = vmatprep.subr.mxu0 0.0
      %2945 = vmatpush2.msra.mxu0 0.0
      %2946 = vmatprep.subr.mxu0 0.0
      %2947 = vmatpush2.msra.mxu0 0.0
      %2948 = vmatprep.subr.mxu0 0.0
      %2949 = vmatpush2.msra.mxu0 0.0
      %2950 = vmatprep.subr.mxu0 0.0
      %2951 = vmatpush2.msra.mxu0 0.0
      %2952 = vmatprep.subr.mxu0 0.0
      %2953 = vmatpush2.msra.mxu0 0.0
      %2954 = vmatprep.mubr.f32.mxu0 0.0
      %2955 = vmatmul.mubr.f32.gmra.mxu0 %v2882
      %v2956 = vpop.f32.mrf.mxu0
      %v2957 = vadd.f32 0.0, %v2956
      %v2958 = vpop.f32.mrf.mxu0
      %2959 = vmatprep.mubr.f32.mxu0 0.0
      %2960 = vmatmul.mubr.f32.gmra.mxu0 %v2885
      %v2961 = vpop.f32.mrf.mxu0
      %v2962 = vadd.f32 0.0, %v2961
      %v2963 = vpop.f32.mrf.mxu0
      %2964 = vdwg.mxu0
      %v2965 = vadd.f32 %v2876, %v2957
      %v2966 = vadd.f32 %v2877, %v2962
      %s2967 = scalar_lea.vmem %s10, 64
      %v2968 = vld [vmem:[%s2967] sm:$0xff]
      %v2969 = vld [vmem:[%s2967 + $0x8] sm:$0xff]
      %v2971 = vsel %vm2534, %v2968, 0
      %v2974 = vsel %vm2534, %v2969, 0
      %v2977 = vsel %vm737, %v2343, 0
      %2979 = vmatprep.subr.mxu0 0.0
      %2980 = vmatpush1.msra.mxu0 0.0
      %2981 = vmatprep.subr.mxu0 0.0
      %2982 = vmatpush1.msra.mxu0 0.0
      %2983 = vmatprep.subr.mxu0 0.0
      %2984 = vmatpush1.msra.mxu0 0.0
      %2985 = vmatprep.subr.mxu0 0.0
      %2986 = vmatpush1.msra.mxu0 0.0
      %2987 = vmatprep.subr.mxu0 0.0
      %2988 = vmatpush1.msra.mxu0 0.0
      %2989 = vmatprep.subr.mxu0 0.0
      %2990 = vmatpush1.msra.mxu0 0.0
      %2991 = vmatprep.subr.mxu0 0.0
      %2992 = vmatpush1.msra.mxu0 0.0
      %2993 = vmatprep.subr.mxu0 0.0
      %2994 = vmatpush1.msra.mxu0 0.0
      %2995 = vmatprep.subr.mxu0 0.0
      %2996 = vmatpush1.msra.mxu0 0.0
      %2997 = vmatprep.subr.mxu0 0.0
      %2998 = vmatpush1.msra.mxu0 0.0
      %2999 = vmatprep.subr.mxu0 0.0
      %3000 = vmatpush1.msra.mxu0 0.0
      %3001 = vmatprep.subr.mxu0 0.0
      %3002 = vmatpush1.msra.mxu0 0.0
      %3003 = vmatprep.subr.mxu0 0.0
      %3004 = vmatpush1.msra.mxu0 0.0
      %3005 = vmatprep.subr.mxu0 0.0
      %3006 = vmatpush1.msra.mxu0 0.0
      %3007 = vmatprep.subr.mxu0 0.0
      %3008 = vmatpush1.msra.mxu0 %v2977
      %3009 = vmatprep.subr.mxu0 0.0
      %3010 = vmatpush1.msra.mxu0 %v2338
      %3011 = vmatprep.subr.mxu0 0.0
      %3012 = vmatpush2.msra.mxu0 0.0
      %3013 = vmatprep.subr.mxu0 0.0
      %3014 = vmatpush2.msra.mxu0 0.0
      %3015 = vmatprep.subr.mxu0 0.0
      %3016 = vmatpush2.msra.mxu0 0.0
      %3017 = vmatprep.subr.mxu0 0.0
      %3018 = vmatpush2.msra.mxu0 0.0
      %3019 = vmatprep.subr.mxu0 0.0
      %3020 = vmatpush2.msra.mxu0 0.0
      %3021 = vmatprep.subr.mxu0 0.0
      %3022 = vmatpush2.msra.mxu0 0.0
      %3023 = vmatprep.subr.mxu0 0.0
      %3024 = vmatpush2.msra.mxu0 0.0
      %3025 = vmatprep.subr.mxu0 0.0
      %3026 = vmatpush2.msra.mxu0 0.0
      %3027 = vmatprep.subr.mxu0 0.0
      %3028 = vmatpush2.msra.mxu0 0.0
      %3029 = vmatprep.subr.mxu0 0.0
      %3030 = vmatpush2.msra.mxu0 0.0
      %3031 = vmatprep.subr.mxu0 0.0
      %3032 = vmatpush2.msra.mxu0 0.0
      %3033 = vmatprep.subr.mxu0 0.0
      %3034 = vmatpush2.msra.mxu0 0.0
      %3035 = vmatprep.subr.mxu0 0.0
      %3036 = vmatpush2.msra.mxu0 0.0
      %3037 = vmatprep.subr.mxu0 0.0
      %3038 = vmatpush2.msra.mxu0 0.0
      %3039 = vmatprep.subr.mxu0 0.0
      %3040 = vmatpush2.msra.mxu0 0.0
      %3041 = vmatprep.subr.mxu0 0.0
      %3042 = vmatpush2.msra.mxu0 0.0
      %3043 = vmatprep.mubr.f32.mxu0 0.0
      %3044 = vmatmul.mubr.f32.gmra.mxu0 %v2971
      %v3045 = vpop.f32.mrf.mxu0
      %v3046 = vadd.f32 0.0, %v3045
      %v3047 = vpop.f32.mrf.mxu0
      %3048 = vmatprep.mubr.f32.mxu0 0.0
      %3049 = vmatmul.mubr.f32.gmra.mxu0 %v2974
      %v3050 = vpop.f32.mrf.mxu0
      %v3051 = vadd.f32 0.0, %v3050
      %v3052 = vpop.f32.mrf.mxu0
      %3053 = vdwg.mxu0
      %v3054 = vadd.f32 %v2965, %v3046
      %v3055 = vadd.f32 %v2966, %v3051
      %s3056 = scalar_lea.vmem %s10, 80
      %v3057 = vld [vmem:[%s3056] sm:$0xff]
      %v3058 = vld [vmem:[%s3056 + $0x8] sm:$0xff]
      %v3060 = vsel %vm2534, %v3057, 0
      %v3063 = vsel %vm2534, %v3058, 0
      %v3066 = vsel %vm737, %v2435, 0
      %3068 = vmatprep.subr.mxu0 0.0
      %3069 = vmatpush1.msra.mxu0 0.0
      %3070 = vmatprep.subr.mxu0 0.0
      %3071 = vmatpush1.msra.mxu0 0.0
      %3072 = vmatprep.subr.mxu0 0.0
      %3073 = vmatpush1.msra.mxu0 0.0
      %3074 = vmatprep.subr.mxu0 0.0
      %3075 = vmatpush1.msra.mxu0 0.0
      %3076 = vmatprep.subr.mxu0 0.0
      %3077 = vmatpush1.msra.mxu0 0.0
      %3078 = vmatprep.subr.mxu0 0.0
      %3079 = vmatpush1.msra.mxu0 0.0
      %3080 = vmatprep.subr.mxu0 0.0
      %3081 = vmatpush1.msra.mxu0 0.0
      %3082 = vmatprep.subr.mxu0 0.0
      %3083 = vmatpush1.msra.mxu0 0.0
      %3084 = vmatprep.subr.mxu0 0.0
      %3085 = vmatpush1.msra.mxu0 0.0
      %3086 = vmatprep.subr.mxu0 0.0
      %3087 = vmatpush1.msra.mxu0 0.0
      %3088 = vmatprep.subr.mxu0 0.0
      %3089 = vmatpush1.msra.mxu0 0.0
      %3090 = vmatprep.subr.mxu0 0.0
      %3091 = vmatpush1.msra.mxu0 0.0
      %3092 = vmatprep.subr.mxu0 0.0
      %3093 = vmatpush1.msra.mxu0 0.0
      %3094 = vmatprep.subr.mxu0 0.0
      %3095 = vmatpush1.msra.mxu0 0.0
      %3096 = vmatprep.subr.mxu0 0.0
      %3097 = vmatpush1.msra.mxu0 %v3066
      %3098 = vmatprep.subr.mxu0 0.0
      %3099 = vmatpush1.msra.mxu0 %v2430
      %3100 = vmatprep.subr.mxu0 0.0
      %3101 = vmatpush2.msra.mxu0 0.0
      %3102 = vmatprep.subr.mxu0 0.0
      %3103 = vmatpush2.msra.mxu0 0.0
      %3104 = vmatprep.subr.mxu0 0.0
      %3105 = vmatpush2.msra.mxu0 0.0
      %3106 = vmatprep.subr.mxu0 0.0
      %3107 = vmatpush2.msra.mxu0 0.0
      %3108 = vmatprep.subr.mxu0 0.0
      %3109 = vmatpush2.msra.mxu0 0.0
      %3110 = vmatprep.subr.mxu0 0.0
      %3111 = vmatpush2.msra.mxu0 0.0
      %3112 = vmatprep.subr.mxu0 0.0
      %3113 = vmatpush2.msra.mxu0 0.0
      %3114 = vmatprep.subr.mxu0 0.0
      %3115 = vmatpush2.msra.mxu0 0.0
      %3116 = vmatprep.subr.mxu0 0.0
      %3117 = vmatpush2.msra.mxu0 0.0
      %3118 = vmatprep.subr.mxu0 0.0
      %3119 = vmatpush2.msra.mxu0 0.0
      %3120 = vmatprep.subr.mxu0 0.0
      %3121 = vmatpush2.msra.mxu0 0.0
      %3122 = vmatprep.subr.mxu0 0.0
      %3123 = vmatpush2.msra.mxu0 0.0
      %3124 = vmatprep.subr.mxu0 0.0
      %3125 = vmatpush2.msra.mxu0 0.0
      %3126 = vmatprep.subr.mxu0 0.0
      %3127 = vmatpush2.msra.mxu0 0.0
      %3128 = vmatprep.subr.mxu0 0.0
      %3129 = vmatpush2.msra.mxu0 0.0
      %3130 = vmatprep.subr.mxu0 0.0
      %3131 = vmatpush2.msra.mxu0 0.0
      %3132 = vmatprep.mubr.f32.mxu0 0.0
      %3133 = vmatmul.mubr.f32.gmra.mxu0 %v3060
      %v3134 = vpop.f32.mrf.mxu0
      %v3135 = vadd.f32 0.0, %v3134
      %v3136 = vpop.f32.mrf.mxu0
      %3137 = vmatprep.mubr.f32.mxu0 0.0
      %3138 = vmatmul.mubr.f32.gmra.mxu0 %v3063
      %v3139 = vpop.f32.mrf.mxu0
      %v3140 = vadd.f32 0.0, %v3139
      %v3141 = vpop.f32.mrf.mxu0
      %3142 = vdwg.mxu0
      %v3143 = vadd.f32 %v3054, %v3135
      %v3144 = vadd.f32 %v3055, %v3140
      %s3145 = scalar_lea.vmem %s10, 96
      %v3146 = vld [vmem:[%s3145] sm:$0xff]
      %v3147 = vld [vmem:[%s3145 + $0x8] sm:$0xff]
      %v3149 = vsel %vm2534, %v3146, 0
      %v3152 = vsel %vm2534, %v3147, 0
      %v3155 = vsel %vm737, %v2527, 0
      %3157 = vmatprep.subr.mxu0 0.0
      %3158 = vmatpush1.msra.mxu0 0.0
      %3159 = vmatprep.subr.mxu0 0.0
      %3160 = vmatpush1.msra.mxu0 0.0
      %3161 = vmatprep.subr.mxu0 0.0
      %3162 = vmatpush1.msra.mxu0 0.0
      %3163 = vmatprep.subr.mxu0 0.0
      %3164 = vmatpush1.msra.mxu0 0.0
      %3165 = vmatprep.subr.mxu0 0.0
      %3166 = vmatpush1.msra.mxu0 0.0
      %3167 = vmatprep.subr.mxu0 0.0
      %3168 = vmatpush1.msra.mxu0 0.0
      %3169 = vmatprep.subr.mxu0 0.0
      %3170 = vmatpush1.msra.mxu0 0.0
      %3171 = vmatprep.subr.mxu0 0.0
      %3172 = vmatpush1.msra.mxu0 0.0
      %3173 = vmatprep.subr.mxu0 0.0
      %3174 = vmatpush1.msra.mxu0 0.0
      %3175 = vmatprep.subr.mxu0 0.0
      %3176 = vmatpush1.msra.mxu0 0.0
      %3177 = vmatprep.subr.mxu0 0.0
      %3178 = vmatpush1.msra.mxu0 0.0
      %3179 = vmatprep.subr.mxu0 0.0
      %3180 = vmatpush1.msra.mxu0 0.0
      %3181 = vmatprep.subr.mxu0 0.0
      %3182 = vmatpush1.msra.mxu0 0.0
      %3183 = vmatprep.subr.mxu0 0.0
      %3184 = vmatpush1.msra.mxu0 0.0
      %3185 = vmatprep.subr.mxu0 0.0
      %3186 = vmatpush1.msra.mxu0 %v3155
      %3187 = vmatprep.subr.mxu0 0.0
      %3188 = vmatpush1.msra.mxu0 %v2522
      %3189 = vmatprep.subr.mxu0 0.0
      %3190 = vmatpush2.msra.mxu0 0.0
      %3191 = vmatprep.subr.mxu0 0.0
      %3192 = vmatpush2.msra.mxu0 0.0
      %3193 = vmatprep.subr.mxu0 0.0
      %3194 = vmatpush2.msra.mxu0 0.0
      %3195 = vmatprep.subr.mxu0 0.0
      %3196 = vmatpush2.msra.mxu0 0.0
      %3197 = vmatprep.subr.mxu0 0.0
      %3198 = vmatpush2.msra.mxu0 0.0
      %3199 = vmatprep.subr.mxu0 0.0
      %3200 = vmatpush2.msra.mxu0 0.0
      %3201 = vmatprep.subr.mxu0 0.0
      %3202 = vmatpush2.msra.mxu0 0.0
      %3203 = vmatprep.subr.mxu0 0.0
      %3204 = vmatpush2.msra.mxu0 0.0
      %3205 = vmatprep.subr.mxu0 0.0
      %3206 = vmatpush2.msra.mxu0 0.0
      %3207 = vmatprep.subr.mxu0 0.0
      %3208 = vmatpush2.msra.mxu0 0.0
      %3209 = vmatprep.subr.mxu0 0.0
      %3210 = vmatpush2.msra.mxu0 0.0
      %3211 = vmatprep.subr.mxu0 0.0
      %3212 = vmatpush2.msra.mxu0 0.0
      %3213 = vmatprep.subr.mxu0 0.0
      %3214 = vmatpush2.msra.mxu0 0.0
      %3215 = vmatprep.subr.mxu0 0.0
      %3216 = vmatpush2.msra.mxu0 0.0
      %3217 = vmatprep.subr.mxu0 0.0
      %3218 = vmatpush2.msra.mxu0 0.0
      %3219 = vmatprep.subr.mxu0 0.0
      %3220 = vmatpush2.msra.mxu0 0.0
      %3221 = vmatprep.mubr.f32.mxu0 0.0
      %3222 = vmatmul.mubr.f32.gmra.mxu0 %v3149
      %v3223 = vpop.f32.mrf.mxu0
      %v3224 = vadd.f32 0.0, %v3223
      %v3225 = vpop.f32.mrf.mxu0
      %3226 = vmatprep.mubr.f32.mxu0 0.0
      %3227 = vmatmul.mubr.f32.gmra.mxu0 %v3152
      %v3228 = vpop.f32.mrf.mxu0
      %v3229 = vadd.f32 0.0, %v3228
      %v3230 = vpop.f32.mrf.mxu0
      %3231 = vdwg.mxu0
      %v3232 = vadd.f32 %v3143, %v3224
      %v3233 = vadd.f32 %v3144, %v3229
      %v3234 = vmax.f32 %v2246, %v2338
      %v3235 = vmax.f32 %v2251, %v2343
      %v3236 = vmax.f32 %v1977, %v3234
      %v3237 = vmax.f32 %v1978, %v3235
      %v3238 = vld [vmem:[%s12] sm:$0xff]
      %v3239 = vld [vmem:[%s12 + $0x8] sm:$0xff]
      %v3241 = vsel %vm2534, %v3238, 0
      %v3244 = vsel %vm2534, %v3239, 0
      %v3247 = vsel %vm737, %v3237, 0
      %3249 = vmatprep.subr.mxu0 0.0
      %3250 = vmatpush1.msra.mxu0 0.0
      %3251 = vmatprep.subr.mxu0 0.0
      %3252 = vmatpush1.msra.mxu0 0.0
      %3253 = vmatprep.subr.mxu0 0.0
      %3254 = vmatpush1.msra.mxu0 0.0
      %3255 = vmatprep.subr.mxu0 0.0
      %3256 = vmatpush1.msra.mxu0 0.0
      %3257 = vmatprep.subr.mxu0 0.0
      %3258 = vmatpush1.msra.mxu0 0.0
      %3259 = vmatprep.subr.mxu0 0.0
      %3260 = vmatpush1.msra.mxu0 0.0
      %3261 = vmatprep.subr.mxu0 0.0
      %3262 = vmatpush1.msra.mxu0 0.0
      %3263 = vmatprep.subr.mxu0 0.0
      %3264 = vmatpush1.msra.mxu0 0.0
      %3265 = vmatprep.subr.mxu0 0.0
      %3266 = vmatpush1.msra.mxu0 0.0
      %3267 = vmatprep.subr.mxu0 0.0
      %3268 = vmatpush1.msra.mxu0 0.0
      %3269 = vmatprep.subr.mxu0 0.0
      %3270 = vmatpush1.msra.mxu0 0.0
      %3271 = vmatprep.subr.mxu0 0.0
      %3272 = vmatpush1.msra.mxu0 0.0
      %3273 = vmatprep.subr.mxu0 0.0
      %3274 = vmatpush1.msra.mxu0 0.0
      %3275 = vmatprep.subr.mxu0 0.0
      %3276 = vmatpush1.msra.mxu0 0.0
      %3277 = vmatprep.subr.mxu0 0.0
      %3278 = vmatpush1.msra.mxu0 %v3247
      %3279 = vmatprep.subr.mxu0 0.0
      %3280 = vmatpush1.msra.mxu0 %v3236
      %3281 = vmatprep.subr.mxu0 0.0
      %3282 = vmatpush2.msra.mxu0 0.0
      %3283 = vmatprep.subr.mxu0 0.0
      %3284 = vmatpush2.msra.mxu0 0.0
      %3285 = vmatprep.subr.mxu0 0.0
      %3286 = vmatpush2.msra.mxu0 0.0
      %3287 = vmatprep.subr.mxu0 0.0
      %3288 = vmatpush2.msra.mxu0 0.0
      %3289 = vmatprep.subr.mxu0 0.0
      %3290 = vmatpush2.msra.mxu0 0.0
      %3291 = vmatprep.subr.mxu0 0.0
      %3292 = vmatpush2.msra.mxu0 0.0
      %3293 = vmatprep.subr.mxu0 0.0
      %3294 = vmatpush2.msra.mxu0 0.0
      %3295 = vmatprep.subr.mxu0 0.0
      %3296 = vmatpush2.msra.mxu0 0.0
      %3297 = vmatprep.subr.mxu0 0.0
      %3298 = vmatpush2.msra.mxu0 0.0
      %3299 = vmatprep.subr.mxu0 0.0
      %3300 = vmatpush2.msra.mxu0 0.0
      %3301 = vmatprep.subr.mxu0 0.0
      %3302 = vmatpush2.msra.mxu0 0.0
      %3303 = vmatprep.subr.mxu0 0.0
      %3304 = vmatpush2.msra.mxu0 0.0
      %3305 = vmatprep.subr.mxu0 0.0
      %3306 = vmatpush2.msra.mxu0 0.0
      %3307 = vmatprep.subr.mxu0 0.0
      %3308 = vmatpush2.msra.mxu0 0.0
      %3309 = vmatprep.subr.mxu0 0.0
      %3310 = vmatpush2.msra.mxu0 0.0
      %3311 = vmatprep.subr.mxu0 0.0
      %3312 = vmatpush2.msra.mxu0 0.0
      %3313 = vmatprep.mubr.f32.mxu0 0.0
      %3314 = vmatmul.mubr.f32.gmra.mxu0 %v3241
      %v3315 = vpop.f32.mrf.mxu0
      %v3316 = vadd.f32 0.0, %v3315
      %v3317 = vpop.f32.mrf.mxu0
      %3318 = vmatprep.mubr.f32.mxu0 0.0
      %3319 = vmatmul.mubr.f32.gmra.mxu0 %v3244
      %v3320 = vpop.f32.mrf.mxu0
      %v3321 = vadd.f32 0.0, %v3320
      %v3322 = vpop.f32.mrf.mxu0
      %3323 = vdwg.mxu0
      %v3324 = vadd.f32 %v3232, %v3316
      %v3325 = vadd.f32 %v3233, %v3321
      %v3326 = vld [vmem:[%s13] sm:$0xff]
      %v3327 = vld [vmem:[%s13 + $0x8] sm:$0xff]
      %3329 = vset.pattern.permute.xlu0 0
      %3330 = vperm.xlu0 %3329, %v3326
      %v3331 = vpop.permute.xlu0 %3330
      %3334 = vset.pattern.permute.xlu0 0
      %3335 = vperm.xlu0 %3334, %v3327
      %v3336 = vpop.permute.xlu0 %3335
      %v3338 = vadd.f32 %v3324, %v3331
      %v3339 = vadd.f32 %v3325, %v3336
      %v3340 = vadd.f32 %v3338, %v468
      %v3341 = vadd.f32 %v3339, %v469
      %v3342 = vmax.f32 %v3340, 0.0
      %v3343 = vmax.f32 %v3341, 0.0
      %3344 = vst [vmem:[%s467] sm:$0xff] %v3342
      %3345 = vst [vmem:[%s467 + $0x8] sm:$0xff] %v3343
      %p3346 = scmp.lt.s32.totalorder %s25, 1
      %s3347 = scalar_select %p3346, %s25, 1
      %s3348 = smul.addr %s3347, 2
      %s3349 = smul.addr %s3348, 8
      %s3350 = scalar_lea.vmem %s14, %s3349
      // Predicated region
      $region77: #{stgc_block_forward.1} parent=75 // pred_check
        %p3351 = pneg %p342
      $region78: #{stgc_block_forward.1} parent=75 // pred_check_branch
        %3353 = sbr.rel (%p3351) target = $region80
      $region79: #{stgc_block_forward.1} parent=75 // pred_region
        _
      $region80: #{stgc_block_forward.1} parent=75 // pred_fallthru
        _
    $region76: #{stgc_block_forward.1} parent=5 // pred_fallthru
      _
    %p3354 = scmp.le.s32.totalorder 2, %s20
    // Predicated region
    $region81: #{stgc_block_forward.1} parent=5 // pred_check
      %p3355 = pneg %p3354
    $region82: #{stgc_block_forward.1} parent=5 // pred_check_branch
      %3357 = sbr.rel (%p3355) target = $region84
    $region83: #{stgc_block_forward.1} parent=5 // pred_region
      %s3358 = ssub.s32 %s20, 2
      // Predicated region
      $region85: #{stgc_block_forward.1} parent=83 // pred_check
        %p3359 = pneg %p348
      $region86: #{stgc_block_forward.1} parent=83 // pred_check_branch
        %3361 = sbr.rel (%p3359) target = $region88
      $region87: #{stgc_block_forward.1} parent=83 // pred_region
        %p3362 = scmp.lt.s32.totalorder %s26, 1
        %s3363 = scalar_select %p3362, %s26, 1
        %s3364 = smul.addr %s3363, 2
        %s3365 = smul.addr %s3364, 8
        %s3366 = scalar_lea.vmem %s14, %s3365
      $region88: #{stgc_block_forward.1} parent=83 // pred_fallthru
        _
    $region84: #{stgc_block_forward.1} parent=5 // pred_fallthru
      _
  $region6: #{stgc_block_forward.1} parent=0 // loop_footer
    %s24 = sadd.s32 1, %s20
  $region7: #{stgc_block_forward.1} parent=0 // loop_footer_branch
    %19 = sbr.rel target = $region3
  $region8: #{stgc_block_forward.1} parent=0 // loop_exit
    _

</llo_original>
